<compile_context>
chip_gen: v5e
topology: v5e:2x2
jax: 0.10.0
libtpu: 0.0.40
codegen_flags: <defaults>
</compile_context>

<pallas_src>
import math
import functools

import jax
import jax.numpy as jnp
from jax.experimental import pallas as pl
from jax.experimental.pallas import tpu as pltpu

EPS = 1e-6
GELU_C = math.sqrt(22.0 / 7.0)  # module uses sqrt(22/7), NOT sqrt(2/pi)


def _layernorm(x, gamma, beta):
    # Matches the PyTorch LayerNorm module: biased std, divide by (std + eps).
    mean = jnp.mean(x, axis=-1, keepdims=True)
    var = jnp.mean((x - mean) ** 2, axis=-1, keepdims=True)
    std = jnp.sqrt(var)
    return gamma * (x - mean) / (std + EPS) + beta


def _gelu(x):
    x3 = x * x * x  # explicit multiplies lower better than jnp power
    return 0.5 * x * (1.0 + jnp.tanh(GELU_C * (x + 0.044715 * x3)))


def encoder_layer_kernel(num_head, split_q, *refs):
    # split_q is a static Python flag: when True, a separate (TS, D) query tile is
    # passed in addition to the full (S, D) key/value sequence.
    if split_q:
        (xt_ref, xf_ref, bias_ref,
         wq_ref, bq_ref, wkv_ref, bkv_ref, wo_ref, bo_ref,
         g1_ref, be1_ref, w1_ref, b1_ref, w2_ref, b2_ref,
         g2_ref, be2_ref, o_ref) = refs
    else:
        (xf_ref, bias_ref,
         wq_ref, bq_ref, wkv_ref, bkv_ref, wo_ref, bo_ref,
         g1_ref, be1_ref, w1_ref, b1_ref, w2_ref, b2_ref,
         g2_ref, be2_ref, o_ref) = refs

    xf = xf_ref[...]              # (S, D) f32: full sequence (keys / values)
    mask_bias = bias_ref[...]     # (1, S) f32: 0.0 keep / -1e9 masked (additive)
    S, D = xf.shape
    hd = D // num_head

    g1 = g1_ref[...]
    be1 = be1_ref[...]

    # ---- residual 1: x + MHA(LN(x)) ----
    xn_f = _layernorm(xf, g1, be1)
    if split_q:
        xt = xt_ref[...]          # (TS, D) query / residual rows
        xn_t = _layernorm(xt, g1, be1)
    else:                         # single sequence tile: reuse LN(x)
        xt, xn_t = xf, xn_f

    # Q (scale pre-folded into wq/bq) and fused K|V projection: bf16 on the MXU,
    # f32 accumulation.
    q = jnp.dot(xn_t.astype(jnp.bfloat16), wq_ref[...],
                preferred_element_type=jnp.float32) + bq_ref[...]        # (TS, D)
    kv = jnp.dot(xn_f.astype(jnp.bfloat16), wkv_ref[...],
                 preferred_element_type=jnp.float32) + bkv_ref[...]      # (S, 2D)

    qb = q.astype(jnp.bfloat16)
    kb = kv[:, :D].astype(jnp.bfloat16)
    vb = kv[:, D:].astype(jnp.bfloat16)

    ctx_heads = []
    for h in range(num_head):     # static unrolled loop over heads
        lo = h * hd
        s = jax.lax.dot_general(qb[:, lo:lo + hd], kb[:, lo:lo + hd],
                                (((1,), (1,)), ((), ())),
                                preferred_element_type=jnp.float32)      # (TS, S)
        s = s + mask_bias
        s = s - jnp.max(s, axis=-1, keepdims=True)
        p = jnp.exp(s)
        inv = pl.reciprocal(jnp.sum(p, axis=-1, keepdims=True), approx=True)
        ctx = jnp.dot(p.astype(jnp.bfloat16), vb[:, lo:lo + hd],
                      preferred_element_type=jnp.float32) * inv          # (TS, hd)
        ctx_heads.append(ctx)
    ctx = jnp.concatenate(ctx_heads, axis=-1)                            # (TS, D)

    attn = jnp.dot(ctx.astype(jnp.bfloat16), wo_ref[...],
                   preferred_element_type=jnp.float32) + bo_ref[...]
    x1 = xt + attn

    # ---- residual 2: x1 + FFN(LN(x1)) ----
    # TODO(synk): for v7x at BERT-base sizes, stream d_ff in chunks (inner pipeline
    # over w1/w2 tiles) instead of keeping both FFN weights fully resident.
    xn2 = _layernorm(x1, g2_ref[...], be2_ref[...])
    h1 = jnp.dot(xn2.astype(jnp.bfloat16), w1_ref[...],
                 preferred_element_type=jnp.float32) + b1_ref[...]       # (TS, d_ff)
    h1 = _gelu(h1)
    ff = jnp.dot(h1.astype(jnp.bfloat16), w2_ref[...],
                 preferred_element_type=jnp.float32) + b2_ref[...]       # (TS, D)

    o_ref[...] = x1 + ff


def _pick_seq_tile(S, max_tile=256):
    """Largest query-sequence tile that is a multiple of 8 and divides S."""
    if S <= max_tile:
        return S
    for ts in range(max_tile - (max_tile % 8), 7, -8):
        if S % ts == 0:
            return ts
    return S


def _vmem_limit_bytes(S, TS, D, d_ff):
    weights = 2 * (4 * D * D + 2 * D * d_ff)                 # bf16, single-buffered
    small = 4 * (7 * D + d_ff)                               # f32 biases + LN params
    acts = 2 * 2 * 4 * (TS * D + S * D + S)                  # double-buffered blocks
    interm = 4 * (4 * S * D + 2 * TS * S + 2 * TS * d_ff + 6 * TS * D)
    est = 2 * (weights + small + acts + interm)              # 2x headroom
    return int(min(max(est, 32 * 1024 * 1024), 64 * 1024 * 1024))


_WEIGHT_NAMES = ["wq", "bq", "wkv", "bkv", "wo", "bo",
                 "g1", "be1", "w1", "b1", "w2", "b2", "g2", "be2"]


def _weight_specs(lp, resident):
    arrays = [lp[n] for n in _WEIGHT_NAMES]
    if resident:
        # Whole-array VMEM residents: not grid-pipelined, so no double-buffering.
        specs = [pl.BlockSpec(memory_space=pltpu.MemorySpace.VMEM) for _ in arrays]
    else:
        # Fallback: grid-blocked full-array specs (constant index_map).
        specs = [pl.BlockSpec(a.shape, lambda b, s: (0, 0)) for a in arrays]
    return arrays, specs


def _encoder_layer_call(x, mask_bias, lp, num_head, resident):
    B, S, D = x.shape
    d_ff = lp["w1"].shape[1]
    TS = _pick_seq_tile(S)
    n_s = S // TS
    split_q = n_s > 1

    warrays, wspecs = _weight_specs(lp, resident)

    operands = []
    in_specs = []
    if split_q:
        in_specs.append(pl.BlockSpec((None, TS, D), lambda b, s: (b, s, 0)))  # query tile
        operands.append(x)
    in_specs.append(pl.BlockSpec((None, S, D), lambda b, s: (b, 0, 0)))       # full seq (K/V)
    operands.append(x)
    in_specs.append(pl.BlockSpec((None, 1, S), lambda b, s: (b, 0, 0)))       # additive mask
    operands.append(mask_bias)
    in_specs += wspecs
    operands += warrays

    out_spec = pl.BlockSpec((None, TS, D), lambda b, s: (b, s, 0))

    kernel = functools.partial(encoder_layer_kernel, num_head, split_q)
    call = pl.pallas_call(
        kernel,
        out_shape=jax.ShapeDtypeStruct((B, S, D), jnp.float32),
        grid=(B, n_s),
        in_specs=in_specs,
        out_specs=out_spec,
        compiler_params=pltpu.CompilerParams(
            dimension_semantics=("parallel", "parallel"),
            vmem_limit_bytes=_vmem_limit_bytes(S, TS, D, d_ff)),
    )
    return call(*operands)


_RESIDENT_WEIGHTS = None  # None = untested, then True/False


def encoder_layer(x, mask_bias, lp, num_head):
    global _RESIDENT_WEIGHTS
    if _RESIDENT_WEIGHTS is None:
        try:
            out = _encoder_layer_call(x, mask_bias, lp, num_head, resident=True)
            jax.block_until_ready(out)
            _RESIDENT_WEIGHTS = True
            return out
        except Exception:
            # Backend rejected whole-array VMEM weight specs; fall back to
            # grid-blocked weight specs (still correct, just double-buffered).
            _RESIDENT_WEIGHTS = False
    return _encoder_layer_call(x, mask_bias, lp, num_head,
                               resident=_RESIDENT_WEIGHTS)


def init_bert_params(key, vocab_size, hidden, num_layers, d_ff, max_seq_len=512):
    """Parameters in PyTorch layout: Linear weights as (in, out) so y = x @ W + b."""
    keys = jax.random.split(key, 3 + num_layers)
    params = {
        "tok_emb": jax.random.normal(keys[0], (vocab_size, hidden), jnp.float32) * 0.02,
        "seg_emb": jax.random.normal(keys[1], (vocab_size, hidden), jnp.float32) * 0.02,
        "pos_emb": jax.random.normal(keys[2], (max_seq_len, hidden), jnp.float32) * 0.02,
        "layers": [],
    }
    for i in range(num_layers):
        lk = jax.random.split(keys[3 + i], 6)
        layer = {
            "wq": jax.random.normal(lk[0], (hidden, hidden), jnp.float32) * 0.02,
            "bq": jnp.zeros((1, hidden), jnp.float32),
            "wk": jax.random.normal(lk[1], (hidden, hidden), jnp.float32) * 0.02,
            "bk": jnp.zeros((1, hidden), jnp.float32),
            "wv": jax.random.normal(lk[2], (hidden, hidden), jnp.float32) * 0.02,
            "bv": jnp.zeros((1, hidden), jnp.float32),
            "wo": jax.random.normal(lk[3], (hidden, hidden), jnp.float32) * 0.02,
            "bo": jnp.zeros((1, hidden), jnp.float32),
            "g1": jnp.ones((1, hidden), jnp.float32),
            "be1": jnp.zeros((1, hidden), jnp.float32),
            "w1": jax.random.normal(lk[4], (hidden, d_ff), jnp.float32) * 0.02,
            "b1": jnp.zeros((1, d_ff), jnp.float32),
            "w2": jax.random.normal(lk[5], (d_ff, hidden), jnp.float32) * 0.02,
            "b2": jnp.zeros((1, hidden), jnp.float32),
            "g2": jnp.ones((1, hidden), jnp.float32),
            "be2": jnp.zeros((1, hidden), jnp.float32),
        }
        params["layers"].append(layer)
    return params


def fuse_layer_params(layer, num_head):
    """Fold attention scale into Wq/bq, fuse K|V weights, cast matmul weights to bf16."""
    D = layer["wq"].shape[0]
    hd = D // num_head
    scale = 1.0 / math.sqrt(hd)
    return {
        "wq": (layer["wq"] * scale).astype(jnp.bfloat16),
        "bq": (layer["bq"] * scale).astype(jnp.float32),
        "wkv": jnp.concatenate([layer["wk"], layer["wv"]], axis=1).astype(jnp.bfloat16),
        "bkv": jnp.concatenate([layer["bk"], layer["bv"]], axis=1).astype(jnp.float32),
        "wo": layer["wo"].astype(jnp.bfloat16), "bo": layer["bo"],
        "g1": layer["g1"], "be1": layer["be1"],
        "w1": layer["w1"].astype(jnp.bfloat16), "b1": layer["b1"],
        "w2": layer["w2"].astype(jnp.bfloat16), "b2": layer["b2"],
        "g2": layer["g2"], "be2": layer["be2"],
    }


def bert_forward(params, input_ids, token_type_ids, num_head):
    B, S = input_ids.shape
    # mask = (x != 0).unsqueeze(1).unsqueeze(2) only depends on key position per
    # batch; carry it as an additive bias (0 keep / -1e9 masked) of shape (B,1,S).
    mask_bias = jnp.where(input_ids != 0, 0.0, -1.0e9).astype(jnp.float32).reshape(B, 1, S)

    # Embedding gathers (plain-JAX glue); dropout is identity (eval).
    x = (params["tok_emb"][input_ids]
         + params["seg_emb"][token_type_ids]
         + params["pos_emb"][:S][None, :, :])

    fused = [fuse_layer_params(lp, num_head) for lp in params["layers"]]
    for lp in fused:
        x = encoder_layer(x, mask_bias, lp, num_head)
    return x


if __name__ == "__main__":
    vocab_size = 100
    hidden = 32
    num_layers = 2
    num_head = 4
    B, S = 2, 8

    assert hidden % num_head == 0

    key = jax.random.PRNGKey(0)
    pkey, ikey, skey = jax.random.split(key, 3)

    params = init_bert_params(pkey, vocab_size, hidden, num_layers, d_ff=hidden * 4)
    input_ids = jax.random.randint(ikey, (B, S), 0, vocab_size, dtype=jnp.int32)
    token_type_ids = jax.random.randint(skey, (B, S), 0, 2, dtype=jnp.int32)

    out = bert_forward(params, input_ids, token_type_ids, num_head)
    out = jax.block_until_ready(out)
    assert out.shape == (B, S, hidden)
    assert jnp.all(jnp.isfinite(out))
    print("KERNEL_OK")
</pallas_src>

<mosaic_0001>
module attributes {stable_mosaic.version = 11 : i64} {
  func.func @encoder_layer_kernel(%arg0: i32, %arg1: i32, %arg2: memref<1x8x32xf32, #tpu.memory_space<vmem>>, %arg3: memref<1x1x8xf32, #tpu.memory_space<vmem>>, %arg4: memref<32x32xbf16, #tpu.memory_space<vmem>>, %arg5: memref<1x32xf32, #tpu.memory_space<vmem>>, %arg6: memref<32x64xbf16, #tpu.memory_space<vmem>>, %arg7: memref<1x64xf32, #tpu.memory_space<vmem>>, %arg8: memref<32x32xbf16, #tpu.memory_space<vmem>>, %arg9: memref<1x32xf32, #tpu.memory_space<vmem>>, %arg10: memref<1x32xf32, #tpu.memory_space<vmem>>, %arg11: memref<1x32xf32, #tpu.memory_space<vmem>>, %arg12: memref<32x128xbf16, #tpu.memory_space<vmem>>, %arg13: memref<1x128xf32, #tpu.memory_space<vmem>>, %arg14: memref<128x32xbf16, #tpu.memory_space<vmem>>, %arg15: memref<1x32xf32, #tpu.memory_space<vmem>>, %arg16: memref<1x32xf32, #tpu.memory_space<vmem>>, %arg17: memref<1x32xf32, #tpu.memory_space<vmem>>, %arg18: memref<1x8x32xf32, #tpu.memory_space<vmem>>) attributes {dimension_semantics = [#tpu.dimension_semantics<parallel>, #tpu.dimension_semantics<parallel>], iteration_bounds = array<i64: 2, 1>, scalar_prefetch = 0 : i64, scratch_operands = 0 : i64, tpu.core_type = #tpu.core_type<tc>, window_params = [{transform_indices = @transform_0, window_bounds = array<i64: 1, 8, 32>}, {transform_indices = @transform_1, window_bounds = array<i64: 1, 1, 8>}, {pipeline_mode = #tpu.pipeline_mode<synchronous>, transform_indices = @transform_2, window_bounds = array<i64: 32, 32>}, {pipeline_mode = #tpu.pipeline_mode<synchronous>, transform_indices = @transform_3, window_bounds = array<i64: 1, 32>}, {pipeline_mode = #tpu.pipeline_mode<synchronous>, transform_indices = @transform_4, window_bounds = array<i64: 32, 64>}, {pipeline_mode = #tpu.pipeline_mode<synchronous>, transform_indices = @transform_5, window_bounds = array<i64: 1, 64>}, {pipeline_mode = #tpu.pipeline_mode<synchronous>, transform_indices = @transform_6, window_bounds = array<i64: 32, 32>}, {pipeline_mode = #tpu.pipeline_mode<synchronous>, transform_indices = @transform_7, window_bounds = array<i64: 1, 32>}, {pipeline_mode = #tpu.pipeline_mode<synchronous>, transform_indices = @transform_8, window_bounds = array<i64: 1, 32>}, {pipeline_mode = #tpu.pipeline_mode<synchronous>, transform_indices = @transform_9, window_bounds = array<i64: 1, 32>}, {pipeline_mode = #tpu.pipeline_mode<synchronous>, transform_indices = @transform_10, window_bounds = array<i64: 32, 128>}, {pipeline_mode = #tpu.pipeline_mode<synchronous>, transform_indices = @transform_11, window_bounds = array<i64: 1, 128>}, {pipeline_mode = #tpu.pipeline_mode<synchronous>, transform_indices = @transform_12, window_bounds = array<i64: 128, 32>}, {pipeline_mode = #tpu.pipeline_mode<synchronous>, transform_indices = @transform_13, window_bounds = array<i64: 1, 32>}, {pipeline_mode = #tpu.pipeline_mode<synchronous>, transform_indices = @transform_14, window_bounds = array<i64: 1, 32>}, {pipeline_mode = #tpu.pipeline_mode<synchronous>, transform_indices = @transform_15, window_bounds = array<i64: 1, 32>}, {transform_indices = @transform_16, window_bounds = array<i64: 1, 8, 32>}]} {
    %c0 = arith.constant 0 : index
    %c0_0 = arith.constant 0 : index
    %c0_1 = arith.constant 0 : index
    %0 = vector.load %arg2[%c0, %c0_0, %c0_1] : memref<1x8x32xf32, #tpu.memory_space<vmem>>, vector<1x8x32xf32>
    %1 = vector.shape_cast %0 : vector<1x8x32xf32> to vector<8x32xf32>
    %c0_2 = arith.constant 0 : index
    %c0_3 = arith.constant 0 : index
    %c0_4 = arith.constant 0 : index
    %2 = vector.load %arg3[%c0_2, %c0_3, %c0_4] : memref<1x1x8xf32, #tpu.memory_space<vmem>>, vector<1x1x8xf32>
    %3 = vector.shape_cast %2 : vector<1x1x8xf32> to vector<1x8xf32>
    %c0_5 = arith.constant 0 : index
    %c0_6 = arith.constant 0 : index
    %4 = vector.load %arg10[%c0_5, %c0_6] : memref<1x32xf32, #tpu.memory_space<vmem>>, vector<1x32xf32>
    %c0_7 = arith.constant 0 : index
    %c0_8 = arith.constant 0 : index
    %5 = vector.load %arg11[%c0_7, %c0_8] : memref<1x32xf32, #tpu.memory_space<vmem>>, vector<1x32xf32>
    %cst = arith.constant dense<0.000000e+00> : vector<8xf32>
    %6 = vector.multi_reduction <add>, %1, %cst [1] : vector<8x32xf32> to vector<8xf32>
    %7 = vector.shape_cast %6 : vector<8xf32> to vector<8x1xf32>
    %cst_9 = arith.constant 3.200000e+01 : f32
    %8 = vector.broadcast %cst_9 : f32 to vector<8x1xf32>
    %9 = arith.divf %7, %8 : vector<8x1xf32>
    %10 = vector.broadcast %9 : vector<8x1xf32> to vector<8x32xf32>
    %11 = arith.subf %1, %10 : vector<8x32xf32>
    %12 = arith.mulf %11, %11 : vector<8x32xf32>
    %cst_10 = arith.constant dense<0.000000e+00> : vector<8xf32>
    %13 = vector.multi_reduction <add>, %12, %cst_10 [1] : vector<8x32xf32> to vector<8xf32>
    %14 = vector.shape_cast %13 : vector<8xf32> to vector<8x1xf32>
    %cst_11 = arith.constant 3.200000e+01 : f32
    %15 = vector.broadcast %cst_11 : f32 to vector<8x1xf32>
    %16 = arith.divf %14, %15 : vector<8x1xf32>
    %17 = math.sqrt %16 : vector<8x1xf32>
    %18 = vector.broadcast %9 : vector<8x1xf32> to vector<8x32xf32>
    %19 = arith.subf %1, %18 : vector<8x32xf32>
    %20 = vector.broadcast %4 : vector<1x32xf32> to vector<8x32xf32>
    %21 = arith.mulf %20, %19 : vector<8x32xf32>
    %cst_12 = arith.constant 9.99999997E-7 : f32
    %22 = vector.broadcast %cst_12 : f32 to vector<8x1xf32>
    %23 = arith.addf %17, %22 : vector<8x1xf32>
    %24 = vector.broadcast %23 : vector<8x1xf32> to vector<8x32xf32>
    %25 = arith.divf %21, %24 : vector<8x32xf32>
    %26 = vector.broadcast %5 : vector<1x32xf32> to vector<8x32xf32>
    %27 = arith.addf %25, %26 : vector<8x32xf32>
    %28 = arith.truncf %27 : vector<8x32xf32> to vector<8x32xbf16>
    %c0_13 = arith.constant 0 : index
    %c0_14 = arith.constant 0 : index
    %29 = vector.load %arg4[%c0_13, %c0_14] : memref<32x32xbf16, #tpu.memory_space<vmem>>, vector<32x32xbf16>
    %cst_15 = arith.constant dense<0.000000e+00> : vector<8x32xf32>
    %30 = tpu.matmul %28, %29, %cst_15 {dimension_numbers = #tpu.dot_dimension_numbers<[1], [0], [0], [1], [0, 0, 1, 1], [], []>} : vector<8x32xbf16>, vector<32x32xbf16>, vector<8x32xf32> -> vector<8x32xf32>
    %c0_16 = arith.constant 0 : index
    %c0_17 = arith.constant 0 : index
    %31 = vector.load %arg5[%c0_16, %c0_17] : memref<1x32xf32, #tpu.memory_space<vmem>>, vector<1x32xf32>
    %32 = vector.broadcast %31 : vector<1x32xf32> to vector<8x32xf32>
    %33 = arith.addf %30, %32 : vector<8x32xf32>
    %34 = arith.truncf %27 : vector<8x32xf32> to vector<8x32xbf16>
    %c0_18 = arith.constant 0 : index
    %c0_19 = arith.constant 0 : index
    %35 = vector.load %arg6[%c0_18, %c0_19] : memref<32x64xbf16, #tpu.memory_space<vmem>>, vector<32x64xbf16>
    %cst_20 = arith.constant dense<0.000000e+00> : vector<8x64xf32>
    %36 = tpu.matmul %34, %35, %cst_20 {dimension_numbers = #tpu.dot_dimension_numbers<[1], [0], [0], [1], [0, 0, 1, 1], [], []>} : vector<8x32xbf16>, vector<32x64xbf16>, vector<8x64xf32> -> vector<8x64xf32>
    %c0_21 = arith.constant 0 : index
    %c0_22 = arith.constant 0 : index
    %37 = vector.load %arg7[%c0_21, %c0_22] : memref<1x64xf32, #tpu.memory_space<vmem>>, vector<1x64xf32>
    %38 = vector.broadcast %37 : vector<1x64xf32> to vector<8x64xf32>
    %39 = arith.addf %36, %38 : vector<8x64xf32>
    %40 = arith.truncf %33 : vector<8x32xf32> to vector<8x32xbf16>
    %41 = vector.extract_strided_slice %39 {offsets = [0, 0], sizes = [8, 32], strides = [1, 1]} : vector<8x64xf32> to vector<8x32xf32>
    %42 = arith.truncf %41 : vector<8x32xf32> to vector<8x32xbf16>
    %43 = vector.extract_strided_slice %39 {offsets = [0, 32], sizes = [8, 32], strides = [1, 1]} : vector<8x64xf32> to vector<8x32xf32>
    %44 = arith.truncf %43 : vector<8x32xf32> to vector<8x32xbf16>
    %45 = vector.extract_strided_slice %40 {offsets = [0, 0], sizes = [8, 8], strides = [1, 1]} : vector<8x32xbf16> to vector<8x8xbf16>
    %46 = vector.extract_strided_slice %42 {offsets = [0, 0], sizes = [8, 8], strides = [1, 1]} : vector<8x32xbf16> to vector<8x8xbf16>
    %cst_23 = arith.constant dense<0.000000e+00> : vector<8x8xf32>
    %47 = tpu.matmul %45, %46, %cst_23 {dimension_numbers = #tpu.dot_dimension_numbers<[1], [1], [0], [0], [0, 0, 1, 0], [], []>} : vector<8x8xbf16>, vector<8x8xbf16>, vector<8x8xf32> -> vector<8x8xf32>
    %48 = vector.broadcast %3 : vector<1x8xf32> to vector<8x8xf32>
    %49 = arith.addf %47, %48 : vector<8x8xf32>
    %cst_24 = arith.constant dense<0xFF800000> : vector<8xf32>
    %50 = vector.multi_reduction <maximumf>, %49, %cst_24 [1] : vector<8x8xf32> to vector<8xf32>
    %51 = vector.shape_cast %50 : vector<8xf32> to vector<8x1xf32>
    %52 = vector.broadcast %51 : vector<8x1xf32> to vector<8x8xf32>
    %53 = arith.subf %49, %52 : vector<8x8xf32>
    %54 = math.exp %53 : vector<8x8xf32>
    %cst_25 = arith.constant dense<0.000000e+00> : vector<8xf32>
    %55 = vector.multi_reduction <add>, %54, %cst_25 [1] : vector<8x8xf32> to vector<8xf32>
    %56 = vector.shape_cast %55 : vector<8xf32> to vector<8x1xf32>
    %57 = tpu.reciprocal %56 {approx = true} : vector<8x1xf32> -> vector<8x1xf32>
    %58 = arith.truncf %54 : vector<8x8xf32> to vector<8x8xbf16>
    %59 = vector.extract_strided_slice %44 {offsets = [0, 0], sizes = [8, 8], strides = [1, 1]} : vector<8x32xbf16> to vector<8x8xbf16>
    %cst_26 = arith.constant dense<0.000000e+00> : vector<8x8xf32>
    %60 = tpu.matmul %58, %59, %cst_26 {dimension_numbers = #tpu.dot_dimension_numbers<[1], [0], [0], [1], [0, 0, 1, 1], [], []>} : vector<8x8xbf16>, vector<8x8xbf16>, vector<8x8xf32> -> vector<8x8xf32>
    %61 = vector.broadcast %57 : vector<8x1xf32> to vector<8x8xf32>
    %62 = arith.mulf %60, %61 : vector<8x8xf32>
    %63 = vector.extract_strided_slice %40 {offsets = [0, 8], sizes = [8, 8], strides = [1, 1]} : vector<8x32xbf16> to vector<8x8xbf16>
    %64 = vector.extract_strided_slice %42 {offsets = [0, 8], sizes = [8, 8], strides = [1, 1]} : vector<8x32xbf16> to vector<8x8xbf16>
    %cst_27 = arith.constant dense<0.000000e+00> : vector<8x8xf32>
    %65 = tpu.matmul %63, %64, %cst_27 {dimension_numbers = #tpu.dot_dimension_numbers<[1], [1], [0], [0], [0, 0, 1, 0], [], []>} : vector<8x8xbf16>, vector<8x8xbf16>, vector<8x8xf32> -> vector<8x8xf32>
    %66 = vector.broadcast %3 : vector<1x8xf32> to vector<8x8xf32>
    %67 = arith.addf %65, %66 : vector<8x8xf32>
    %cst_28 = arith.constant dense<0xFF800000> : vector<8xf32>
    %68 = vector.multi_reduction <maximumf>, %67, %cst_28 [1] : vector<8x8xf32> to vector<8xf32>
    %69 = vector.shape_cast %68 : vector<8xf32> to vector<8x1xf32>
    %70 = vector.broadcast %69 : vector<8x1xf32> to vector<8x8xf32>
    %71 = arith.subf %67, %70 : vector<8x8xf32>
    %72 = math.exp %71 : vector<8x8xf32>
    %cst_29 = arith.constant dense<0.000000e+00> : vector<8xf32>
    %73 = vector.multi_reduction <add>, %72, %cst_29 [1] : vector<8x8xf32> to vector<8xf32>
    %74 = vector.shape_cast %73 : vector<8xf32> to vector<8x1xf32>
    %75 = tpu.reciprocal %74 {approx = true} : vector<8x1xf32> -> vector<8x1xf32>
    %76 = arith.truncf %72 : vector<8x8xf32> to vector<8x8xbf16>
    %77 = vector.extract_strided_slice %44 {offsets = [0, 8], sizes = [8, 8], strides = [1, 1]} : vector<8x32xbf16> to vector<8x8xbf16>
    %cst_30 = arith.constant dense<0.000000e+00> : vector<8x8xf32>
    %78 = tpu.matmul %76, %77, %cst_30 {dimension_numbers = #tpu.dot_dimension_numbers<[1], [0], [0], [1], [0, 0, 1, 1], [], []>} : vector<8x8xbf16>, vector<8x8xbf16>, vector<8x8xf32> -> vector<8x8xf32>
    %79 = vector.broadcast %75 : vector<8x1xf32> to vector<8x8xf32>
    %80 = arith.mulf %78, %79 : vector<8x8xf32>
    %81 = vector.extract_strided_slice %40 {offsets = [0, 16], sizes = [8, 8], strides = [1, 1]} : vector<8x32xbf16> to vector<8x8xbf16>
    %82 = vector.extract_strided_slice %42 {offsets = [0, 16], sizes = [8, 8], strides = [1, 1]} : vector<8x32xbf16> to vector<8x8xbf16>
    %cst_31 = arith.constant dense<0.000000e+00> : vector<8x8xf32>
    %83 = tpu.matmul %81, %82, %cst_31 {dimension_numbers = #tpu.dot_dimension_numbers<[1], [1], [0], [0], [0, 0, 1, 0], [], []>} : vector<8x8xbf16>, vector<8x8xbf16>, vector<8x8xf32> -> vector<8x8xf32>
    %84 = vector.broadcast %3 : vector<1x8xf32> to vector<8x8xf32>
    %85 = arith.addf %83, %84 : vector<8x8xf32>
    %cst_32 = arith.constant dense<0xFF800000> : vector<8xf32>
    %86 = vector.multi_reduction <maximumf>, %85, %cst_32 [1] : vector<8x8xf32> to vector<8xf32>
    %87 = vector.shape_cast %86 : vector<8xf32> to vector<8x1xf32>
    %88 = vector.broadcast %87 : vector<8x1xf32> to vector<8x8xf32>
    %89 = arith.subf %85, %88 : vector<8x8xf32>
    %90 = math.exp %89 : vector<8x8xf32>
    %cst_33 = arith.constant dense<0.000000e+00> : vector<8xf32>
    %91 = vector.multi_reduction <add>, %90, %cst_33 [1] : vector<8x8xf32> to vector<8xf32>
    %92 = vector.shape_cast %91 : vector<8xf32> to vector<8x1xf32>
    %93 = tpu.reciprocal %92 {approx = true} : vector<8x1xf32> -> vector<8x1xf32>
    %94 = arith.truncf %90 : vector<8x8xf32> to vector<8x8xbf16>
    %95 = vector.extract_strided_slice %44 {offsets = [0, 16], sizes = [8, 8], strides = [1, 1]} : vector<8x32xbf16> to vector<8x8xbf16>
    %cst_34 = arith.constant dense<0.000000e+00> : vector<8x8xf32>
    %96 = tpu.matmul %94, %95, %cst_34 {dimension_numbers = #tpu.dot_dimension_numbers<[1], [0], [0], [1], [0, 0, 1, 1], [], []>} : vector<8x8xbf16>, vector<8x8xbf16>, vector<8x8xf32> -> vector<8x8xf32>
    %97 = vector.broadcast %93 : vector<8x1xf32> to vector<8x8xf32>
    %98 = arith.mulf %96, %97 : vector<8x8xf32>
    %99 = vector.extract_strided_slice %40 {offsets = [0, 24], sizes = [8, 8], strides = [1, 1]} : vector<8x32xbf16> to vector<8x8xbf16>
    %100 = vector.extract_strided_slice %42 {offsets = [0, 24], sizes = [8, 8], strides = [1, 1]} : vector<8x32xbf16> to vector<8x8xbf16>
    %cst_35 = arith.constant dense<0.000000e+00> : vector<8x8xf32>
    %101 = tpu.matmul %99, %100, %cst_35 {dimension_numbers = #tpu.dot_dimension_numbers<[1], [1], [0], [0], [0, 0, 1, 0], [], []>} : vector<8x8xbf16>, vector<8x8xbf16>, vector<8x8xf32> -> vector<8x8xf32>
    %102 = vector.broadcast %3 : vector<1x8xf32> to vector<8x8xf32>
    %103 = arith.addf %101, %102 : vector<8x8xf32>
    %cst_36 = arith.constant dense<0xFF800000> : vector<8xf32>
    %104 = vector.multi_reduction <maximumf>, %103, %cst_36 [1] : vector<8x8xf32> to vector<8xf32>
    %105 = vector.shape_cast %104 : vector<8xf32> to vector<8x1xf32>
    %106 = vector.broadcast %105 : vector<8x1xf32> to vector<8x8xf32>
    %107 = arith.subf %103, %106 : vector<8x8xf32>
    %108 = math.exp %107 : vector<8x8xf32>
    %cst_37 = arith.constant dense<0.000000e+00> : vector<8xf32>
    %109 = vector.multi_reduction <add>, %108, %cst_37 [1] : vector<8x8xf32> to vector<8xf32>
    %110 = vector.shape_cast %109 : vector<8xf32> to vector<8x1xf32>
    %111 = tpu.reciprocal %110 {approx = true} : vector<8x1xf32> -> vector<8x1xf32>
    %112 = arith.truncf %108 : vector<8x8xf32> to vector<8x8xbf16>
    %113 = vector.extract_strided_slice %44 {offsets = [0, 24], sizes = [8, 8], strides = [1, 1]} : vector<8x32xbf16> to vector<8x8xbf16>
    %cst_38 = arith.constant dense<0.000000e+00> : vector<8x8xf32>
    %114 = tpu.matmul %112, %113, %cst_38 {dimension_numbers = #tpu.dot_dimension_numbers<[1], [0], [0], [1], [0, 0, 1, 1], [], []>} : vector<8x8xbf16>, vector<8x8xbf16>, vector<8x8xf32> -> vector<8x8xf32>
    %115 = vector.broadcast %111 : vector<8x1xf32> to vector<8x8xf32>
    %116 = arith.mulf %114, %115 : vector<8x8xf32>
    %117 = tpu.concatenate %62, %80, %98, %116 in 1 : vector<8x8xf32>, vector<8x8xf32>, vector<8x8xf32>, vector<8x8xf32> -> vector<8x32xf32>
    %118 = arith.truncf %117 : vector<8x32xf32> to vector<8x32xbf16>
    %c0_39 = arith.constant 0 : index
    %c0_40 = arith.constant 0 : index
    %119 = vector.load %arg8[%c0_39, %c0_40] : memref<32x32xbf16, #tpu.memory_space<vmem>>, vector<32x32xbf16>
    %cst_41 = arith.constant dense<0.000000e+00> : vector<8x32xf32>
    %120 = tpu.matmul %118, %119, %cst_41 {dimension_numbers = #tpu.dot_dimension_numbers<[1], [0], [0], [1], [0, 0, 1, 1], [], []>} : vector<8x32xbf16>, vector<32x32xbf16>, vector<8x32xf32> -> vector<8x32xf32>
    %c0_42 = arith.constant 0 : index
    %c0_43 = arith.constant 0 : index
    %121 = vector.load %arg9[%c0_42, %c0_43] : memref<1x32xf32, #tpu.memory_space<vmem>>, vector<1x32xf32>
    %122 = vector.broadcast %121 : vector<1x32xf32> to vector<8x32xf32>
    %123 = arith.addf %120, %122 : vector<8x32xf32>
    %124 = arith.addf %1, %123 : vector<8x32xf32>
    %c0_44 = arith.constant 0 : index
    %c0_45 = arith.constant 0 : index
    %125 = vector.load %arg16[%c0_44, %c0_45] : memref<1x32xf32, #tpu.memory_space<vmem>>, vector<1x32xf32>
    %c0_46 = arith.constant 0 : index
    %c0_47 = arith.constant 0 : index
    %126 = vector.load %arg17[%c0_46, %c0_47] : memref<1x32xf32, #tpu.memory_space<vmem>>, vector<1x32xf32>
    %cst_48 = arith.constant dense<0.000000e+00> : vector<8xf32>
    %127 = vector.multi_reduction <add>, %124, %cst_48 [1] : vector<8x32xf32> to vector<8xf32>
    %128 = vector.shape_cast %127 : vector<8xf32> to vector<8x1xf32>
    %cst_49 = arith.constant 3.200000e+01 : f32
    %129 = vector.broadcast %cst_49 : f32 to vector<8x1xf32>
    %130 = arith.divf %128, %129 : vector<8x1xf32>
    %131 = vector.broadcast %130 : vector<8x1xf32> to vector<8x32xf32>
    %132 = arith.subf %124, %131 : vector<8x32xf32>
    %133 = arith.mulf %132, %132 : vector<8x32xf32>
    %cst_50 = arith.constant dense<0.000000e+00> : vector<8xf32>
    %134 = vector.multi_reduction <add>, %133, %cst_50 [1] : vector<8x32xf32> to vector<8xf32>
    %135 = vector.shape_cast %134 : vector<8xf32> to vector<8x1xf32>
    %cst_51 = arith.constant 3.200000e+01 : f32
    %136 = vector.broadcast %cst_51 : f32 to vector<8x1xf32>
    %137 = arith.divf %135, %136 : vector<8x1xf32>
    %138 = math.sqrt %137 : vector<8x1xf32>
    %139 = vector.broadcast %130 : vector<8x1xf32> to vector<8x32xf32>
    %140 = arith.subf %124, %139 : vector<8x32xf32>
    %141 = vector.broadcast %125 : vector<1x32xf32> to vector<8x32xf32>
    %142 = arith.mulf %141, %140 : vector<8x32xf32>
    %cst_52 = arith.constant 9.99999997E-7 : f32
    %143 = vector.broadcast %cst_52 : f32 to vector<8x1xf32>
    %144 = arith.addf %138, %143 : vector<8x1xf32>
    %145 = vector.broadcast %144 : vector<8x1xf32> to vector<8x32xf32>
    %146 = arith.divf %142, %145 : vector<8x32xf32>
    %147 = vector.broadcast %126 : vector<1x32xf32> to vector<8x32xf32>
    %148 = arith.addf %146, %147 : vector<8x32xf32>
    %149 = arith.truncf %148 : vector<8x32xf32> to vector<8x32xbf16>
    %c0_53 = arith.constant 0 : index
    %c0_54 = arith.constant 0 : index
    %150 = vector.load %arg12[%c0_53, %c0_54] : memref<32x128xbf16, #tpu.memory_space<vmem>>, vector<32x128xbf16>
    %cst_55 = arith.constant dense<0.000000e+00> : vector<8x128xf32>
    %151 = tpu.matmul %149, %150, %cst_55 {dimension_numbers = #tpu.dot_dimension_numbers<[1], [0], [0], [1], [0, 0, 1, 1], [], []>} : vector<8x32xbf16>, vector<32x128xbf16>, vector<8x128xf32> -> vector<8x128xf32>
    %c0_56 = arith.constant 0 : index
    %c0_57 = arith.constant 0 : index
    %152 = vector.load %arg13[%c0_56, %c0_57] : memref<1x128xf32, #tpu.memory_space<vmem>>, vector<1x128xf32>
    %153 = vector.broadcast %152 : vector<1x128xf32> to vector<8x128xf32>
    %154 = arith.addf %151, %153 : vector<8x128xf32>
    %155 = arith.mulf %154, %154 : vector<8x128xf32>
    %156 = arith.mulf %155, %154 : vector<8x128xf32>
    %cst_58 = arith.constant 5.000000e-01 : f32
    %157 = vector.broadcast %cst_58 : f32 to vector<8x128xf32>
    %158 = arith.mulf %157, %154 : vector<8x128xf32>
    %cst_59 = arith.constant 4.471500e-02 : f32
    %159 = vector.broadcast %cst_59 : f32 to vector<8x128xf32>
    %160 = arith.mulf %159, %156 : vector<8x128xf32>
    %161 = arith.addf %154, %160 : vector<8x128xf32>
    %cst_60 = arith.constant 1.77281058 : f32
    %162 = vector.broadcast %cst_60 : f32 to vector<8x128xf32>
    %163 = arith.mulf %162, %161 : vector<8x128xf32>
    %164 = math.tanh %163 : vector<8x128xf32>
    %cst_61 = arith.constant 1.000000e+00 : f32
    %165 = vector.broadcast %cst_61 : f32 to vector<8x128xf32>
    %166 = arith.addf %165, %164 : vector<8x128xf32>
    %167 = arith.mulf %158, %166 : vector<8x128xf32>
    %168 = arith.truncf %167 : vector<8x128xf32> to vector<8x128xbf16>
    %c0_62 = arith.constant 0 : index
    %c0_63 = arith.constant 0 : index
    %169 = vector.load %arg14[%c0_62, %c0_63] : memref<128x32xbf16, #tpu.memory_space<vmem>>, vector<128x32xbf16>
    %cst_64 = arith.constant dense<0.000000e+00> : vector<8x32xf32>
    %170 = tpu.matmul %168, %169, %cst_64 {dimension_numbers = #tpu.dot_dimension_numbers<[1], [0], [0], [1], [0, 0, 1, 1], [], []>} : vector<8x128xbf16>, vector<128x32xbf16>, vector<8x32xf32> -> vector<8x32xf32>
    %c0_65 = arith.constant 0 : index
    %c0_66 = arith.constant 0 : index
    %171 = vector.load %arg15[%c0_65, %c0_66] : memref<1x32xf32, #tpu.memory_space<vmem>>, vector<1x32xf32>
    %172 = vector.broadcast %171 : vector<1x32xf32> to vector<8x32xf32>
    %173 = arith.addf %170, %172 : vector<8x32xf32>
    %174 = arith.addf %124, %173 : vector<8x32xf32>
    %c0_67 = arith.constant 0 : index
    %c0_68 = arith.constant 0 : index
    %c0_69 = arith.constant 0 : index
    %175 = vector.load %arg18[%c0_67, %c0_68, %c0_69] : memref<1x8x32xf32, #tpu.memory_space<vmem>>, vector<1x8x32xf32>
    %176 = vector.shape_cast %175 : vector<1x8x32xf32> to vector<8x32xf32>
    %177 = vector.shape_cast %174 : vector<8x32xf32> to vector<1x8x32xf32>
    tpu.vector_store %arg18[%c0_67, %c0_68, %c0_69], %177 {strides = array<i32>} : memref<1x8x32xf32, #tpu.memory_space<vmem>>, vector<1x8x32xf32>,
    return
  }
  func.func @transform_0(%arg0: i32, %arg1: i32) -> (i32, i32, i32) {
    %c0_i32 = arith.constant 0 : i32
    %c0_i32_0 = arith.constant 0 : i32
    %c0_i32_1 = arith.constant 0 : i32
    return %arg0, %c0_i32, %c0_i32_0 : i32, i32, i32
  }
  func.func @transform_1(%arg0: i32, %arg1: i32) -> (i32, i32, i32) {
    %c0_i32 = arith.constant 0 : i32
    %c0_i32_0 = arith.constant 0 : i32
    %c0_i32_1 = arith.constant 0 : i32
    return %arg0, %c0_i32, %c0_i32_0 : i32, i32, i32
  }
  func.func @transform_2(%arg0: i32, %arg1: i32) -> (i32, i32) {
    %c0_i32 = arith.constant 0 : i32
    %c0_i32_0 = arith.constant 0 : i32
    %c0_i32_1 = arith.constant 0 : i32
    return %c0_i32, %c0_i32_0 : i32, i32
  }
  func.func @transform_3(%arg0: i32, %arg1: i32) -> (i32, i32) {
    %c0_i32 = arith.constant 0 : i32
    %c0_i32_0 = arith.constant 0 : i32
    %c0_i32_1 = arith.constant 0 : i32
    return %c0_i32, %c0_i32_0 : i32, i32
  }
  func.func @transform_4(%arg0: i32, %arg1: i32) -> (i32, i32) {
    %c0_i32 = arith.constant 0 : i32
    %c0_i32_0 = arith.constant 0 : i32
    %c0_i32_1 = arith.constant 0 : i32
    return %c0_i32, %c0_i32_0 : i32, i32
  }
  func.func @transform_5(%arg0: i32, %arg1: i32) -> (i32, i32) {
    %c0_i32 = arith.constant 0 : i32
    %c0_i32_0 = arith.constant 0 : i32
    %c0_i32_1 = arith.constant 0 : i32
    return %c0_i32, %c0_i32_0 : i32, i32
  }
  func.func @transform_6(%arg0: i32, %arg1: i32) -> (i32, i32) {
    %c0_i32 = arith.constant 0 : i32
    %c0_i32_0 = arith.constant 0 : i32
    %c0_i32_1 = arith.constant 0 : i32
    return %c0_i32, %c0_i32_0 : i32, i32
  }
  func.func @transform_7(%arg0: i32, %arg1: i32) -> (i32, i32) {
    %c0_i32 = arith.constant 0 : i32
    %c0_i32_0 = arith.constant 0 : i32
    %c0_i32_1 = arith.constant 0 : i32
    return %c0_i32, %c0_i32_0 : i32, i32
  }
  func.func @transform_8(%arg0: i32, %arg1: i32) -> (i32, i32) {
    %c0_i32 = arith.constant 0 : i32
    %c0_i32_0 = arith.constant 0 : i32
    %c0_i32_1 = arith.constant 0 : i32
    return %c0_i32, %c0_i32_0 : i32, i32
  }
  func.func @transform_9(%arg0: i32, %arg1: i32) -> (i32, i32) {
    %c0_i32 = arith.constant 0 : i32
    %c0_i32_0 = arith.constant 0 : i32
    %c0_i32_1 = arith.constant 0 : i32
    return %c0_i32, %c0_i32_0 : i32, i32
  }
  func.func @transform_10(%arg0: i32, %arg1: i32) -> (i32, i32) {
    %c0_i32 = arith.constant 0 : i32
    %c0_i32_0 = arith.constant 0 : i32
    %c0_i32_1 = arith.constant 0 : i32
    return %c0_i32, %c0_i32_0 : i32, i32
  }
  func.func @transform_11(%arg0: i32, %arg1: i32) -> (i32, i32) {
    %c0_i32 = arith.constant 0 : i32
    %c0_i32_0 = arith.constant 0 : i32
    %c0_i32_1 = arith.constant 0 : i32
    return %c0_i32, %c0_i32_0 : i32, i32
  }
  func.func @transform_12(%arg0: i32, %arg1: i32) -> (i32, i32) {
    %c0_i32 = arith.constant 0 : i32
    %c0_i32_0 = arith.constant 0 : i32
    %c0_i32_1 = arith.constant 0 : i32
    return %c0_i32, %c0_i32_0 : i32, i32
  }
  func.func @transform_13(%arg0: i32, %arg1: i32) -> (i32, i32) {
    %c0_i32 = arith.constant 0 : i32
    %c0_i32_0 = arith.constant 0 : i32
    %c0_i32_1 = arith.constant 0 : i32
    return %c0_i32, %c0_i32_0 : i32, i32
  }
  func.func @transform_14(%arg0: i32, %arg1: i32) -> (i32, i32) {
    %c0_i32 = arith.constant 0 : i32
    %c0_i32_0 = arith.constant 0 : i32
    %c0_i32_1 = arith.constant 0 : i32
    return %c0_i32, %c0_i32_0 : i32, i32
  }
  func.func @transform_15(%arg0: i32, %arg1: i32) -> (i32, i32) {
    %c0_i32 = arith.constant 0 : i32
    %c0_i32_0 = arith.constant 0 : i32
    %c0_i32_1 = arith.constant 0 : i32
    return %c0_i32, %c0_i32_0 : i32, i32
  }
  func.func @transform_16(%arg0: i32, %arg1: i32) -> (i32, i32, i32) {
    %c0_i32 = arith.constant 0 : i32
    %c0_i32_0 = arith.constant 0 : i32
    return %arg0, %arg1, %c0_i32 : i32, i32, i32
  }
}

module attributes {stable_mosaic.version = 11 : i64} {
  func.func @encoder_layer_kernel(%arg0: i32, %arg1: i32, %arg2: memref<1x8x32xf32, #tpu.memory_space<vmem>>, %arg3: memref<1x1x8xf32, #tpu.memory_space<vmem>>, %arg4: memref<32x32xbf16, #tpu.memory_space<vmem>>, %arg5: memref<1x32xf32, #tpu.memory_space<vmem>>, %arg6: memref<32x64xbf16, #tpu.memory_space<vmem>>, %arg7: memref<1x64xf32, #tpu.memory_space<vmem>>, %arg8: memref<32x32xbf16, #tpu.memory_space<vmem>>, %arg9: memref<1x32xf32, #tpu.memory_space<vmem>>, %arg10: memref<1x32xf32, #tpu.memory_space<vmem>>, %arg11: memref<1x32xf32, #tpu.memory_space<vmem>>, %arg12: memref<32x128xbf16, #tpu.memory_space<vmem>>, %arg13: memref<1x128xf32, #tpu.memory_space<vmem>>, %arg14: memref<128x32xbf16, #tpu.memory_space<vmem>>, %arg15: memref<1x32xf32, #tpu.memory_space<vmem>>, %arg16: memref<1x32xf32, #tpu.memory_space<vmem>>, %arg17: memref<1x32xf32, #tpu.memory_space<vmem>>, %arg18: memref<1x8x32xf32, #tpu.memory_space<vmem>>) attributes {dimension_semantics = [#tpu.dimension_semantics<parallel>, #tpu.dimension_semantics<parallel>], iteration_bounds = array<i64: 2, 1>, scalar_prefetch = 0 : i64, scratch_operands = 0 : i64, tpu.core_type = #tpu.core_type<tc>, window_params = [{transform_indices = @transform_0, window_bounds = array<i64: 1, 8, 32>}, {transform_indices = @transform_1, window_bounds = array<i64: 1, 1, 8>}, {pipeline_mode = #tpu.pipeline_mode<synchronous>, transform_indices = @transform_2, window_bounds = array<i64: 32, 32>}, {pipeline_mode = #tpu.pipeline_mode<synchronous>, transform_indices = @transform_3, window_bounds = array<i64: 1, 32>}, {pipeline_mode = #tpu.pipeline_mode<synchronous>, transform_indices = @transform_4, window_bounds = array<i64: 32, 64>}, {pipeline_mode = #tpu.pipeline_mode<synchronous>, transform_indices = @transform_5, window_bounds = array<i64: 1, 64>}, {pipeline_mode = #tpu.pipeline_mode<synchronous>, transform_indices = @transform_6, window_bounds = array<i64: 32, 32>}, {pipeline_mode = #tpu.pipeline_mode<synchronous>, transform_indices = @transform_7, window_bounds = array<i64: 1, 32>}, {pipeline_mode = #tpu.pipeline_mode<synchronous>, transform_indices = @transform_8, window_bounds = array<i64: 1, 32>}, {pipeline_mode = #tpu.pipeline_mode<synchronous>, transform_indices = @transform_9, window_bounds = array<i64: 1, 32>}, {pipeline_mode = #tpu.pipeline_mode<synchronous>, transform_indices = @transform_10, window_bounds = array<i64: 32, 128>}, {pipeline_mode = #tpu.pipeline_mode<synchronous>, transform_indices = @transform_11, window_bounds = array<i64: 1, 128>}, {pipeline_mode = #tpu.pipeline_mode<synchronous>, transform_indices = @transform_12, window_bounds = array<i64: 128, 32>}, {pipeline_mode = #tpu.pipeline_mode<synchronous>, transform_indices = @transform_13, window_bounds = array<i64: 1, 32>}, {pipeline_mode = #tpu.pipeline_mode<synchronous>, transform_indices = @transform_14, window_bounds = array<i64: 1, 32>}, {pipeline_mode = #tpu.pipeline_mode<synchronous>, transform_indices = @transform_15, window_bounds = array<i64: 1, 32>}, {transform_indices = @transform_16, window_bounds = array<i64: 1, 8, 32>}]} {
    %c0 = arith.constant 0 : index
    %c0_0 = arith.constant 0 : index
    %c0_1 = arith.constant 0 : index
    %0 = vector.load %arg2[%c0, %c0_0, %c0_1] : memref<1x8x32xf32, #tpu.memory_space<vmem>>, vector<1x8x32xf32>
    %1 = vector.shape_cast %0 : vector<1x8x32xf32> to vector<8x32xf32>
    %c0_2 = arith.constant 0 : index
    %c0_3 = arith.constant 0 : index
    %c0_4 = arith.constant 0 : index
    %2 = vector.load %arg3[%c0_2, %c0_3, %c0_4] : memref<1x1x8xf32, #tpu.memory_space<vmem>>, vector<1x1x8xf32>
    %3 = vector.shape_cast %2 : vector<1x1x8xf32> to vector<1x8xf32>
    %c0_5 = arith.constant 0 : index
    %c0_6 = arith.constant 0 : index
    %4 = vector.load %arg10[%c0_5, %c0_6] : memref<1x32xf32, #tpu.memory_space<vmem>>, vector<1x32xf32>
    %c0_7 = arith.constant 0 : index
    %c0_8 = arith.constant 0 : index
    %5 = vector.load %arg11[%c0_7, %c0_8] : memref<1x32xf32, #tpu.memory_space<vmem>>, vector<1x32xf32>
    %cst = arith.constant dense<0.000000e+00> : vector<8xf32>
    %6 = vector.multi_reduction <add>, %1, %cst [1] : vector<8x32xf32> to vector<8xf32>
    %7 = vector.shape_cast %6 : vector<8xf32> to vector<8x1xf32>
    %cst_9 = arith.constant 3.200000e+01 : f32
    %8 = vector.broadcast %cst_9 : f32 to vector<8x1xf32>
    %9 = arith.divf %7, %8 : vector<8x1xf32>
    %10 = vector.broadcast %9 : vector<8x1xf32> to vector<8x32xf32>
    %11 = arith.subf %1, %10 : vector<8x32xf32>
    %12 = arith.mulf %11, %11 : vector<8x32xf32>
    %cst_10 = arith.constant dense<0.000000e+00> : vector<8xf32>
    %13 = vector.multi_reduction <add>, %12, %cst_10 [1] : vector<8x32xf32> to vector<8xf32>
    %14 = vector.shape_cast %13 : vector<8xf32> to vector<8x1xf32>
    %cst_11 = arith.constant 3.200000e+01 : f32
    %15 = vector.broadcast %cst_11 : f32 to vector<8x1xf32>
    %16 = arith.divf %14, %15 : vector<8x1xf32>
    %17 = math.sqrt %16 : vector<8x1xf32>
    %18 = vector.broadcast %9 : vector<8x1xf32> to vector<8x32xf32>
    %19 = arith.subf %1, %18 : vector<8x32xf32>
    %20 = vector.broadcast %4 : vector<1x32xf32> to vector<8x32xf32>
    %21 = arith.mulf %20, %19 : vector<8x32xf32>
    %cst_12 = arith.constant 9.99999997E-7 : f32
    %22 = vector.broadcast %cst_12 : f32 to vector<8x1xf32>
    %23 = arith.addf %17, %22 : vector<8x1xf32>
    %24 = vector.broadcast %23 : vector<8x1xf32> to vector<8x32xf32>
    %25 = arith.divf %21, %24 : vector<8x32xf32>
    %26 = vector.broadcast %5 : vector<1x32xf32> to vector<8x32xf32>
    %27 = arith.addf %25, %26 : vector<8x32xf32>
    %28 = arith.truncf %27 : vector<8x32xf32> to vector<8x32xbf16>
    %c0_13 = arith.constant 0 : index
    %c0_14 = arith.constant 0 : index
    %29 = vector.load %arg4[%c0_13, %c0_14] : memref<32x32xbf16, #tpu.memory_space<vmem>>, vector<32x32xbf16>
    %cst_15 = arith.constant dense<0.000000e+00> : vector<8x32xf32>
    %30 = tpu.matmul %28, %29, %cst_15 {dimension_numbers = #tpu.dot_dimension_numbers<[1], [0], [0], [1], [0, 0, 1, 1], [], []>} : vector<8x32xbf16>, vector<32x32xbf16>, vector<8x32xf32> -> vector<8x32xf32>
    %c0_16 = arith.constant 0 : index
    %c0_17 = arith.constant 0 : index
    %31 = vector.load %arg5[%c0_16, %c0_17] : memref<1x32xf32, #tpu.memory_space<vmem>>, vector<1x32xf32>
    %32 = vector.broadcast %31 : vector<1x32xf32> to vector<8x32xf32>
    %33 = arith.addf %30, %32 : vector<8x32xf32>
    %34 = arith.truncf %27 : vector<8x32xf32> to vector<8x32xbf16>
    %c0_18 = arith.constant 0 : index
    %c0_19 = arith.constant 0 : index
    %35 = vector.load %arg6[%c0_18, %c0_19] : memref<32x64xbf16, #tpu.memory_space<vmem>>, vector<32x64xbf16>
    %cst_20 = arith.constant dense<0.000000e+00> : vector<8x64xf32>
    %36 = tpu.matmul %34, %35, %cst_20 {dimension_numbers = #tpu.dot_dimension_numbers<[1], [0], [0], [1], [0, 0, 1, 1], [], []>} : vector<8x32xbf16>, vector<32x64xbf16>, vector<8x64xf32> -> vector<8x64xf32>
    %c0_21 = arith.constant 0 : index
    %c0_22 = arith.constant 0 : index
    %37 = vector.load %arg7[%c0_21, %c0_22] : memref<1x64xf32, #tpu.memory_space<vmem>>, vector<1x64xf32>
    %38 = vector.broadcast %37 : vector<1x64xf32> to vector<8x64xf32>
    %39 = arith.addf %36, %38 : vector<8x64xf32>
    %40 = arith.truncf %33 : vector<8x32xf32> to vector<8x32xbf16>
    %41 = vector.extract_strided_slice %39 {offsets = [0, 0], sizes = [8, 32], strides = [1, 1]} : vector<8x64xf32> to vector<8x32xf32>
    %42 = arith.truncf %41 : vector<8x32xf32> to vector<8x32xbf16>
    %43 = vector.extract_strided_slice %39 {offsets = [0, 32], sizes = [8, 32], strides = [1, 1]} : vector<8x64xf32> to vector<8x32xf32>
    %44 = arith.truncf %43 : vector<8x32xf32> to vector<8x32xbf16>
    %45 = vector.extract_strided_slice %40 {offsets = [0, 0], sizes = [8, 8], strides = [1, 1]} : vector<8x32xbf16> to vector<8x8xbf16>
    %46 = vector.extract_strided_slice %42 {offsets = [0, 0], sizes = [8, 8], strides = [1, 1]} : vector<8x32xbf16> to vector<8x8xbf16>
    %cst_23 = arith.constant dense<0.000000e+00> : vector<8x8xf32>
    %47 = tpu.matmul %45, %46, %cst_23 {dimension_numbers = #tpu.dot_dimension_numbers<[1], [1], [0], [0], [0, 0, 1, 0], [], []>} : vector<8x8xbf16>, vector<8x8xbf16>, vector<8x8xf32> -> vector<8x8xf32>
    %48 = vector.broadcast %3 : vector<1x8xf32> to vector<8x8xf32>
    %49 = arith.addf %47, %48 : vector<8x8xf32>
    %cst_24 = arith.constant dense<0xFF800000> : vector<8xf32>
    %50 = vector.multi_reduction <maximumf>, %49, %cst_24 [1] : vector<8x8xf32> to vector<8xf32>
    %51 = vector.shape_cast %50 : vector<8xf32> to vector<8x1xf32>
    %52 = vector.broadcast %51 : vector<8x1xf32> to vector<8x8xf32>
    %53 = arith.subf %49, %52 : vector<8x8xf32>
    %54 = math.exp %53 : vector<8x8xf32>
    %cst_25 = arith.constant dense<0.000000e+00> : vector<8xf32>
    %55 = vector.multi_reduction <add>, %54, %cst_25 [1] : vector<8x8xf32> to vector<8xf32>
    %56 = vector.shape_cast %55 : vector<8xf32> to vector<8x1xf32>
    %57 = tpu.reciprocal %56 {approx = true} : vector<8x1xf32> -> vector<8x1xf32>
    %58 = arith.truncf %54 : vector<8x8xf32> to vector<8x8xbf16>
    %59 = vector.extract_strided_slice %44 {offsets = [0, 0], sizes = [8, 8], strides = [1, 1]} : vector<8x32xbf16> to vector<8x8xbf16>
    %cst_26 = arith.constant dense<0.000000e+00> : vector<8x8xf32>
    %60 = tpu.matmul %58, %59, %cst_26 {dimension_numbers = #tpu.dot_dimension_numbers<[1], [0], [0], [1], [0, 0, 1, 1], [], []>} : vector<8x8xbf16>, vector<8x8xbf16>, vector<8x8xf32> -> vector<8x8xf32>
    %61 = vector.broadcast %57 : vector<8x1xf32> to vector<8x8xf32>
    %62 = arith.mulf %60, %61 : vector<8x8xf32>
    %63 = vector.extract_strided_slice %40 {offsets = [0, 8], sizes = [8, 8], strides = [1, 1]} : vector<8x32xbf16> to vector<8x8xbf16>
    %64 = vector.extract_strided_slice %42 {offsets = [0, 8], sizes = [8, 8], strides = [1, 1]} : vector<8x32xbf16> to vector<8x8xbf16>
    %cst_27 = arith.constant dense<0.000000e+00> : vector<8x8xf32>
    %65 = tpu.matmul %63, %64, %cst_27 {dimension_numbers = #tpu.dot_dimension_numbers<[1], [1], [0], [0], [0, 0, 1, 0], [], []>} : vector<8x8xbf16>, vector<8x8xbf16>, vector<8x8xf32> -> vector<8x8xf32>
    %66 = vector.broadcast %3 : vector<1x8xf32> to vector<8x8xf32>
    %67 = arith.addf %65, %66 : vector<8x8xf32>
    %cst_28 = arith.constant dense<0xFF800000> : vector<8xf32>
    %68 = vector.multi_reduction <maximumf>, %67, %cst_28 [1] : vector<8x8xf32> to vector<8xf32>
    %69 = vector.shape_cast %68 : vector<8xf32> to vector<8x1xf32>
    %70 = vector.broadcast %69 : vector<8x1xf32> to vector<8x8xf32>
    %71 = arith.subf %67, %70 : vector<8x8xf32>
    %72 = math.exp %71 : vector<8x8xf32>
    %cst_29 = arith.constant dense<0.000000e+00> : vector<8xf32>
    %73 = vector.multi_reduction <add>, %72, %cst_29 [1] : vector<8x8xf32> to vector<8xf32>
    %74 = vector.shape_cast %73 : vector<8xf32> to vector<8x1xf32>
    %75 = tpu.reciprocal %74 {approx = true} : vector<8x1xf32> -> vector<8x1xf32>
    %76 = arith.truncf %72 : vector<8x8xf32> to vector<8x8xbf16>
    %77 = vector.extract_strided_slice %44 {offsets = [0, 8], sizes = [8, 8], strides = [1, 1]} : vector<8x32xbf16> to vector<8x8xbf16>
    %cst_30 = arith.constant dense<0.000000e+00> : vector<8x8xf32>
    %78 = tpu.matmul %76, %77, %cst_30 {dimension_numbers = #tpu.dot_dimension_numbers<[1], [0], [0], [1], [0, 0, 1, 1], [], []>} : vector<8x8xbf16>, vector<8x8xbf16>, vector<8x8xf32> -> vector<8x8xf32>
    %79 = vector.broadcast %75 : vector<8x1xf32> to vector<8x8xf32>
    %80 = arith.mulf %78, %79 : vector<8x8xf32>
    %81 = vector.extract_strided_slice %40 {offsets = [0, 16], sizes = [8, 8], strides = [1, 1]} : vector<8x32xbf16> to vector<8x8xbf16>
    %82 = vector.extract_strided_slice %42 {offsets = [0, 16], sizes = [8, 8], strides = [1, 1]} : vector<8x32xbf16> to vector<8x8xbf16>
    %cst_31 = arith.constant dense<0.000000e+00> : vector<8x8xf32>
    %83 = tpu.matmul %81, %82, %cst_31 {dimension_numbers = #tpu.dot_dimension_numbers<[1], [1], [0], [0], [0, 0, 1, 0], [], []>} : vector<8x8xbf16>, vector<8x8xbf16>, vector<8x8xf32> -> vector<8x8xf32>
    %84 = vector.broadcast %3 : vector<1x8xf32> to vector<8x8xf32>
    %85 = arith.addf %83, %84 : vector<8x8xf32>
    %cst_32 = arith.constant dense<0xFF800000> : vector<8xf32>
    %86 = vector.multi_reduction <maximumf>, %85, %cst_32 [1] : vector<8x8xf32> to vector<8xf32>
    %87 = vector.shape_cast %86 : vector<8xf32> to vector<8x1xf32>
    %88 = vector.broadcast %87 : vector<8x1xf32> to vector<8x8xf32>
    %89 = arith.subf %85, %88 : vector<8x8xf32>
    %90 = math.exp %89 : vector<8x8xf32>
    %cst_33 = arith.constant dense<0.000000e+00> : vector<8xf32>
    %91 = vector.multi_reduction <add>, %90, %cst_33 [1] : vector<8x8xf32> to vector<8xf32>
    %92 = vector.shape_cast %91 : vector<8xf32> to vector<8x1xf32>
    %93 = tpu.reciprocal %92 {approx = true} : vector<8x1xf32> -> vector<8x1xf32>
    %94 = arith.truncf %90 : vector<8x8xf32> to vector<8x8xbf16>
    %95 = vector.extract_strided_slice %44 {offsets = [0, 16], sizes = [8, 8], strides = [1, 1]} : vector<8x32xbf16> to vector<8x8xbf16>
    %cst_34 = arith.constant dense<0.000000e+00> : vector<8x8xf32>
    %96 = tpu.matmul %94, %95, %cst_34 {dimension_numbers = #tpu.dot_dimension_numbers<[1], [0], [0], [1], [0, 0, 1, 1], [], []>} : vector<8x8xbf16>, vector<8x8xbf16>, vector<8x8xf32> -> vector<8x8xf32>
    %97 = vector.broadcast %93 : vector<8x1xf32> to vector<8x8xf32>
    %98 = arith.mulf %96, %97 : vector<8x8xf32>
    %99 = vector.extract_strided_slice %40 {offsets = [0, 24], sizes = [8, 8], strides = [1, 1]} : vector<8x32xbf16> to vector<8x8xbf16>
    %100 = vector.extract_strided_slice %42 {offsets = [0, 24], sizes = [8, 8], strides = [1, 1]} : vector<8x32xbf16> to vector<8x8xbf16>
    %cst_35 = arith.constant dense<0.000000e+00> : vector<8x8xf32>
    %101 = tpu.matmul %99, %100, %cst_35 {dimension_numbers = #tpu.dot_dimension_numbers<[1], [1], [0], [0], [0, 0, 1, 0], [], []>} : vector<8x8xbf16>, vector<8x8xbf16>, vector<8x8xf32> -> vector<8x8xf32>
    %102 = vector.broadcast %3 : vector<1x8xf32> to vector<8x8xf32>
    %103 = arith.addf %101, %102 : vector<8x8xf32>
    %cst_36 = arith.constant dense<0xFF800000> : vector<8xf32>
    %104 = vector.multi_reduction <maximumf>, %103, %cst_36 [1] : vector<8x8xf32> to vector<8xf32>
    %105 = vector.shape_cast %104 : vector<8xf32> to vector<8x1xf32>
    %106 = vector.broadcast %105 : vector<8x1xf32> to vector<8x8xf32>
    %107 = arith.subf %103, %106 : vector<8x8xf32>
    %108 = math.exp %107 : vector<8x8xf32>
    %cst_37 = arith.constant dense<0.000000e+00> : vector<8xf32>
    %109 = vector.multi_reduction <add>, %108, %cst_37 [1] : vector<8x8xf32> to vector<8xf32>
    %110 = vector.shape_cast %109 : vector<8xf32> to vector<8x1xf32>
    %111 = tpu.reciprocal %110 {approx = true} : vector<8x1xf32> -> vector<8x1xf32>
    %112 = arith.truncf %108 : vector<8x8xf32> to vector<8x8xbf16>
    %113 = vector.extract_strided_slice %44 {offsets = [0, 24], sizes = [8, 8], strides = [1, 1]} : vector<8x32xbf16> to vector<8x8xbf16>
    %cst_38 = arith.constant dense<0.000000e+00> : vector<8x8xf32>
    %114 = tpu.matmul %112, %113, %cst_38 {dimension_numbers = #tpu.dot_dimension_numbers<[1], [0], [0], [1], [0, 0, 1, 1], [], []>} : vector<8x8xbf16>, vector<8x8xbf16>, vector<8x8xf32> -> vector<8x8xf32>
    %115 = vector.broadcast %111 : vector<8x1xf32> to vector<8x8xf32>
    %116 = arith.mulf %114, %115 : vector<8x8xf32>
    %117 = tpu.concatenate %62, %80, %98, %116 in 1 : vector<8x8xf32>, vector<8x8xf32>, vector<8x8xf32>, vector<8x8xf32> -> vector<8x32xf32>
    %118 = arith.truncf %117 : vector<8x32xf32> to vector<8x32xbf16>
    %c0_39 = arith.constant 0 : index
    %c0_40 = arith.constant 0 : index
    %119 = vector.load %arg8[%c0_39, %c0_40] : memref<32x32xbf16, #tpu.memory_space<vmem>>, vector<32x32xbf16>
    %cst_41 = arith.constant dense<0.000000e+00> : vector<8x32xf32>
    %120 = tpu.matmul %118, %119, %cst_41 {dimension_numbers = #tpu.dot_dimension_numbers<[1], [0], [0], [1], [0, 0, 1, 1], [], []>} : vector<8x32xbf16>, vector<32x32xbf16>, vector<8x32xf32> -> vector<8x32xf32>
    %c0_42 = arith.constant 0 : index
    %c0_43 = arith.constant 0 : index
    %121 = vector.load %arg9[%c0_42, %c0_43] : memref<1x32xf32, #tpu.memory_space<vmem>>, vector<1x32xf32>
    %122 = vector.broadcast %121 : vector<1x32xf32> to vector<8x32xf32>
    %123 = arith.addf %120, %122 : vector<8x32xf32>
    %124 = arith.addf %1, %123 : vector<8x32xf32>
    %c0_44 = arith.constant 0 : index
    %c0_45 = arith.constant 0 : index
    %125 = vector.load %arg16[%c0_44, %c0_45] : memref<1x32xf32, #tpu.memory_space<vmem>>, vector<1x32xf32>
    %c0_46 = arith.constant 0 : index
    %c0_47 = arith.constant 0 : index
    %126 = vector.load %arg17[%c0_46, %c0_47] : memref<1x32xf32, #tpu.memory_space<vmem>>, vector<1x32xf32>
    %cst_48 = arith.constant dense<0.000000e+00> : vector<8xf32>
    %127 = vector.multi_reduction <add>, %124, %cst_48 [1] : vector<8x32xf32> to vector<8xf32>
    %128 = vector.shape_cast %127 : vector<8xf32> to vector<8x1xf32>
    %cst_49 = arith.constant 3.200000e+01 : f32
    %129 = vector.broadcast %cst_49 : f32 to vector<8x1xf32>
    %130 = arith.divf %128, %129 : vector<8x1xf32>
    %131 = vector.broadcast %130 : vector<8x1xf32> to vector<8x32xf32>
    %132 = arith.subf %124, %131 : vector<8x32xf32>
    %133 = arith.mulf %132, %132 : vector<8x32xf32>
    %cst_50 = arith.constant dense<0.000000e+00> : vector<8xf32>
    %134 = vector.multi_reduction <add>, %133, %cst_50 [1] : vector<8x32xf32> to vector<8xf32>
    %135 = vector.shape_cast %134 : vector<8xf32> to vector<8x1xf32>
    %cst_51 = arith.constant 3.200000e+01 : f32
    %136 = vector.broadcast %cst_51 : f32 to vector<8x1xf32>
    %137 = arith.divf %135, %136 : vector<8x1xf32>
    %138 = math.sqrt %137 : vector<8x1xf32>
    %139 = vector.broadcast %130 : vector<8x1xf32> to vector<8x32xf32>
    %140 = arith.subf %124, %139 : vector<8x32xf32>
    %141 = vector.broadcast %125 : vector<1x32xf32> to vector<8x32xf32>
    %142 = arith.mulf %141, %140 : vector<8x32xf32>
    %cst_52 = arith.constant 9.99999997E-7 : f32
    %143 = vector.broadcast %cst_52 : f32 to vector<8x1xf32>
    %144 = arith.addf %138, %143 : vector<8x1xf32>
    %145 = vector.broadcast %144 : vector<8x1xf32> to vector<8x32xf32>
    %146 = arith.divf %142, %145 : vector<8x32xf32>
    %147 = vector.broadcast %126 : vector<1x32xf32> to vector<8x32xf32>
    %148 = arith.addf %146, %147 : vector<8x32xf32>
    %149 = arith.truncf %148 : vector<8x32xf32> to vector<8x32xbf16>
    %c0_53 = arith.constant 0 : index
    %c0_54 = arith.constant 0 : index
    %150 = vector.load %arg12[%c0_53, %c0_54] : memref<32x128xbf16, #tpu.memory_space<vmem>>, vector<32x128xbf16>
    %cst_55 = arith.constant dense<0.000000e+00> : vector<8x128xf32>
    %151 = tpu.matmul %149, %150, %cst_55 {dimension_numbers = #tpu.dot_dimension_numbers<[1], [0], [0], [1], [0, 0, 1, 1], [], []>} : vector<8x32xbf16>, vector<32x128xbf16>, vector<8x128xf32> -> vector<8x128xf32>
    %c0_56 = arith.constant 0 : index
    %c0_57 = arith.constant 0 : index
    %152 = vector.load %arg13[%c0_56, %c0_57] : memref<1x128xf32, #tpu.memory_space<vmem>>, vector<1x128xf32>
    %153 = vector.broadcast %152 : vector<1x128xf32> to vector<8x128xf32>
    %154 = arith.addf %151, %153 : vector<8x128xf32>
    %155 = arith.mulf %154, %154 : vector<8x128xf32>
    %156 = arith.mulf %155, %154 : vector<8x128xf32>
    %cst_58 = arith.constant 5.000000e-01 : f32
    %157 = vector.broadcast %cst_58 : f32 to vector<8x128xf32>
    %158 = arith.mulf %157, %154 : vector<8x128xf32>
    %cst_59 = arith.constant 4.471500e-02 : f32
    %159 = vector.broadcast %cst_59 : f32 to vector<8x128xf32>
    %160 = arith.mulf %159, %156 : vector<8x128xf32>
    %161 = arith.addf %154, %160 : vector<8x128xf32>
    %cst_60 = arith.constant 1.77281058 : f32
    %162 = vector.broadcast %cst_60 : f32 to vector<8x128xf32>
    %163 = arith.mulf %162, %161 : vector<8x128xf32>
    %164 = math.tanh %163 : vector<8x128xf32>
    %cst_61 = arith.constant 1.000000e+00 : f32
    %165 = vector.broadcast %cst_61 : f32 to vector<8x128xf32>
    %166 = arith.addf %165, %164 : vector<8x128xf32>
    %167 = arith.mulf %158, %166 : vector<8x128xf32>
    %168 = arith.truncf %167 : vector<8x128xf32> to vector<8x128xbf16>
    %c0_62 = arith.constant 0 : index
    %c0_63 = arith.constant 0 : index
    %169 = vector.load %arg14[%c0_62, %c0_63] : memref<128x32xbf16, #tpu.memory_space<vmem>>, vector<128x32xbf16>
    %cst_64 = arith.constant dense<0.000000e+00> : vector<8x32xf32>
    %170 = tpu.matmul %168, %169, %cst_64 {dimension_numbers = #tpu.dot_dimension_numbers<[1], [0], [0], [1], [0, 0, 1, 1], [], []>} : vector<8x128xbf16>, vector<128x32xbf16>, vector<8x32xf32> -> vector<8x32xf32>
    %c0_65 = arith.constant 0 : index
    %c0_66 = arith.constant 0 : index
    %171 = vector.load %arg15[%c0_65, %c0_66] : memref<1x32xf32, #tpu.memory_space<vmem>>, vector<1x32xf32>
    %172 = vector.broadcast %171 : vector<1x32xf32> to vector<8x32xf32>
    %173 = arith.addf %170, %172 : vector<8x32xf32>
    %174 = arith.addf %124, %173 : vector<8x32xf32>
    %c0_67 = arith.constant 0 : index
    %c0_68 = arith.constant 0 : index
    %c0_69 = arith.constant 0 : index
    %175 = vector.load %arg18[%c0_67, %c0_68, %c0_69] : memref<1x8x32xf32, #tpu.memory_space<vmem>>, vector<1x8x32xf32>
    %176 = vector.shape_cast %175 : vector<1x8x32xf32> to vector<8x32xf32>
    %177 = vector.shape_cast %174 : vector<8x32xf32> to vector<1x8x32xf32>
    tpu.vector_store %arg18[%c0_67, %c0_68, %c0_69], %177 {strides = array<i32>} : memref<1x8x32xf32, #tpu.memory_space<vmem>>, vector<1x8x32xf32>,
    return
  }
  func.func @transform_0(%arg0: i32, %arg1: i32) -> (i32, i32, i32) {
    %c0_i32 = arith.constant 0 : i32
    %c0_i32_0 = arith.constant 0 : i32
    %c0_i32_1 = arith.constant 0 : i32
    return %arg0, %c0_i32, %c0_i32_0 : i32, i32, i32
  }
  func.func @transform_1(%arg0: i32, %arg1: i32) -> (i32, i32, i32) {
    %c0_i32 = arith.constant 0 : i32
    %c0_i32_0 = arith.constant 0 : i32
    %c0_i32_1 = arith.constant 0 : i32
    return %arg0, %c0_i32, %c0_i32_0 : i32, i32, i32
  }
  func.func @transform_2(%arg0: i32, %arg1: i32) -> (i32, i32) {
    %c0_i32 = arith.constant 0 : i32
    %c0_i32_0 = arith.constant 0 : i32
    %c0_i32_1 = arith.constant 0 : i32
    return %c0_i32, %c0_i32_0 : i32, i32
  }
  func.func @transform_3(%arg0: i32, %arg1: i32) -> (i32, i32) {
    %c0_i32 = arith.constant 0 : i32
    %c0_i32_0 = arith.constant 0 : i32
    %c0_i32_1 = arith.constant 0 : i32
    return %c0_i32, %c0_i32_0 : i32, i32
  }
  func.func @transform_4(%arg0: i32, %arg1: i32) -> (i32, i32) {
    %c0_i32 = arith.constant 0 : i32
    %c0_i32_0 = arith.constant 0 : i32
    %c0_i32_1 = arith.constant 0 : i32
    return %c0_i32, %c0_i32_0 : i32, i32
  }
  func.func @transform_5(%arg0: i32, %arg1: i32) -> (i32, i32) {
    %c0_i32 = arith.constant 0 : i32
    %c0_i32_0 = arith.constant 0 : i32
    %c0_i32_1 = arith.constant 0 : i32
    return %c0_i32, %c0_i32_0 : i32, i32
  }
  func.func @transform_6(%arg0: i32, %arg1: i32) -> (i32, i32) {
    %c0_i32 = arith.constant 0 : i32
    %c0_i32_0 = arith.constant 0 : i32
    %c0_i32_1 = arith.constant 0 : i32
    return %c0_i32, %c0_i32_0 : i32, i32
  }
  func.func @transform_7(%arg0: i32, %arg1: i32) -> (i32, i32) {
    %c0_i32 = arith.constant 0 : i32
    %c0_i32_0 = arith.constant 0 : i32
    %c0_i32_1 = arith.constant 0 : i32
    return %c0_i32, %c0_i32_0 : i32, i32
  }
  func.func @transform_8(%arg0: i32, %arg1: i32) -> (i32, i32) {
    %c0_i32 = arith.constant 0 : i32
    %c0_i32_0 = arith.constant 0 : i32
    %c0_i32_1 = arith.constant 0 : i32
    return %c0_i32, %c0_i32_0 : i32, i32
  }
  func.func @transform_9(%arg0: i32, %arg1: i32) -> (i32, i32) {
    %c0_i32 = arith.constant 0 : i32
    %c0_i32_0 = arith.constant 0 : i32
    %c0_i32_1 = arith.constant 0 : i32
    return %c0_i32, %c0_i32_0 : i32, i32
  }
  func.func @transform_10(%arg0: i32, %arg1: i32) -> (i32, i32) {
    %c0_i32 = arith.constant 0 : i32
    %c0_i32_0 = arith.constant 0 : i32
    %c0_i32_1 = arith.constant 0 : i32
    return %c0_i32, %c0_i32_0 : i32, i32
  }
  func.func @transform_11(%arg0: i32, %arg1: i32) -> (i32, i32) {
    %c0_i32 = arith.constant 0 : i32
    %c0_i32_0 = arith.constant 0 : i32
    %c0_i32_1 = arith.constant 0 : i32
    return %c0_i32, %c0_i32_0 : i32, i32
  }
  func.func @transform_12(%arg0: i32, %arg1: i32) -> (i32, i32) {
    %c0_i32 = arith.constant 0 : i32
    %c0_i32_0 = arith.constant 0 : i32
    %c0_i32_1 = arith.constant 0 : i32
    return %c0_i32, %c0_i32_0 : i32, i32
  }
  func.func @transform_13(%arg0: i32, %arg1: i32) -> (i32, i32) {
    %c0_i32 = arith.constant 0 : i32
    %c0_i32_0 = arith.constant 0 : i32
    %c0_i32_1 = arith.constant 0 : i32
    return %c0_i32, %c0_i32_0 : i32, i32
  }
  func.func @transform_14(%arg0: i32, %arg1: i32) -> (i32, i32) {
    %c0_i32 = arith.constant 0 : i32
    %c0_i32_0 = arith.constant 0 : i32
    %c0_i32_1 = arith.constant 0 : i32
    return %c0_i32, %c0_i32_0 : i32, i32
  }
  func.func @transform_15(%arg0: i32, %arg1: i32) -> (i32, i32) {
    %c0_i32 = arith.constant 0 : i32
    %c0_i32_0 = arith.constant 0 : i32
    %c0_i32_1 = arith.constant 0 : i32
    return %c0_i32, %c0_i32_0 : i32, i32
  }
  func.func @transform_16(%arg0: i32, %arg1: i32) -> (i32, i32, i32) {
    %c0_i32 = arith.constant 0 : i32
    %c0_i32_0 = arith.constant 0 : i32
    return %arg0, %arg1, %c0_i32 : i32, i32, i32
  }
}

</mosaic_0001>

<llo_original>
// kernel: tpu_custom_call.1
$region0: #{tpu_custom_call.1}
  #allocation0 [shape = 'u32[]', space=smem, size = 0x4, offset = 0x4, fixed_abs, tag = 'smem constant byte address 0x4 - core index']
  #allocation1 [shape = 'u32[72,128]{1,0:T(1,128)}', space=vmem, size = 0x9000, scoped, tag = 'internal scratch']
  %s0 = inlined_call_operand.vmem [shape: f32[2,8,32], index: 0, kind: input, shape index: {}]
  %s1 = inlined_call_operand.hbm [shape: f32[2,1,8], index: 1, kind: input, shape index: {}]
  %s2 = inlined_call_operand.vmem [shape: bf16[32,32], index: 2, kind: input, shape index: {}]
  %s3 = inlined_call_operand.vmem [shape: f32[1,32], index: 3, kind: input, shape index: {}]
  %s4 = inlined_call_operand.vmem [shape: bf16[32,64], index: 4, kind: input, shape index: {}]
  %s5 = inlined_call_operand.vmem [shape: f32[1,64], index: 5, kind: input, shape index: {}]
  %s6 = inlined_call_operand.vmem [shape: bf16[32,32], index: 6, kind: input, shape index: {}]
  %s7 = inlined_call_operand.vmem [shape: f32[1,32], index: 7, kind: input, shape index: {}]
  %s8 = inlined_call_operand.vmem [shape: f32[1,32], index: 8, kind: input, shape index: {}]
  %s9 = inlined_call_operand.vmem [shape: f32[1,32], index: 9, kind: input, shape index: {}]
  %s10 = inlined_call_operand.vmem [shape: bf16[32,128], index: 10, kind: input, shape index: {}]
  %s11 = inlined_call_operand.vmem [shape: f32[1,128], index: 11, kind: input, shape index: {}]
  %s12 = inlined_call_operand.vmem [shape: bf16[128,32], index: 12, kind: input, shape index: {}]
  %s13 = inlined_call_operand.vmem [shape: f32[1,32], index: 13, kind: input, shape index: {}]
  %s14 = inlined_call_operand.vmem [shape: f32[1,32], index: 14, kind: input, shape index: {}]
  %s15 = inlined_call_operand.vmem [shape: f32[1,32], index: 15, kind: input, shape index: {}]
  %s16 = inlined_call_operand.hbm [shape: f32[2,8,32], index: 16, kind: output, shape index: {}]
  %s17 = sld [smem:[#allocation0]]
  $region101: #{tpu_custom_call.1} parent=0
    _
  %s19 = ssub.s32 1, %s17
  %s20 = scalar_select 0, %s19, %s17
  $region1: #{tpu_custom_call.1} parent=0
    #allocation2 [shape = 'u8[1024]{0}', space=vmem, size = 0x400, scoped, tag = 'input window, operand 1']
    #allocation3 [shape = 's32[2]{0}', space=sflag, size = 0x8, scoped, tag = 'scoped memory for tpu_custom_call.1']
    #allocation4 [shape = 's32[2]{0}', space=sflag, size = 0x8, scoped, tag = 'scoped memory for tpu_custom_call.1']
    #allocation5 [shape = 'u8[8192]{0}', space=vmem, size = 0x2000, scoped, tag = 'output window, operand 0']
    %21 = vsyncpa [#allocation3], 0
    %s22 = scalar_lea.sflag [#allocation3], 1
    %23 = vsyncpa %s22, 0
    %24 = vsyncpa [#allocation4], 0
    %s25 = scalar_lea.sflag [#allocation4], 1
    %26 = vsyncpa %s25, 0
    loop: start=0, step=1, limit=4
    $region2: #{tpu_custom_call.1} parent=1 // loop_pre_header
      _
    $region3: #{tpu_custom_call.1} parent=1 // loop_header
      %s28 = sphi 0, %s32
      %p29 = scmp.ge.s32.totalorder %s28, 4
      %s35 = sphi 0, %s47
      %s36 = sphi 0, %s43
      %s37 = sphi 0, %s35
      %s38 = sphi 0, %s36
      %s39 = sphi 0, %s37
      %s40 = sphi 0, %s38
      %s50 = sphi 0, %s52
      %s53 = sphi 0, %s50
      %s54 = sphi 0, %s53
      %s70 = sphi 0, %s54
      %s76 = sphi 0, %s78
      %s79 = sphi 0, %s76
      %s80 = sphi 0, %s79
      %s96 = sphi 0, %s80
      %s100 = sphi 0, %s100
      %s102 = sphi 0, %s100
      %s103 = sphi 0, %s102
      %s117 = sphi 0, %s103
      %s121 = sphi 0, %s121
      %s123 = sphi 0, %s121
      %s124 = sphi 0, %s123
      %s138 = sphi 0, %s124
      %s142 = sphi 0, %s142
      %s144 = sphi 0, %s142
      %s145 = sphi 0, %s144
      %s159 = sphi 0, %s145
      %s163 = sphi 0, %s163
      %s165 = sphi 0, %s163
      %s166 = sphi 0, %s165
      %s180 = sphi 0, %s166
      %s184 = sphi 0, %s184
      %s186 = sphi 0, %s184
      %s187 = sphi 0, %s186
      %s201 = sphi 0, %s187
      %s205 = sphi 0, %s205
      %s207 = sphi 0, %s205
      %s208 = sphi 0, %s207
      %s222 = sphi 0, %s208
      %s226 = sphi 0, %s226
      %s228 = sphi 0, %s226
      %s229 = sphi 0, %s228
      %s243 = sphi 0, %s229
      %s247 = sphi 0, %s247
      %s249 = sphi 0, %s247
      %s250 = sphi 0, %s249
      %s264 = sphi 0, %s250
      %s268 = sphi 0, %s268
      %s270 = sphi 0, %s268
      %s271 = sphi 0, %s270
      %s285 = sphi 0, %s271
      %s289 = sphi 0, %s289
      %s291 = sphi 0, %s289
      %s292 = sphi 0, %s291
      %s306 = sphi 0, %s292
      %s310 = sphi 0, %s310
      %s312 = sphi 0, %s310
      %s313 = sphi 0, %s312
      %s327 = sphi 0, %s313
      %s331 = sphi 0, %s331
      %s333 = sphi 0, %s331
      %s334 = sphi 0, %s333
      %s348 = sphi 0, %s334
      %s352 = sphi 0, %s352
      %s354 = sphi 0, %s352
      %s355 = sphi 0, %s354
      %s369 = sphi 0, %s355
      %s373 = sphi 0, %s373
      %s375 = sphi 0, %s373
      %s376 = sphi 0, %s375
      %s390 = sphi 0, %s376
      %s398 = sphi 0, %s400
      %s401 = sphi 0, %s398
      %s402 = sphi 0, %s401
      %s418 = sphi 0, %s402
    $region4: #{tpu_custom_call.1} parent=1 // loop_header_branch
      %31 = sbr.rel (%p29) target = $region8
    $region5: #{tpu_custom_call.1} parent=1 // loop_body
      %s33 = ssub.s32 %s28, 1
      %s34 = ssub.s32 %s28, 2
      %s41 = sadd.s32 1, %s36
      %p42 = scmp.ge.s32.totalorder %s41, 1
      %s43 = scalar_select %p42, 0, %s41
      %s44 = sadd.s32 1, %s35
      %s45 = scalar_select %p42, %s44, %s35
      %p46 = scmp.ge.s32.totalorder %s45, 2
      %s47 = scalar_select %p46, 0, %s45
      %s48 = ssub.s32 %s35, %s47
      %p49 = scmp.eq.s32.totalorder %s48, 0
      %s51 = sadd.s32 %s50, 1
      %s52 = scalar_select %p49, %s50, %s51
      %p55 = pneg %p49
      %p56 = scmp.eq.s32.totalorder %s28, 1
      %p57 = por %p55, %p56
      %p58 = scmp.ne.s32.totalorder %s50, %s53
      %p59 = scmp.eq.s32.totalorder %s28, 0
      %p60 = por %p58, %p59
      %p61 = scmp.ne.s32.totalorder %s50, %s53
      %p62 = scmp.eq.s32.totalorder %s33, 1
      %p63 = por %p61, %p62
      %p64 = scmp.ne.s32.totalorder %s53, %s54
      %p65 = scmp.eq.s32.totalorder %s33, 0
      %p66 = por %p64, %p65
      %p67 = scmp.ne.s32.totalorder %s53, %s54
      %p68 = scmp.eq.s32.totalorder %s34, 1
      %p69 = por %p67, %p68
      %p71 = scmp.ne.s32.totalorder %s54, %s70
      %p72 = scmp.eq.s32.totalorder %s34, 0
      %p73 = por %p71, %p72
      %s74 = ssub.s32 %s35, %s47
      %p75 = scmp.eq.s32.totalorder %s74, 0
      %s77 = sadd.s32 %s76, 1
      %s78 = scalar_select %p75, %s76, %s77
      %p81 = pneg %p75
      %p82 = scmp.eq.s32.totalorder %s28, 1
      %p83 = por %p81, %p82
      %p84 = scmp.ne.s32.totalorder %s76, %s79
      %p85 = scmp.eq.s32.totalorder %s28, 0
      %p86 = por %p84, %p85
      %p87 = scmp.ne.s32.totalorder %s76, %s79
      %p88 = scmp.eq.s32.totalorder %s33, 1
      %p89 = por %p87, %p88
      %p90 = scmp.ne.s32.totalorder %s79, %s80
      %p91 = scmp.eq.s32.totalorder %s33, 0
      %p92 = por %p90, %p91
      %p93 = scmp.ne.s32.totalorder %s79, %s80
      %p94 = scmp.eq.s32.totalorder %s34, 1
      %p95 = por %p93, %p94
      %p97 = scmp.ne.s32.totalorder %s80, %s96
      %p98 = scmp.eq.s32.totalorder %s34, 0
      %p99 = por %p97, %p98
      %s101 = sadd.s32 %s100, 1
      %p104 = scmp.eq.s32.totalorder %s28, 1
      %p105 = scmp.ne.s32.totalorder %s100, %s102
      %p106 = scmp.eq.s32.totalorder %s28, 0
      %p107 = por %p105, %p106
      %p108 = scmp.ne.s32.totalorder %s100, %s102
      %p109 = scmp.eq.s32.totalorder %s33, 1
      %p110 = por %p108, %p109
      %p111 = scmp.ne.s32.totalorder %s102, %s103
      %p112 = scmp.eq.s32.totalorder %s33, 0
      %p113 = por %p111, %p112
      %p114 = scmp.ne.s32.totalorder %s102, %s103
      %p115 = scmp.eq.s32.totalorder %s34, 1
      %p116 = por %p114, %p115
      %p118 = scmp.ne.s32.totalorder %s103, %s117
      %p119 = scmp.eq.s32.totalorder %s34, 0
      %p120 = por %p118, %p119
      %s122 = sadd.s32 %s121, 1
      %p125 = scmp.eq.s32.totalorder %s28, 1
      %p126 = scmp.ne.s32.totalorder %s121, %s123
      %p127 = scmp.eq.s32.totalorder %s28, 0
      %p128 = por %p126, %p127
      %p129 = scmp.ne.s32.totalorder %s121, %s123
      %p130 = scmp.eq.s32.totalorder %s33, 1
      %p131 = por %p129, %p130
      %p132 = scmp.ne.s32.totalorder %s123, %s124
      %p133 = scmp.eq.s32.totalorder %s33, 0
      %p134 = por %p132, %p133
      %p135 = scmp.ne.s32.totalorder %s123, %s124
      %p136 = scmp.eq.s32.totalorder %s34, 1
      %p137 = por %p135, %p136
      %p139 = scmp.ne.s32.totalorder %s124, %s138
      %p140 = scmp.eq.s32.totalorder %s34, 0
      %p141 = por %p139, %p140
      %s143 = sadd.s32 %s142, 1
      %p146 = scmp.eq.s32.totalorder %s28, 1
      %p147 = scmp.ne.s32.totalorder %s142, %s144
      %p148 = scmp.eq.s32.totalorder %s28, 0
      %p149 = por %p147, %p148
      %p150 = scmp.ne.s32.totalorder %s142, %s144
      %p151 = scmp.eq.s32.totalorder %s33, 1
      %p152 = por %p150, %p151
      %p153 = scmp.ne.s32.totalorder %s144, %s145
      %p154 = scmp.eq.s32.totalorder %s33, 0
      %p155 = por %p153, %p154
      %p156 = scmp.ne.s32.totalorder %s144, %s145
      %p157 = scmp.eq.s32.totalorder %s34, 1
      %p158 = por %p156, %p157
      %p160 = scmp.ne.s32.totalorder %s145, %s159
      %p161 = scmp.eq.s32.totalorder %s34, 0
      %p162 = por %p160, %p161
      %s164 = sadd.s32 %s163, 1
      %p167 = scmp.eq.s32.totalorder %s28, 1
      %p168 = scmp.ne.s32.totalorder %s163, %s165
      %p169 = scmp.eq.s32.totalorder %s28, 0
      %p170 = por %p168, %p169
      %p171 = scmp.ne.s32.totalorder %s163, %s165
      %p172 = scmp.eq.s32.totalorder %s33, 1
      %p173 = por %p171, %p172
      %p174 = scmp.ne.s32.totalorder %s165, %s166
      %p175 = scmp.eq.s32.totalorder %s33, 0
      %p176 = por %p174, %p175
      %p177 = scmp.ne.s32.totalorder %s165, %s166
      %p178 = scmp.eq.s32.totalorder %s34, 1
      %p179 = por %p177, %p178
      %p181 = scmp.ne.s32.totalorder %s166, %s180
      %p182 = scmp.eq.s32.totalorder %s34, 0
      %p183 = por %p181, %p182
      %s185 = sadd.s32 %s184, 1
      %p188 = scmp.eq.s32.totalorder %s28, 1
      %p189 = scmp.ne.s32.totalorder %s184, %s186
      %p190 = scmp.eq.s32.totalorder %s28, 0
      %p191 = por %p189, %p190
      %p192 = scmp.ne.s32.totalorder %s184, %s186
      %p193 = scmp.eq.s32.totalorder %s33, 1
      %p194 = por %p192, %p193
      %p195 = scmp.ne.s32.totalorder %s186, %s187
      %p196 = scmp.eq.s32.totalorder %s33, 0
      %p197 = por %p195, %p196
      %p198 = scmp.ne.s32.totalorder %s186, %s187
      %p199 = scmp.eq.s32.totalorder %s34, 1
      %p200 = por %p198, %p199
      %p202 = scmp.ne.s32.totalorder %s187, %s201
      %p203 = scmp.eq.s32.totalorder %s34, 0
      %p204 = por %p202, %p203
      %s206 = sadd.s32 %s205, 1
      %p209 = scmp.eq.s32.totalorder %s28, 1
      %p210 = scmp.ne.s32.totalorder %s205, %s207
      %p211 = scmp.eq.s32.totalorder %s28, 0
      %p212 = por %p210, %p211
      %p213 = scmp.ne.s32.totalorder %s205, %s207
      %p214 = scmp.eq.s32.totalorder %s33, 1
      %p215 = por %p213, %p214
      %p216 = scmp.ne.s32.totalorder %s207, %s208
      %p217 = scmp.eq.s32.totalorder %s33, 0
      %p218 = por %p216, %p217
      %p219 = scmp.ne.s32.totalorder %s207, %s208
      %p220 = scmp.eq.s32.totalorder %s34, 1
      %p221 = por %p219, %p220
      %p223 = scmp.ne.s32.totalorder %s208, %s222
      %p224 = scmp.eq.s32.totalorder %s34, 0
      %p225 = por %p223, %p224
      %s227 = sadd.s32 %s226, 1
      %p230 = scmp.eq.s32.totalorder %s28, 1
      %p231 = scmp.ne.s32.totalorder %s226, %s228
      %p232 = scmp.eq.s32.totalorder %s28, 0
      %p233 = por %p231, %p232
      %p234 = scmp.ne.s32.totalorder %s226, %s228
      %p235 = scmp.eq.s32.totalorder %s33, 1
      %p236 = por %p234, %p235
      %p237 = scmp.ne.s32.totalorder %s228, %s229
      %p238 = scmp.eq.s32.totalorder %s33, 0
      %p239 = por %p237, %p238
      %p240 = scmp.ne.s32.totalorder %s228, %s229
      %p241 = scmp.eq.s32.totalorder %s34, 1
      %p242 = por %p240, %p241
      %p244 = scmp.ne.s32.totalorder %s229, %s243
      %p245 = scmp.eq.s32.totalorder %s34, 0
      %p246 = por %p244, %p245
      %s248 = sadd.s32 %s247, 1
      %p251 = scmp.eq.s32.totalorder %s28, 1
      %p252 = scmp.ne.s32.totalorder %s247, %s249
      %p253 = scmp.eq.s32.totalorder %s28, 0
      %p254 = por %p252, %p253
      %p255 = scmp.ne.s32.totalorder %s247, %s249
      %p256 = scmp.eq.s32.totalorder %s33, 1
      %p257 = por %p255, %p256
      %p258 = scmp.ne.s32.totalorder %s249, %s250
      %p259 = scmp.eq.s32.totalorder %s33, 0
      %p260 = por %p258, %p259
      %p261 = scmp.ne.s32.totalorder %s249, %s250
      %p262 = scmp.eq.s32.totalorder %s34, 1
      %p263 = por %p261, %p262
      %p265 = scmp.ne.s32.totalorder %s250, %s264
      %p266 = scmp.eq.s32.totalorder %s34, 0
      %p267 = por %p265, %p266
      %s269 = sadd.s32 %s268, 1
      %p272 = scmp.eq.s32.totalorder %s28, 1
      %p273 = scmp.ne.s32.totalorder %s268, %s270
      %p274 = scmp.eq.s32.totalorder %s28, 0
      %p275 = por %p273, %p274
      %p276 = scmp.ne.s32.totalorder %s268, %s270
      %p277 = scmp.eq.s32.totalorder %s33, 1
      %p278 = por %p276, %p277
      %p279 = scmp.ne.s32.totalorder %s270, %s271
      %p280 = scmp.eq.s32.totalorder %s33, 0
      %p281 = por %p279, %p280
      %p282 = scmp.ne.s32.totalorder %s270, %s271
      %p283 = scmp.eq.s32.totalorder %s34, 1
      %p284 = por %p282, %p283
      %p286 = scmp.ne.s32.totalorder %s271, %s285
      %p287 = scmp.eq.s32.totalorder %s34, 0
      %p288 = por %p286, %p287
      %s290 = sadd.s32 %s289, 1
      %p293 = scmp.eq.s32.totalorder %s28, 1
      %p294 = scmp.ne.s32.totalorder %s289, %s291
      %p295 = scmp.eq.s32.totalorder %s28, 0
      %p296 = por %p294, %p295
      %p297 = scmp.ne.s32.totalorder %s289, %s291
      %p298 = scmp.eq.s32.totalorder %s33, 1
      %p299 = por %p297, %p298
      %p300 = scmp.ne.s32.totalorder %s291, %s292
      %p301 = scmp.eq.s32.totalorder %s33, 0
      %p302 = por %p300, %p301
      %p303 = scmp.ne.s32.totalorder %s291, %s292
      %p304 = scmp.eq.s32.totalorder %s34, 1
      %p305 = por %p303, %p304
      %p307 = scmp.ne.s32.totalorder %s292, %s306
      %p308 = scmp.eq.s32.totalorder %s34, 0
      %p309 = por %p307, %p308
      %s311 = sadd.s32 %s310, 1
      %p314 = scmp.eq.s32.totalorder %s28, 1
      %p315 = scmp.ne.s32.totalorder %s310, %s312
      %p316 = scmp.eq.s32.totalorder %s28, 0
      %p317 = por %p315, %p316
      %p318 = scmp.ne.s32.totalorder %s310, %s312
      %p319 = scmp.eq.s32.totalorder %s33, 1
      %p320 = por %p318, %p319
      %p321 = scmp.ne.s32.totalorder %s312, %s313
      %p322 = scmp.eq.s32.totalorder %s33, 0
      %p323 = por %p321, %p322
      %p324 = scmp.ne.s32.totalorder %s312, %s313
      %p325 = scmp.eq.s32.totalorder %s34, 1
      %p326 = por %p324, %p325
      %p328 = scmp.ne.s32.totalorder %s313, %s327
      %p329 = scmp.eq.s32.totalorder %s34, 0
      %p330 = por %p328, %p329
      %s332 = sadd.s32 %s331, 1
      %p335 = scmp.eq.s32.totalorder %s28, 1
      %p336 = scmp.ne.s32.totalorder %s331, %s333
      %p337 = scmp.eq.s32.totalorder %s28, 0
      %p338 = por %p336, %p337
      %p339 = scmp.ne.s32.totalorder %s331, %s333
      %p340 = scmp.eq.s32.totalorder %s33, 1
      %p341 = por %p339, %p340
      %p342 = scmp.ne.s32.totalorder %s333, %s334
      %p343 = scmp.eq.s32.totalorder %s33, 0
      %p344 = por %p342, %p343
      %p345 = scmp.ne.s32.totalorder %s333, %s334
      %p346 = scmp.eq.s32.totalorder %s34, 1
      %p347 = por %p345, %p346
      %p349 = scmp.ne.s32.totalorder %s334, %s348
      %p350 = scmp.eq.s32.totalorder %s34, 0
      %p351 = por %p349, %p350
      %s353 = sadd.s32 %s352, 1
      %p356 = scmp.eq.s32.totalorder %s28, 1
      %p357 = scmp.ne.s32.totalorder %s352, %s354
      %p358 = scmp.eq.s32.totalorder %s28, 0
      %p359 = por %p357, %p358
      %p360 = scmp.ne.s32.totalorder %s352, %s354
      %p361 = scmp.eq.s32.totalorder %s33, 1
      %p362 = por %p360, %p361
      %p363 = scmp.ne.s32.totalorder %s354, %s355
      %p364 = scmp.eq.s32.totalorder %s33, 0
      %p365 = por %p363, %p364
      %p366 = scmp.ne.s32.totalorder %s354, %s355
      %p367 = scmp.eq.s32.totalorder %s34, 1
      %p368 = por %p366, %p367
      %p370 = scmp.ne.s32.totalorder %s355, %s369
      %p371 = scmp.eq.s32.totalorder %s34, 0
      %p372 = por %p370, %p371
      %s374 = sadd.s32 %s373, 1
      %p377 = scmp.eq.s32.totalorder %s28, 1
      %p378 = scmp.ne.s32.totalorder %s373, %s375
      %p379 = scmp.eq.s32.totalorder %s28, 0
      %p380 = por %p378, %p379
      %p381 = scmp.ne.s32.totalorder %s373, %s375
      %p382 = scmp.eq.s32.totalorder %s33, 1
      %p383 = por %p381, %p382
      %p384 = scmp.ne.s32.totalorder %s375, %s376
      %p385 = scmp.eq.s32.totalorder %s33, 0
      %p386 = por %p384, %p385
      %p387 = scmp.ne.s32.totalorder %s375, %s376
      %p388 = scmp.eq.s32.totalorder %s34, 1
      %p389 = por %p387, %p388
      %p391 = scmp.ne.s32.totalorder %s376, %s390
      %p392 = scmp.eq.s32.totalorder %s34, 0
      %p393 = por %p391, %p392
      %s394 = ssub.s32 %s35, %s47
      %s395 = ssub.s32 %s36, %s43
      %s396 = sor.u32 %s394, %s395
      %p397 = scmp.eq.s32.totalorder %s396, 0
      %s399 = sadd.s32 %s398, 1
      %s400 = scalar_select %p397, %s398, %s399
      %p403 = pneg %p397
      %p404 = scmp.eq.s32.totalorder %s28, 1
      %p405 = por %p403, %p404
      %p406 = scmp.ne.s32.totalorder %s398, %s401
      %p407 = scmp.eq.s32.totalorder %s28, 0
      %p408 = por %p406, %p407
      %p409 = scmp.ne.s32.totalorder %s398, %s401
      %p410 = scmp.eq.s32.totalorder %s33, 1
      %p411 = por %p409, %p410
      %p412 = scmp.ne.s32.totalorder %s401, %s402
      %p413 = scmp.eq.s32.totalorder %s33, 0
      %p414 = por %p412, %p413
      %p415 = scmp.ne.s32.totalorder %s401, %s402
      %p416 = scmp.eq.s32.totalorder %s34, 1
      %p417 = por %p415, %p416
      %p419 = scmp.ne.s32.totalorder %s402, %s418
      %p420 = scmp.eq.s32.totalorder %s34, 0
      %p421 = por %p419, %p420
      %p422 = scmp.le.s32.totalorder 1, %s28
      %p423 = scmp.lt.s32.totalorder %s28, 3
      %p424 = pnand %p422, %p423
      %p425 = pneg %p424
      // Predicated region
      $region9: #{tpu_custom_call.1} parent=5 // pred_check
        _
      $region10: #{tpu_custom_call.1} parent=5 // pred_check_branch
        %427 = sbr.rel (%p424) target = $region12
      $region11: #{tpu_custom_call.1} parent=5 // pred_region
        %s428 = ssub.s32 %s28, 1
        // Predicated region
        $region13: #{tpu_custom_call.1} parent=11 // pred_check
          %p429 = pneg %p113
        $region14: #{tpu_custom_call.1} parent=11 // pred_check_branch
          %431 = sbr.rel (%p429) target = $region16
        $region15: #{tpu_custom_call.1} parent=11 // pred_region
          _
        $region16: #{tpu_custom_call.1} parent=11 // pred_fallthru
          _
        // Predicated region
        $region17: #{tpu_custom_call.1} parent=11 // pred_check
          %p432 = pneg %p134
        $region18: #{tpu_custom_call.1} parent=11 // pred_check_branch
          %434 = sbr.rel (%p432) target = $region20
        $region19: #{tpu_custom_call.1} parent=11 // pred_region
          _
        $region20: #{tpu_custom_call.1} parent=11 // pred_fallthru
          _
        // Predicated region
        $region21: #{tpu_custom_call.1} parent=11 // pred_check
          %p435 = pneg %p155
        $region22: #{tpu_custom_call.1} parent=11 // pred_check_branch
          %437 = sbr.rel (%p435) target = $region24
        $region23: #{tpu_custom_call.1} parent=11 // pred_region
          _
        $region24: #{tpu_custom_call.1} parent=11 // pred_fallthru
          _
        // Predicated region
        $region25: #{tpu_custom_call.1} parent=11 // pred_check
          %p438 = pneg %p176
        $region26: #{tpu_custom_call.1} parent=11 // pred_check_branch
          %440 = sbr.rel (%p438) target = $region28
        $region27: #{tpu_custom_call.1} parent=11 // pred_region
          _
        $region28: #{tpu_custom_call.1} parent=11 // pred_fallthru
          _
        // Predicated region
        $region29: #{tpu_custom_call.1} parent=11 // pred_check
          %p441 = pneg %p197
        $region30: #{tpu_custom_call.1} parent=11 // pred_check_branch
          %443 = sbr.rel (%p441) target = $region32
        $region31: #{tpu_custom_call.1} parent=11 // pred_region
          _
        $region32: #{tpu_custom_call.1} parent=11 // pred_fallthru
          _
        // Predicated region
        $region33: #{tpu_custom_call.1} parent=11 // pred_check
          %p444 = pneg %p218
        $region34: #{tpu_custom_call.1} parent=11 // pred_check_branch
          %446 = sbr.rel (%p444) target = $region36
        $region35: #{tpu_custom_call.1} parent=11 // pred_region
          _
        $region36: #{tpu_custom_call.1} parent=11 // pred_fallthru
          _
        // Predicated region
        $region37: #{tpu_custom_call.1} parent=11 // pred_check
          %p447 = pneg %p239
        $region38: #{tpu_custom_call.1} parent=11 // pred_check_branch
          %449 = sbr.rel (%p447) target = $region40
        $region39: #{tpu_custom_call.1} parent=11 // pred_region
          _
        $region40: #{tpu_custom_call.1} parent=11 // pred_fallthru
          _
        // Predicated region
        $region41: #{tpu_custom_call.1} parent=11 // pred_check
          %p450 = pneg %p260
        $region42: #{tpu_custom_call.1} parent=11 // pred_check_branch
          %452 = sbr.rel (%p450) target = $region44
        $region43: #{tpu_custom_call.1} parent=11 // pred_region
          _
        $region44: #{tpu_custom_call.1} parent=11 // pred_fallthru
          _
        // Predicated region
        $region45: #{tpu_custom_call.1} parent=11 // pred_check
          %p453 = pneg %p281
        $region46: #{tpu_custom_call.1} parent=11 // pred_check_branch
          %455 = sbr.rel (%p453) target = $region48
        $region47: #{tpu_custom_call.1} parent=11 // pred_region
          _
        $region48: #{tpu_custom_call.1} parent=11 // pred_fallthru
          _
        // Predicated region
        $region49: #{tpu_custom_call.1} parent=11 // pred_check
          %p456 = pneg %p302
        $region50: #{tpu_custom_call.1} parent=11 // pred_check_branch
          %458 = sbr.rel (%p456) target = $region52
        $region51: #{tpu_custom_call.1} parent=11 // pred_region
          _
        $region52: #{tpu_custom_call.1} parent=11 // pred_fallthru
          _
        // Predicated region
        $region53: #{tpu_custom_call.1} parent=11 // pred_check
          %p459 = pneg %p323
        $region54: #{tpu_custom_call.1} parent=11 // pred_check_branch
          %461 = sbr.rel (%p459) target = $region56
        $region55: #{tpu_custom_call.1} parent=11 // pred_region
          _
        $region56: #{tpu_custom_call.1} parent=11 // pred_fallthru
          _
        // Predicated region
        $region57: #{tpu_custom_call.1} parent=11 // pred_check
          %p462 = pneg %p344
        $region58: #{tpu_custom_call.1} parent=11 // pred_check_branch
          %464 = sbr.rel (%p462) target = $region60
        $region59: #{tpu_custom_call.1} parent=11 // pred_region
          _
        $region60: #{tpu_custom_call.1} parent=11 // pred_fallthru
          _
        // Predicated region
        $region61: #{tpu_custom_call.1} parent=11 // pred_check
          %p465 = pneg %p365
        $region62: #{tpu_custom_call.1} parent=11 // pred_check_branch
          %467 = sbr.rel (%p465) target = $region64
        $region63: #{tpu_custom_call.1} parent=11 // pred_region
          _
        $region64: #{tpu_custom_call.1} parent=11 // pred_fallthru
          _
        // Predicated region
        $region65: #{tpu_custom_call.1} parent=11 // pred_check
          %p468 = pneg %p386
        $region66: #{tpu_custom_call.1} parent=11 // pred_check_branch
          %470 = sbr.rel (%p468) target = $region68
        $region67: #{tpu_custom_call.1} parent=11 // pred_region
          _
        $region68: #{tpu_custom_call.1} parent=11 // pred_fallthru
          _
      $region12: #{tpu_custom_call.1} parent=5 // pred_fallthru
        _
      %p471 = scmp.lt.s32.totalorder %s28, 2
      // Predicated region
      $region69: #{tpu_custom_call.1} parent=5 // pred_check
        %p472 = pneg %p471
      $region70: #{tpu_custom_call.1} parent=5 // pred_check_branch
        %474 = sbr.rel (%p472) target = $region72
      $region71: #{tpu_custom_call.1} parent=5 // pred_region
        // Predicated region
        $region73: #{tpu_custom_call.1} parent=71 // pred_check
          %p475 = pneg %p60
        $region74: #{tpu_custom_call.1} parent=71 // pred_check_branch
          %477 = sbr.rel (%p475) target = $region76
        $region75: #{tpu_custom_call.1} parent=71 // pred_region
          %p478 = scmp.lt.s32.totalorder %s35, 1
          %s479 = scalar_select %p478, %s35, 1
          %s480 = smul.addr %s479, 8
          %s481 = scalar_lea.vmem %s0, %s480
        $region76: #{tpu_custom_call.1} parent=71 // pred_fallthru
          _
        // Predicated region
        $region77: #{tpu_custom_call.1} parent=71 // pred_check
          %p482 = pneg %p86
        $region78: #{tpu_custom_call.1} parent=71 // pred_check_branch
          %484 = sbr.rel (%p482) target = $region80
        $region79: #{tpu_custom_call.1} parent=71 // pred_region
          %s485 = sand.u32 %s76, 1
          %s486 = scalar_lea.sflag [#allocation3], %s485
          %s487 = sand.u32 %s76, 1
          %s488 = scalar_lea.vmem [#allocation2], %s487
          %490 = vsyncadd %s486, 0
          %s491 = scalar_lea.hbm %s1, %s35
          %s493 = sshll.u32 %s491, 4
          %s494 = int_to_ptr.hbm [resolvable:$true] %s493
          %s495 = sshll.u32 %s488, 4
          %s496 = int_to_ptr.vmem [resolvable:$true] %s495
          %498 = dma.hbm_to_vmem [thread:$0]  %s494, 16, %s496, %s486
        $region80: #{tpu_custom_call.1} parent=71 // pred_fallthru
          _
      $region72: #{tpu_custom_call.1} parent=5 // pred_fallthru
        _
      %p499 = scmp.le.s32.totalorder 1, %s28
      %p500 = scmp.lt.s32.totalorder %s28, 3
      %p501 = pnand %p499, %p500
      %p502 = pneg %p501
      // Predicated region
      $region81: #{tpu_custom_call.1} parent=5 // pred_check
        _
      $region82: #{tpu_custom_call.1} parent=5 // pred_check_branch
        %504 = sbr.rel (%p501) target = $region84
      $region83: #{tpu_custom_call.1} parent=5 // pred_region
        %s505 = ssub.s32 %s28, 1
        %s506 = sand.u32 %s79, 1
        %s507 = scalar_lea.sflag [#allocation3], %s506
        %s508 = sand.u32 %s79, 1
        %s509 = scalar_lea.vmem [#allocation2], %s508
        // Predicated region
        $region85: #{tpu_custom_call.1} parent=83 // pred_check
          %p510 = pneg %p92
        $region86: #{tpu_custom_call.1} parent=83 // pred_check_branch
          %512 = sbr.rel (%p510) target = $region88
        $region87: #{tpu_custom_call.1} parent=83 // pred_region
          %514 = dma.done %s507, 16
        $region88: #{tpu_custom_call.1} parent=83 // pred_fallthru
          _
        %p515 = scmp.lt.s32.totalorder %s37, 1
        %s516 = scalar_select %p515, %s37, 1
        %s517 = smul.addr %s516, 8
        %s518 = scalar_lea.vmem %s0, %s517
        %p519 = pneg %p66
        %p520 = pneg %p63
        %s521 = sand.u32 %s79, 1
        %s522 = scalar_lea.sflag [#allocation3], %s521
        %s523 = sand.u32 %s79, 1
        %s524 = scalar_lea.vmem [#allocation2], %s523
        %p525 = pneg %p92
        %p526 = pneg %p89
        %p527 = pneg %p113
        %p528 = pneg %p110
        %p529 = pneg %p134
        %p530 = pneg %p131
        %p531 = pneg %p155
        %p532 = pneg %p152
        %p533 = pneg %p176
        %p534 = pneg %p173
        %p535 = pneg %p197
        %p536 = pneg %p194
        %p537 = pneg %p218
        %p538 = pneg %p215
        %p539 = pneg %p239
        %p540 = pneg %p236
        %p541 = pneg %p260
        %p542 = pneg %p257
        %p543 = pneg %p281
        %p544 = pneg %p278
        %p545 = pneg %p302
        %p546 = pneg %p299
        %p547 = pneg %p323
        %p548 = pneg %p320
        %p549 = pneg %p344
        %p550 = pneg %p341
        %p551 = pneg %p365
        %p552 = pneg %p362
        %p553 = pneg %p386
        %p554 = pneg %p383
        %p555 = pneg %p414
        %p556 = pneg %p411
        %s557 = sand.u32 %s401, 1
        %s558 = scalar_lea.sflag [#allocation4], %s557
        %s559 = sand.u32 %s401, 1
        %s560 = smul.addr %s559, 8
        %s561 = scalar_lea.vmem [#allocation5], %s560
        %p562 = scmp.lt.s32.totalorder %s37, 1
        %s563 = scalar_select %p562, %s37, 1
        %s564 = smul.addr %s563, 8
        %s565 = scalar_lea.vmem %s0, %s564
        %v567 = vld [vmem:[%s565] sm:$0xff]
        %v568 = vld [vmem:[%s509] sm:$0x1]
        %v569 = vld [vmem:[%s8] sm:$0x1]
        %v570 = vld [vmem:[%s9] sm:$0x1]
        %vm571 = vcmask 261120
        %v572 = vsel %vm571, %v567, 0.0
        %573 = vadd.xlane.f32.xlu0 %v572
        %v574 = vpop.xlane.xlu0 %573
        %v575 = vrcp.pop 32.0
        %v576 = vmul.f32 32.0, %v575
        %v577 = vsub.f32 1.0, %v576
        %v578 = vmul.f32 %v575, %v577
        %v579 = vadd.f32 %v575, %v578
        %vm580 = vweird.f32 %v575
        %v581 = vsel %vm580, %v575, %v579
        %v582 = vmul.f32 %v574, %v581
        %v583 = vsub.f32 %v567, %v582
        %v584 = vmul.f32 %v583, %v583
        %v585 = vsel %vm571, %v584, 0.0
        %586 = vadd.xlane.f32.xlu0 %v585
        %v587 = vpop.xlane.xlu0 %586
        %v588 = vmul.f32 %v587, %v581
        %v589 = vrsqrt.pop %v588
        %v590 = vmul.f32 %v589, %v588
        %v591 = vmul.f32 %v590, %v589
        %v592 = vmul.f32 0.5, %v591
        %v593 = vsub.f32 1.5, %v592
        %v594 = vmul.f32 %v589, %v593
        %v595 = vmul.f32 %v588, %v594
        %vm596 = vcmp.eq.f32.partialorder %v588, inf
        %v597 = vsel %vm596, %v588, %v595
        %vm598 = vcmp.eq.f32.partialorder %v588, 0.0
        %v599 = vand.u32 %v588, 2147483648
        %v600 = vsel %vm598, %v599, %v597
        %v602 = vperm.slane %v569, 0
        %v604 = vmul.f32 %v602, %v583
        %v605 = vadd.f32 %v600, 1e-06
        %v606 = vrcp.pop %v605
        %v607 = vmul.f32 %v605, %v606
        %v608 = vsub.f32 1.0, %v607
        %v609 = vmul.f32 %v606, %v608
        %v610 = vadd.f32 %v606, %v609
        %vm611 = vweird.f32 %v605
        %vm612 = vweird.f32 %v606
        %vm613 = vmor %vm611, %vm612
        %v614 = vsel %vm613, %v606, %v610
        %v615 = vand.u32 2147483647, %v605
        %vm616 = vcmp.eq.f32.partialorder %v615, 8.507059e+37
        %v617 = vand.u32 %v605, 2147483648
        %v618 = vor.u32 1.1754944e-38, %v617
        %v619 = vsel %vm616, %v618, %v614
        %v620 = vmul.f32 %v604, %v619
        %v622 = vperm.slane %v570, 0
        %v624 = vadd.f32 %v620, %v622
        %v625 = vpack.c.bf16 %v624, %v624
        %v626 = vld [vmem:[%s2] sm:$0xf]
        %v627 = vld [vmem:[%s2 + $0x4] sm:$0xf]
        %v628 = vld [vmem:[%s2 + $0x8] sm:$0xf]
        %v629 = vld [vmem:[%s2 + $0xc] sm:$0xf]
        %v630 = vld [vmem:[%s3] sm:$0x1]
        %v632 = vperm.slane %v630, 0
        %v638 = vunpack.c.l.b16 %v626
        %v639 = vunpack.c.l.b16 %v627
        %v640 = vunpack.c.l.b16 %v628
        %v641 = vunpack.c.l.b16 %v629
        %v642 = vpack.c.b16 %v639, %v638
        %v643 = vpack.c.b16 %v641, %v640
        %v647 = vsel %vm571, %v625, 0
        %649 = vmatpush.bf16.msra.mxu0 0
        %650 = vmatpush.bf16.msra.mxu0 0
        %651 = vmatpush.bf16.msra.mxu0 0
        %652 = vmatpush.bf16.msra.mxu0 0
        %653 = vmatpush.bf16.msra.mxu0 0
        %654 = vmatpush.bf16.msra.mxu0 0
        %655 = vmatpush.bf16.msra.mxu0 %v643
        %656 = vmatpush.bf16.msra.mxu0 %v642
        %657 = vmatmul.bf16.gmra.mxu0 %v647
        %v658 = vpop.f32.mrf.mxu0
        %v659 = vadd.f32 %v632, %v658
        %v660 = vpop.f32.mrf.mxu0
        %661 = vdwg.mxu0
        %v662 = vld [vmem:[%s4] sm:$0xf]
        %v663 = vld [vmem:[%s4 + $0x4] sm:$0xf]
        %v664 = vld [vmem:[%s4 + $0x8] sm:$0xf]
        %v665 = vld [vmem:[%s4 + $0xc] sm:$0xf]
        %v666 = vld [vmem:[%s5] sm:$0x1]
        %v668 = vperm.slane %v666, 0
        %v674 = vunpack.c.l.b16 %v662
        %v675 = vunpack.c.l.b16 %v663
        %v676 = vunpack.c.l.b16 %v664
        %v677 = vunpack.c.l.b16 %v665
        %v678 = vpack.c.b16 %v675, %v674
        %v679 = vpack.c.b16 %v677, %v676
        %682 = vmatpush.bf16.msra.mxu0 0
        %683 = vmatpush.bf16.msra.mxu0 0
        %684 = vmatpush.bf16.msra.mxu0 0
        %685 = vmatpush.bf16.msra.mxu0 0
        %686 = vmatpush.bf16.msra.mxu0 0
        %687 = vmatpush.bf16.msra.mxu0 0
        %688 = vmatpush.bf16.msra.mxu0 %v679
        %689 = vmatpush.bf16.msra.mxu0 %v678
        %690 = vmatmul.bf16.gmra.mxu0 %v647
        %v691 = vpop.f32.mrf.mxu0
        %v692 = vadd.f32 %v668, %v691
        %v693 = vpop.f32.mrf.mxu0
        %694 = vdwg.mxu0
        %v695 = vpack.c.bf16 %v659, %v659
        %v696 = vpack.c.bf16 %v692, %v692
        %v698 = vperm.slane %v568, 0
        %vm700 = vcmask 64512
        %v702 = vsel %vm700, %v695, 0
        %v705 = vsel %vm700, %v696, 0
        %707 = vmatpush.bf16.xpose.msra.mxu0 0
        %708 = vmatpush.bf16.xpose.msra.mxu0 0
        %709 = vmatpush.bf16.xpose.msra.mxu0 0
        %710 = vmatpush.bf16.xpose.msra.mxu0 0
        %711 = vmatpush.bf16.xpose.msra.mxu0 0
        %712 = vmatpush.bf16.xpose.msra.mxu0 0
        %713 = vmatpush.bf16.xpose.msra.mxu0 0
        %714 = vmatpush.bf16.xpose.msra.mxu0 %v705
        %715 = vmatmul.bf16.gmra.mxu0 %v702
        %v716 = vpop.f32.mrf.mxu0
        %v717 = vadd.f32 %v698, %v716
        %v718 = vpop.f32.mrf.mxu0
        %719 = vdwg.mxu0
        %v720 = vsel %vm700, %v717, -inf
        %721 = vmax.xlane.f32.xlu0 %v720
        %v722 = vpop.xlane.xlu0 %721
        %v723 = vsub.f32 %v717, %v722
        %v724 = vmul.f32 %v723, 1.442695
        %v725 = vpow.pop %v724
        %v726 = vsel %vm700, %v725, 0.0
        %727 = vadd.xlane.f32.xlu0 %v726
        %v728 = vpop.xlane.xlu0 %727
        %v729 = vrcp.pop %v728
        %v730 = vpack.c.bf16 %v725, %v725
        %v732 = vunpack.c.l.b16 %v696
        %v733 = vpack.c.b16 %v732, %v732
        %734 = vrot.lane.b32.xlu0 %v733, 96
        %v735 = vpop.permute.xlu0 %734
        %v737 = vsel %vm700, %v730, 0
        %vm739 = vcmask 1043456
        %v741 = vsel %vm739, %v735, 0
        %743 = vmatpush.bf16.msra.mxu0 0
        %744 = vmatpush.bf16.msra.mxu0 0
        %745 = vmatpush.bf16.msra.mxu0 0
        %746 = vmatpush.bf16.msra.mxu0 0
        %747 = vmatpush.bf16.msra.mxu0 0
        %748 = vmatpush.bf16.msra.mxu0 0
        %749 = vmatpush.bf16.msra.mxu0 0
        %750 = vmatpush.bf16.msra.mxu0 %v741
        %751 = vmatmul.bf16.gmra.mxu0 %v737
        %v752 = vpop.f32.mrf.mxu0
        %v753 = vadd.f32 0.0, %v752
        %v754 = vpop.f32.mrf.mxu0
        %755 = vdwg.mxu0
        %v756 = vmul.f32 %v753, %v729
        %v758 = vunpack.c.l.b16 %v695
        %v759 = vpack.c.b16 %v758, %v758
        %760 = vrot.lane.b32.xlu0 %v759, 120
        %v761 = vpop.permute.xlu0 %760
        %762 = vrot.lane.b32.xlu0 %v733, 120
        %v763 = vpop.permute.xlu0 %762
        %v765 = vsel %vm700, %v761, 0
        %v768 = vsel %vm700, %v763, 0
        %770 = vmatpush.bf16.xpose.msra.mxu0 0
        %771 = vmatpush.bf16.xpose.msra.mxu0 0
        %772 = vmatpush.bf16.xpose.msra.mxu0 0
        %773 = vmatpush.bf16.xpose.msra.mxu0 0
        %774 = vmatpush.bf16.xpose.msra.mxu0 0
        %775 = vmatpush.bf16.xpose.msra.mxu0 0
        %776 = vmatpush.bf16.xpose.msra.mxu0 0
        %777 = vmatpush.bf16.xpose.msra.mxu0 %v768
        %778 = vmatmul.bf16.gmra.mxu0 %v765
        %v779 = vpop.f32.mrf.mxu0
        %v780 = vadd.f32 %v698, %v779
        %v781 = vpop.f32.mrf.mxu0
        %782 = vdwg.mxu0
        %v783 = vsel %vm700, %v780, -inf
        %784 = vmax.xlane.f32.xlu0 %v783
        %v785 = vpop.xlane.xlu0 %784
        %v786 = vsub.f32 %v780, %v785
        %v787 = vmul.f32 %v786, 1.442695
        %v788 = vpow.pop %v787
        %v789 = vsel %vm700, %v788, 0.0
        %790 = vadd.xlane.f32.xlu0 %v789
        %v791 = vpop.xlane.xlu0 %790
        %v792 = vrcp.pop %v791
        %v793 = vpack.c.bf16 %v788, %v788
        %794 = vrot.lane.b32.xlu0 %v733, 88
        %v795 = vpop.permute.xlu0 %794
        %v797 = vsel %vm700, %v793, 0
        %v800 = vsel %vm739, %v795, 0
        %802 = vmatpush.bf16.msra.mxu0 0
        %803 = vmatpush.bf16.msra.mxu0 0
        %804 = vmatpush.bf16.msra.mxu0 0
        %805 = vmatpush.bf16.msra.mxu0 0
        %806 = vmatpush.bf16.msra.mxu0 0
        %807 = vmatpush.bf16.msra.mxu0 0
        %808 = vmatpush.bf16.msra.mxu0 0
        %809 = vmatpush.bf16.msra.mxu0 %v800
        %810 = vmatmul.bf16.gmra.mxu0 %v797
        %v811 = vpop.f32.mrf.mxu0
        %v812 = vadd.f32 0.0, %v811
        %v813 = vpop.f32.mrf.mxu0
        %814 = vdwg.mxu0
        %v815 = vmul.f32 %v812, %v792
        %816 = vrot.lane.b32.xlu0 %v759, 112
        %v817 = vpop.permute.xlu0 %816
        %818 = vrot.lane.b32.xlu0 %v733, 112
        %v819 = vpop.permute.xlu0 %818
        %v821 = vsel %vm700, %v817, 0
        %v824 = vsel %vm700, %v819, 0
        %826 = vmatpush.bf16.xpose.msra.mxu0 0
        %827 = vmatpush.bf16.xpose.msra.mxu0 0
        %828 = vmatpush.bf16.xpose.msra.mxu0 0
        %829 = vmatpush.bf16.xpose.msra.mxu0 0
        %830 = vmatpush.bf16.xpose.msra.mxu0 0
        %831 = vmatpush.bf16.xpose.msra.mxu0 0
        %832 = vmatpush.bf16.xpose.msra.mxu0 0
        %833 = vmatpush.bf16.xpose.msra.mxu0 %v824
        %834 = vmatmul.bf16.gmra.mxu0 %v821
        %v835 = vpop.f32.mrf.mxu0
        %v836 = vadd.f32 %v698, %v835
        %v837 = vpop.f32.mrf.mxu0
        %838 = vdwg.mxu0
        %v839 = vsel %vm700, %v836, -inf
        %840 = vmax.xlane.f32.xlu0 %v839
        %v841 = vpop.xlane.xlu0 %840
        %v842 = vsub.f32 %v836, %v841
        %v843 = vmul.f32 %v842, 1.442695
        %v844 = vpow.pop %v843
        %v845 = vsel %vm700, %v844, 0.0
        %846 = vadd.xlane.f32.xlu0 %v845
        %v847 = vpop.xlane.xlu0 %846
        %v848 = vrcp.pop %v847
        %v849 = vpack.c.bf16 %v844, %v844
        %850 = vrot.lane.b32.xlu0 %v733, 80
        %v851 = vpop.permute.xlu0 %850
        %v853 = vsel %vm700, %v849, 0
        %v856 = vsel %vm739, %v851, 0
        %858 = vmatpush.bf16.msra.mxu0 0
        %859 = vmatpush.bf16.msra.mxu0 0
        %860 = vmatpush.bf16.msra.mxu0 0
        %861 = vmatpush.bf16.msra.mxu0 0
        %862 = vmatpush.bf16.msra.mxu0 0
        %863 = vmatpush.bf16.msra.mxu0 0
        %864 = vmatpush.bf16.msra.mxu0 0
        %865 = vmatpush.bf16.msra.mxu0 %v856
        %866 = vmatmul.bf16.gmra.mxu0 %v853
        %v867 = vpop.f32.mrf.mxu0
        %v868 = vadd.f32 0.0, %v867
        %v869 = vpop.f32.mrf.mxu0
        %870 = vdwg.mxu0
        %v871 = vmul.f32 %v868, %v848
        %872 = vrot.lane.b32.xlu0 %v759, 104
        %v873 = vpop.permute.xlu0 %872
        %874 = vrot.lane.b32.xlu0 %v733, 104
        %v875 = vpop.permute.xlu0 %874
        %v877 = vsel %vm700, %v873, 0
        %v880 = vsel %vm700, %v875, 0
        %882 = vmatpush.bf16.xpose.msra.mxu0 0
        %883 = vmatpush.bf16.xpose.msra.mxu0 0
        %884 = vmatpush.bf16.xpose.msra.mxu0 0
        %885 = vmatpush.bf16.xpose.msra.mxu0 0
        %886 = vmatpush.bf16.xpose.msra.mxu0 0
        %887 = vmatpush.bf16.xpose.msra.mxu0 0
        %888 = vmatpush.bf16.xpose.msra.mxu0 0
        %889 = vmatpush.bf16.xpose.msra.mxu0 %v880
        %890 = vmatmul.bf16.gmra.mxu0 %v877
        %v891 = vpop.f32.mrf.mxu0
        %v892 = vadd.f32 %v698, %v891
        %v893 = vpop.f32.mrf.mxu0
        %894 = vdwg.mxu0
        %v895 = vsel %vm700, %v892, -inf
        %896 = vmax.xlane.f32.xlu0 %v895
        %v897 = vpop.xlane.xlu0 %896
        %v898 = vsub.f32 %v892, %v897
        %v899 = vmul.f32 %v898, 1.442695
        %v900 = vpow.pop %v899
        %v901 = vsel %vm700, %v900, 0.0
        %902 = vadd.xlane.f32.xlu0 %v901
        %v903 = vpop.xlane.xlu0 %902
        %v904 = vrcp.pop %v903
        %v905 = vpack.c.bf16 %v900, %v900
        %906 = vrot.lane.b32.xlu0 %v733, 72
        %v907 = vpop.permute.xlu0 %906
        %v909 = vsel %vm700, %v905, 0
        %v912 = vsel %vm739, %v907, 0
        %914 = vmatpush.bf16.msra.mxu0 0
        %915 = vmatpush.bf16.msra.mxu0 0
        %916 = vmatpush.bf16.msra.mxu0 0
        %917 = vmatpush.bf16.msra.mxu0 0
        %918 = vmatpush.bf16.msra.mxu0 0
        %919 = vmatpush.bf16.msra.mxu0 0
        %920 = vmatpush.bf16.msra.mxu0 0
        %921 = vmatpush.bf16.msra.mxu0 %v912
        %922 = vmatmul.bf16.gmra.mxu0 %v909
        %v923 = vpop.f32.mrf.mxu0
        %v924 = vadd.f32 0.0, %v923
        %v925 = vpop.f32.mrf.mxu0
        %926 = vdwg.mxu0
        %v927 = vmul.f32 %v924, %v904
        %929 = vrot.lane.b32.xlu0 %v815, 8
        %v930 = vpop.permute.xlu0 %929
        %933 = vrot.lane.b32.xlu0 %v871, 16
        %v934 = vpop.permute.xlu0 %933
        %937 = vrot.lane.b32.xlu0 %v927, 24
        %v938 = vpop.permute.xlu0 %937
        %v940 = vsel %vm700, %v756, %v930
        %vm941 = vcmask 130048
        %v942 = vsel %vm941, %v940, %v934
        %vm943 = vcmask 195584
        %v944 = vsel %vm943, %v942, %v938
        %v945 = vpack.c.bf16 %v944, %v944
        %v946 = vld [vmem:[%s6] sm:$0xf]
        %v947 = vld [vmem:[%s6 + $0x4] sm:$0xf]
        %v948 = vld [vmem:[%s6 + $0x8] sm:$0xf]
        %v949 = vld [vmem:[%s6 + $0xc] sm:$0xf]
        %v950 = vld [vmem:[%s7] sm:$0x1]
        %v952 = vperm.slane %v950, 0
        %v958 = vunpack.c.l.b16 %v946
        %v959 = vunpack.c.l.b16 %v947
        %v960 = vunpack.c.l.b16 %v948
        %v961 = vunpack.c.l.b16 %v949
        %v962 = vpack.c.b16 %v959, %v958
        %v963 = vpack.c.b16 %v961, %v960
        %v967 = vsel %vm571, %v945, 0
        %969 = vmatpush.bf16.msra.mxu0 0
        %970 = vmatpush.bf16.msra.mxu0 0
        %971 = vmatpush.bf16.msra.mxu0 0
        %972 = vmatpush.bf16.msra.mxu0 0
        %973 = vmatpush.bf16.msra.mxu0 0
        %974 = vmatpush.bf16.msra.mxu0 0
        %975 = vmatpush.bf16.msra.mxu0 %v963
        %976 = vmatpush.bf16.msra.mxu0 %v962
        %977 = vmatmul.bf16.gmra.mxu0 %v967
        %v978 = vpop.f32.mrf.mxu0
        %v979 = vadd.f32 %v952, %v978
        %v980 = vpop.f32.mrf.mxu0
        %981 = vdwg.mxu0
        %v982 = vadd.f32 %v567, %v979
        %v983 = vld [vmem:[%s14] sm:$0x1]
        %v984 = vld [vmem:[%s15] sm:$0x1]
        %v985 = vsel %vm571, %v982, 0.0
        %986 = vadd.xlane.f32.xlu0 %v985
        %v987 = vpop.xlane.xlu0 %986
        %v988 = vmul.f32 %v987, %v581
        %v989 = vsub.f32 %v982, %v988
        %v990 = vmul.f32 %v989, %v989
        %v991 = vsel %vm571, %v990, 0.0
        %992 = vadd.xlane.f32.xlu0 %v991
        %v993 = vpop.xlane.xlu0 %992
        %v994 = vmul.f32 %v993, %v581
        %v995 = vrsqrt.pop %v994
        %v996 = vmul.f32 %v995, %v994
        %v997 = vmul.f32 %v996, %v995
        %v998 = vmul.f32 0.5, %v997
        %v999 = vsub.f32 1.5, %v998
        %v1000 = vmul.f32 %v995, %v999
        %v1001 = vmul.f32 %v994, %v1000
        %vm1002 = vcmp.eq.f32.partialorder %v994, inf
        %v1003 = vsel %vm1002, %v994, %v1001
        %vm1004 = vcmp.eq.f32.partialorder %v994, 0.0
        %v1005 = vand.u32 %v994, 2147483648
        %v1006 = vsel %vm1004, %v1005, %v1003
        %v1008 = vperm.slane %v983, 0
        %v1010 = vmul.f32 %v1008, %v989
        %v1011 = vadd.f32 %v1006, 1e-06
        %v1012 = vrcp.pop %v1011
        %v1013 = vmul.f32 %v1011, %v1012
        %v1014 = vsub.f32 1.0, %v1013
        %v1015 = vmul.f32 %v1012, %v1014
        %v1016 = vadd.f32 %v1012, %v1015
        %vm1017 = vweird.f32 %v1011
        %vm1018 = vweird.f32 %v1012
        %vm1019 = vmor %vm1017, %vm1018
        %v1020 = vsel %vm1019, %v1012, %v1016
        %v1021 = vand.u32 2147483647, %v1011
        %vm1022 = vcmp.eq.f32.partialorder %v1021, 8.507059e+37
        %v1023 = vand.u32 %v1011, 2147483648
        %v1024 = vor.u32 1.1754944e-38, %v1023
        %v1025 = vsel %vm1022, %v1024, %v1020
        %v1026 = vmul.f32 %v1010, %v1025
        %v1028 = vperm.slane %v984, 0
        %v1030 = vadd.f32 %v1026, %v1028
        %v1031 = vpack.c.bf16 %v1030, %v1030
        %v1032 = vld [vmem:[%s10] sm:$0xf]
        %v1033 = vld [vmem:[%s10 + $0x4] sm:$0xf]
        %v1034 = vld [vmem:[%s10 + $0x8] sm:$0xf]
        %v1035 = vld [vmem:[%s10 + $0xc] sm:$0xf]
        %v1036 = vld [vmem:[%s11] sm:$0x1]
        %v1038 = vperm.slane %v1036, 0
        %v1044 = vunpack.c.l.b16 %v1032
        %v1045 = vunpack.c.l.b16 %v1033
        %v1046 = vunpack.c.l.b16 %v1034
        %v1047 = vunpack.c.l.b16 %v1035
        %v1048 = vpack.c.b16 %v1045, %v1044
        %v1049 = vpack.c.b16 %v1047, %v1046
        %v1053 = vsel %vm571, %v1031, 0
        %1055 = vmatpush.bf16.msra.mxu0 0
        %1056 = vmatpush.bf16.msra.mxu0 0
        %1057 = vmatpush.bf16.msra.mxu0 0
        %1058 = vmatpush.bf16.msra.mxu0 0
        %1059 = vmatpush.bf16.msra.mxu0 0
        %1060 = vmatpush.bf16.msra.mxu0 0
        %1061 = vmatpush.bf16.msra.mxu0 %v1049
        %1062 = vmatpush.bf16.msra.mxu0 %v1048
        %1063 = vmatmul.bf16.gmra.mxu0 %v1053
        %v1064 = vpop.f32.mrf.mxu0
        %v1065 = vadd.f32 %v1038, %v1064
        %v1066 = vpop.f32.mrf.mxu0
        %1067 = vdwg.mxu0
        %v1068 = vmul.f32 %v1065, %v1065
        %v1069 = vmul.f32 %v1068, %v1065
        %v1070 = vmul.f32 %v1065, 0.5
        %v1071 = vmul.f32 %v1069, 0.044715
        %v1072 = vadd.f32 %v1065, %v1071
        %v1073 = vmul.f32 %v1072, 1.7728106
        %v1074 = vtanh.pop %v1073
        %v1075 = vadd.f32 %v1074, 1.0
        %v1076 = vmul.f32 %v1070, %v1075
        %v1077 = vpack.c.bf16 %v1076, %v1076
        %v1078 = vld [vmem:[%s12] sm:$0xf]
        %v1079 = vld [vmem:[%s12 + $0x4] sm:$0xf]
        %v1080 = vld [vmem:[%s12 + $0x8] sm:$0xf]
        %v1081 = vld [vmem:[%s12 + $0xc] sm:$0xf]
        %v1082 = vld [vmem:[%s12 + $0x10] sm:$0xf]
        %v1083 = vld [vmem:[%s12 + $0x14] sm:$0xf]
        %v1084 = vld [vmem:[%s12 + $0x18] sm:$0xf]
        %v1085 = vld [vmem:[%s12 + $0x1c] sm:$0xf]
        %v1086 = vld [vmem:[%s12 + $0x20] sm:$0xf]
        %v1087 = vld [vmem:[%s12 + $0x24] sm:$0xf]
        %v1088 = vld [vmem:[%s12 + $0x28] sm:$0xf]
        %v1089 = vld [vmem:[%s12 + $0x2c] sm:$0xf]
        %v1090 = vld [vmem:[%s12 + $0x30] sm:$0xf]
        %v1091 = vld [vmem:[%s12 + $0x34] sm:$0xf]
        %v1092 = vld [vmem:[%s12 + $0x38] sm:$0xf]
        %v1093 = vld [vmem:[%s12 + $0x3c] sm:$0xf]
        %v1094 = vld [vmem:[%s13] sm:$0x1]
        %v1096 = vperm.slane %v1094, 0
        %v1114 = vunpack.c.l.b16 %v1078
        %v1115 = vunpack.c.l.b16 %v1079
        %v1116 = vunpack.c.l.b16 %v1080
        %v1117 = vunpack.c.l.b16 %v1081
        %v1118 = vunpack.c.l.b16 %v1082
        %v1119 = vunpack.c.l.b16 %v1083
        %v1120 = vunpack.c.l.b16 %v1084
        %v1121 = vunpack.c.l.b16 %v1085
        %v1122 = vunpack.c.l.b16 %v1086
        %v1123 = vunpack.c.l.b16 %v1087
        %v1124 = vunpack.c.l.b16 %v1088
        %v1125 = vunpack.c.l.b16 %v1089
        %v1126 = vunpack.c.l.b16 %v1090
        %v1127 = vunpack.c.l.b16 %v1091
        %v1128 = vunpack.c.l.b16 %v1092
        %v1129 = vunpack.c.l.b16 %v1093
        %v1130 = vpack.c.b16 %v1115, %v1114
        %v1131 = vpack.c.b16 %v1117, %v1116
        %v1132 = vpack.c.b16 %v1119, %v1118
        %v1133 = vpack.c.b16 %v1121, %v1120
        %v1134 = vpack.c.b16 %v1123, %v1122
        %v1135 = vpack.c.b16 %v1125, %v1124
        %v1136 = vpack.c.b16 %v1127, %v1126
        %v1137 = vpack.c.b16 %v1129, %v1128
        %1146 = vmatpush.bf16.msra.mxu0 %v1137
        %1147 = vmatpush.bf16.msra.mxu0 %v1136
        %1148 = vmatpush.bf16.msra.mxu0 %v1135
        %1149 = vmatpush.bf16.msra.mxu0 %v1134
        %1150 = vmatpush.bf16.msra.mxu0 %v1133
        %1151 = vmatpush.bf16.msra.mxu0 %v1132
        %1152 = vmatpush.bf16.msra.mxu0 %v1131
        %1153 = vmatpush.bf16.msra.mxu0 %v1130
        %1154 = vmatmul.bf16.gmra.mxu0 %v1077
        %v1155 = vpop.f32.mrf.mxu0
        %v1156 = vadd.f32 %v1096, %v1155
        %v1157 = vpop.f32.mrf.mxu0
        %1158 = vdwg.mxu0
        %v1159 = vadd.f32 %v982, %v1156
        %1160 = vst.msk [vmem:[%s561] sm:$0xff] %vm571, %v1159
        %s1161 = sand.u32 %s401, 1
        %s1162 = scalar_lea.sflag [#allocation4], %s1161
        %s1163 = sand.u32 %s401, 1
        %s1164 = smul.addr %s1163, 8
        %s1165 = scalar_lea.vmem [#allocation5], %s1164
        // Predicated region
        $region89: #{tpu_custom_call.1} parent=83 // pred_check
          %p1166 = pneg %p411
        $region90: #{tpu_custom_call.1} parent=83 // pred_check_branch
          %1168 = sbr.rel (%p1166) target = $region92
        $region91: #{tpu_custom_call.1} parent=83 // pred_region
          %1170 = vsyncadd %s1162, 0
          %s1171 = sadd.s32 %s38, %s37
          %s1172 = smul.addr %s1171, 8
          %s1173 = scalar_lea.hbm %s16, %s1172
          %s1175 = sshll.u32 %s1165, 4
          %s1176 = int_to_ptr.vmem [resolvable:$true] %s1175
          %s1177 = sshll.u32 %s1173, 4
          %s1178 = int_to_ptr.hbm [resolvable:$true] %s1177
          %1180 = dma.vmem_to_hbm [thread:$0]  %s1176, 128, %s1178, %s1162
        $region92: #{tpu_custom_call.1} parent=83 // pred_fallthru
          _
      $region84: #{tpu_custom_call.1} parent=5 // pred_fallthru
        _
      %p1181 = scmp.le.s32.totalorder 2, %s28
      // Predicated region
      $region93: #{tpu_custom_call.1} parent=5 // pred_check
        %p1182 = pneg %p1181
      $region94: #{tpu_custom_call.1} parent=5 // pred_check_branch
        %1184 = sbr.rel (%p1182) target = $region96
      $region95: #{tpu_custom_call.1} parent=5 // pred_region
        %s1185 = ssub.s32 %s28, 2
        // Predicated region
        $region97: #{tpu_custom_call.1} parent=95 // pred_check
          %p1186 = pneg %p417
        $region98: #{tpu_custom_call.1} parent=95 // pred_check_branch
          %1188 = sbr.rel (%p1186) target = $region100
        $region99: #{tpu_custom_call.1} parent=95 // pred_region
          %s1189 = sand.u32 %s402, 1
          %s1190 = scalar_lea.sflag [#allocation4], %s1189
          %s1191 = sand.u32 %s402, 1
          %s1192 = smul.addr %s1191, 8
          %s1193 = scalar_lea.vmem [#allocation5], %s1192
          %1195 = dma.done %s1190, 128
        $region100: #{tpu_custom_call.1} parent=95 // pred_fallthru
          _
      $region96: #{tpu_custom_call.1} parent=5 // pred_fallthru
        _
    $region6: #{tpu_custom_call.1} parent=1 // loop_footer
      %s32 = sadd.s32 1, %s28
    $region7: #{tpu_custom_call.1} parent=1 // loop_footer_branch
      %27 = sbr.rel target = $region3
    $region8: #{tpu_custom_call.1} parent=1 // loop_exit
      _
    %1196 = vsyncpa [#allocation3], 1
    %s1197 = scalar_lea.sflag [#allocation3], 1
    %1198 = vsyncpa %s1197, 1
    %1199 = vsyncpa [#allocation4], 1
    %s1200 = scalar_lea.sflag [#allocation4], 1
    %1201 = vsyncpa %s1200, 1

// kernel: tpu_custom_call.1
$region0: #{tpu_custom_call.1}
  #allocation0 [shape = 'u32[]', space=smem, size = 0x4, offset = 0x4, fixed_abs, tag = 'smem constant byte address 0x4 - core index']
  #allocation1 [shape = 'u32[72,128]{1,0:T(1,128)}', space=vmem, size = 0x9000, scoped, tag = 'internal scratch']
  %s0 = inlined_call_operand.vmem [shape: f32[2,8,32], index: 0, kind: input, shape index: {}]
  %s1 = inlined_call_operand.hbm [shape: f32[2,1,8], index: 1, kind: input, shape index: {}]
  %s2 = inlined_call_operand.vmem [shape: bf16[32,32], index: 2, kind: input, shape index: {}]
  %s3 = inlined_call_operand.vmem [shape: f32[1,32], index: 3, kind: input, shape index: {}]
  %s4 = inlined_call_operand.vmem [shape: bf16[32,64], index: 4, kind: input, shape index: {}]
  %s5 = inlined_call_operand.vmem [shape: f32[1,64], index: 5, kind: input, shape index: {}]
  %s6 = inlined_call_operand.vmem [shape: bf16[32,32], index: 6, kind: input, shape index: {}]
  %s7 = inlined_call_operand.vmem [shape: f32[1,32], index: 7, kind: input, shape index: {}]
  %s8 = inlined_call_operand.vmem [shape: f32[1,32], index: 8, kind: input, shape index: {}]
  %s9 = inlined_call_operand.vmem [shape: f32[1,32], index: 9, kind: input, shape index: {}]
  %s10 = inlined_call_operand.vmem [shape: bf16[32,128], index: 10, kind: input, shape index: {}]
  %s11 = inlined_call_operand.vmem [shape: f32[1,128], index: 11, kind: input, shape index: {}]
  %s12 = inlined_call_operand.vmem [shape: bf16[128,32], index: 12, kind: input, shape index: {}]
  %s13 = inlined_call_operand.vmem [shape: f32[1,32], index: 13, kind: input, shape index: {}]
  %s14 = inlined_call_operand.vmem [shape: f32[1,32], index: 14, kind: input, shape index: {}]
  %s15 = inlined_call_operand.vmem [shape: f32[1,32], index: 15, kind: input, shape index: {}]
  %s16 = inlined_call_operand.hbm [shape: f32[2,8,32], index: 16, kind: output, shape index: {}]
  %s17 = sld [smem:[#allocation0]]
  $region101: #{tpu_custom_call.1} parent=0
    _
  %s19 = ssub.s32 1, %s17
  %s20 = scalar_select 0, %s19, %s17
  $region1: #{tpu_custom_call.1} parent=0
    #allocation2 [shape = 'u8[1024]{0}', space=vmem, size = 0x400, scoped, tag = 'input window, operand 1']
    #allocation3 [shape = 's32[2]{0}', space=sflag, size = 0x8, scoped, tag = 'scoped memory for tpu_custom_call.1']
    #allocation4 [shape = 's32[2]{0}', space=sflag, size = 0x8, scoped, tag = 'scoped memory for tpu_custom_call.1']
    #allocation5 [shape = 'u8[8192]{0}', space=vmem, size = 0x2000, scoped, tag = 'output window, operand 0']
    %21 = vsyncpa [#allocation3], 0
    %s22 = scalar_lea.sflag [#allocation3], 1
    %23 = vsyncpa %s22, 0
    %24 = vsyncpa [#allocation4], 0
    %s25 = scalar_lea.sflag [#allocation4], 1
    %26 = vsyncpa %s25, 0
    loop: start=0, step=1, limit=4
    $region2: #{tpu_custom_call.1} parent=1 // loop_pre_header
      _
    $region3: #{tpu_custom_call.1} parent=1 // loop_header
      %s28 = sphi 0, %s32
      %p29 = scmp.ge.s32.totalorder %s28, 4
      %s35 = sphi 0, %s47
      %s36 = sphi 0, %s43
      %s37 = sphi 0, %s35
      %s38 = sphi 0, %s36
      %s39 = sphi 0, %s37
      %s40 = sphi 0, %s38
      %s50 = sphi 0, %s52
      %s53 = sphi 0, %s50
      %s54 = sphi 0, %s53
      %s70 = sphi 0, %s54
      %s76 = sphi 0, %s78
      %s79 = sphi 0, %s76
      %s80 = sphi 0, %s79
      %s96 = sphi 0, %s80
      %s100 = sphi 0, %s100
      %s102 = sphi 0, %s100
      %s103 = sphi 0, %s102
      %s117 = sphi 0, %s103
      %s121 = sphi 0, %s121
      %s123 = sphi 0, %s121
      %s124 = sphi 0, %s123
      %s138 = sphi 0, %s124
      %s142 = sphi 0, %s142
      %s144 = sphi 0, %s142
      %s145 = sphi 0, %s144
      %s159 = sphi 0, %s145
      %s163 = sphi 0, %s163
      %s165 = sphi 0, %s163
      %s166 = sphi 0, %s165
      %s180 = sphi 0, %s166
      %s184 = sphi 0, %s184
      %s186 = sphi 0, %s184
      %s187 = sphi 0, %s186
      %s201 = sphi 0, %s187
      %s205 = sphi 0, %s205
      %s207 = sphi 0, %s205
      %s208 = sphi 0, %s207
      %s222 = sphi 0, %s208
      %s226 = sphi 0, %s226
      %s228 = sphi 0, %s226
      %s229 = sphi 0, %s228
      %s243 = sphi 0, %s229
      %s247 = sphi 0, %s247
      %s249 = sphi 0, %s247
      %s250 = sphi 0, %s249
      %s264 = sphi 0, %s250
      %s268 = sphi 0, %s268
      %s270 = sphi 0, %s268
      %s271 = sphi 0, %s270
      %s285 = sphi 0, %s271
      %s289 = sphi 0, %s289
      %s291 = sphi 0, %s289
      %s292 = sphi 0, %s291
      %s306 = sphi 0, %s292
      %s310 = sphi 0, %s310
      %s312 = sphi 0, %s310
      %s313 = sphi 0, %s312
      %s327 = sphi 0, %s313
      %s331 = sphi 0, %s331
      %s333 = sphi 0, %s331
      %s334 = sphi 0, %s333
      %s348 = sphi 0, %s334
      %s352 = sphi 0, %s352
      %s354 = sphi 0, %s352
      %s355 = sphi 0, %s354
      %s369 = sphi 0, %s355
      %s373 = sphi 0, %s373
      %s375 = sphi 0, %s373
      %s376 = sphi 0, %s375
      %s390 = sphi 0, %s376
      %s398 = sphi 0, %s400
      %s401 = sphi 0, %s398
      %s402 = sphi 0, %s401
      %s418 = sphi 0, %s402
    $region4: #{tpu_custom_call.1} parent=1 // loop_header_branch
      %31 = sbr.rel (%p29) target = $region8
    $region5: #{tpu_custom_call.1} parent=1 // loop_body
      %s33 = ssub.s32 %s28, 1
      %s34 = ssub.s32 %s28, 2
      %s41 = sadd.s32 1, %s36
      %p42 = scmp.ge.s32.totalorder %s41, 1
      %s43 = scalar_select %p42, 0, %s41
      %s44 = sadd.s32 1, %s35
      %s45 = scalar_select %p42, %s44, %s35
      %p46 = scmp.ge.s32.totalorder %s45, 2
      %s47 = scalar_select %p46, 0, %s45
      %s48 = ssub.s32 %s35, %s47
      %p49 = scmp.eq.s32.totalorder %s48, 0
      %s51 = sadd.s32 %s50, 1
      %s52 = scalar_select %p49, %s50, %s51
      %p55 = pneg %p49
      %p56 = scmp.eq.s32.totalorder %s28, 1
      %p57 = por %p55, %p56
      %p58 = scmp.ne.s32.totalorder %s50, %s53
      %p59 = scmp.eq.s32.totalorder %s28, 0
      %p60 = por %p58, %p59
      %p61 = scmp.ne.s32.totalorder %s50, %s53
      %p62 = scmp.eq.s32.totalorder %s33, 1
      %p63 = por %p61, %p62
      %p64 = scmp.ne.s32.totalorder %s53, %s54
      %p65 = scmp.eq.s32.totalorder %s33, 0
      %p66 = por %p64, %p65
      %p67 = scmp.ne.s32.totalorder %s53, %s54
      %p68 = scmp.eq.s32.totalorder %s34, 1
      %p69 = por %p67, %p68
      %p71 = scmp.ne.s32.totalorder %s54, %s70
      %p72 = scmp.eq.s32.totalorder %s34, 0
      %p73 = por %p71, %p72
      %s74 = ssub.s32 %s35, %s47
      %p75 = scmp.eq.s32.totalorder %s74, 0
      %s77 = sadd.s32 %s76, 1
      %s78 = scalar_select %p75, %s76, %s77
      %p81 = pneg %p75
      %p82 = scmp.eq.s32.totalorder %s28, 1
      %p83 = por %p81, %p82
      %p84 = scmp.ne.s32.totalorder %s76, %s79
      %p85 = scmp.eq.s32.totalorder %s28, 0
      %p86 = por %p84, %p85
      %p87 = scmp.ne.s32.totalorder %s76, %s79
      %p88 = scmp.eq.s32.totalorder %s33, 1
      %p89 = por %p87, %p88
      %p90 = scmp.ne.s32.totalorder %s79, %s80
      %p91 = scmp.eq.s32.totalorder %s33, 0
      %p92 = por %p90, %p91
      %p93 = scmp.ne.s32.totalorder %s79, %s80
      %p94 = scmp.eq.s32.totalorder %s34, 1
      %p95 = por %p93, %p94
      %p97 = scmp.ne.s32.totalorder %s80, %s96
      %p98 = scmp.eq.s32.totalorder %s34, 0
      %p99 = por %p97, %p98
      %s101 = sadd.s32 %s100, 1
      %p104 = scmp.eq.s32.totalorder %s28, 1
      %p105 = scmp.ne.s32.totalorder %s100, %s102
      %p106 = scmp.eq.s32.totalorder %s28, 0
      %p107 = por %p105, %p106
      %p108 = scmp.ne.s32.totalorder %s100, %s102
      %p109 = scmp.eq.s32.totalorder %s33, 1
      %p110 = por %p108, %p109
      %p111 = scmp.ne.s32.totalorder %s102, %s103
      %p112 = scmp.eq.s32.totalorder %s33, 0
      %p113 = por %p111, %p112
      %p114 = scmp.ne.s32.totalorder %s102, %s103
      %p115 = scmp.eq.s32.totalorder %s34, 1
      %p116 = por %p114, %p115
      %p118 = scmp.ne.s32.totalorder %s103, %s117
      %p119 = scmp.eq.s32.totalorder %s34, 0
      %p120 = por %p118, %p119
      %s122 = sadd.s32 %s121, 1
      %p125 = scmp.eq.s32.totalorder %s28, 1
      %p126 = scmp.ne.s32.totalorder %s121, %s123
      %p127 = scmp.eq.s32.totalorder %s28, 0
      %p128 = por %p126, %p127
      %p129 = scmp.ne.s32.totalorder %s121, %s123
      %p130 = scmp.eq.s32.totalorder %s33, 1
      %p131 = por %p129, %p130
      %p132 = scmp.ne.s32.totalorder %s123, %s124
      %p133 = scmp.eq.s32.totalorder %s33, 0
      %p134 = por %p132, %p133
      %p135 = scmp.ne.s32.totalorder %s123, %s124
      %p136 = scmp.eq.s32.totalorder %s34, 1
      %p137 = por %p135, %p136
      %p139 = scmp.ne.s32.totalorder %s124, %s138
      %p140 = scmp.eq.s32.totalorder %s34, 0
      %p141 = por %p139, %p140
      %s143 = sadd.s32 %s142, 1
      %p146 = scmp.eq.s32.totalorder %s28, 1
      %p147 = scmp.ne.s32.totalorder %s142, %s144
      %p148 = scmp.eq.s32.totalorder %s28, 0
      %p149 = por %p147, %p148
      %p150 = scmp.ne.s32.totalorder %s142, %s144
      %p151 = scmp.eq.s32.totalorder %s33, 1
      %p152 = por %p150, %p151
      %p153 = scmp.ne.s32.totalorder %s144, %s145
      %p154 = scmp.eq.s32.totalorder %s33, 0
      %p155 = por %p153, %p154
      %p156 = scmp.ne.s32.totalorder %s144, %s145
      %p157 = scmp.eq.s32.totalorder %s34, 1
      %p158 = por %p156, %p157
      %p160 = scmp.ne.s32.totalorder %s145, %s159
      %p161 = scmp.eq.s32.totalorder %s34, 0
      %p162 = por %p160, %p161
      %s164 = sadd.s32 %s163, 1
      %p167 = scmp.eq.s32.totalorder %s28, 1
      %p168 = scmp.ne.s32.totalorder %s163, %s165
      %p169 = scmp.eq.s32.totalorder %s28, 0
      %p170 = por %p168, %p169
      %p171 = scmp.ne.s32.totalorder %s163, %s165
      %p172 = scmp.eq.s32.totalorder %s33, 1
      %p173 = por %p171, %p172
      %p174 = scmp.ne.s32.totalorder %s165, %s166
      %p175 = scmp.eq.s32.totalorder %s33, 0
      %p176 = por %p174, %p175
      %p177 = scmp.ne.s32.totalorder %s165, %s166
      %p178 = scmp.eq.s32.totalorder %s34, 1
      %p179 = por %p177, %p178
      %p181 = scmp.ne.s32.totalorder %s166, %s180
      %p182 = scmp.eq.s32.totalorder %s34, 0
      %p183 = por %p181, %p182
      %s185 = sadd.s32 %s184, 1
      %p188 = scmp.eq.s32.totalorder %s28, 1
      %p189 = scmp.ne.s32.totalorder %s184, %s186
      %p190 = scmp.eq.s32.totalorder %s28, 0
      %p191 = por %p189, %p190
      %p192 = scmp.ne.s32.totalorder %s184, %s186
      %p193 = scmp.eq.s32.totalorder %s33, 1
      %p194 = por %p192, %p193
      %p195 = scmp.ne.s32.totalorder %s186, %s187
      %p196 = scmp.eq.s32.totalorder %s33, 0
      %p197 = por %p195, %p196
      %p198 = scmp.ne.s32.totalorder %s186, %s187
      %p199 = scmp.eq.s32.totalorder %s34, 1
      %p200 = por %p198, %p199
      %p202 = scmp.ne.s32.totalorder %s187, %s201
      %p203 = scmp.eq.s32.totalorder %s34, 0
      %p204 = por %p202, %p203
      %s206 = sadd.s32 %s205, 1
      %p209 = scmp.eq.s32.totalorder %s28, 1
      %p210 = scmp.ne.s32.totalorder %s205, %s207
      %p211 = scmp.eq.s32.totalorder %s28, 0
      %p212 = por %p210, %p211
      %p213 = scmp.ne.s32.totalorder %s205, %s207
      %p214 = scmp.eq.s32.totalorder %s33, 1
      %p215 = por %p213, %p214
      %p216 = scmp.ne.s32.totalorder %s207, %s208
      %p217 = scmp.eq.s32.totalorder %s33, 0
      %p218 = por %p216, %p217
      %p219 = scmp.ne.s32.totalorder %s207, %s208
      %p220 = scmp.eq.s32.totalorder %s34, 1
      %p221 = por %p219, %p220
      %p223 = scmp.ne.s32.totalorder %s208, %s222
      %p224 = scmp.eq.s32.totalorder %s34, 0
      %p225 = por %p223, %p224
      %s227 = sadd.s32 %s226, 1
      %p230 = scmp.eq.s32.totalorder %s28, 1
      %p231 = scmp.ne.s32.totalorder %s226, %s228
      %p232 = scmp.eq.s32.totalorder %s28, 0
      %p233 = por %p231, %p232
      %p234 = scmp.ne.s32.totalorder %s226, %s228
      %p235 = scmp.eq.s32.totalorder %s33, 1
      %p236 = por %p234, %p235
      %p237 = scmp.ne.s32.totalorder %s228, %s229
      %p238 = scmp.eq.s32.totalorder %s33, 0
      %p239 = por %p237, %p238
      %p240 = scmp.ne.s32.totalorder %s228, %s229
      %p241 = scmp.eq.s32.totalorder %s34, 1
      %p242 = por %p240, %p241
      %p244 = scmp.ne.s32.totalorder %s229, %s243
      %p245 = scmp.eq.s32.totalorder %s34, 0
      %p246 = por %p244, %p245
      %s248 = sadd.s32 %s247, 1
      %p251 = scmp.eq.s32.totalorder %s28, 1
      %p252 = scmp.ne.s32.totalorder %s247, %s249
      %p253 = scmp.eq.s32.totalorder %s28, 0
      %p254 = por %p252, %p253
      %p255 = scmp.ne.s32.totalorder %s247, %s249
      %p256 = scmp.eq.s32.totalorder %s33, 1
      %p257 = por %p255, %p256
      %p258 = scmp.ne.s32.totalorder %s249, %s250
      %p259 = scmp.eq.s32.totalorder %s33, 0
      %p260 = por %p258, %p259
      %p261 = scmp.ne.s32.totalorder %s249, %s250
      %p262 = scmp.eq.s32.totalorder %s34, 1
      %p263 = por %p261, %p262
      %p265 = scmp.ne.s32.totalorder %s250, %s264
      %p266 = scmp.eq.s32.totalorder %s34, 0
      %p267 = por %p265, %p266
      %s269 = sadd.s32 %s268, 1
      %p272 = scmp.eq.s32.totalorder %s28, 1
      %p273 = scmp.ne.s32.totalorder %s268, %s270
      %p274 = scmp.eq.s32.totalorder %s28, 0
      %p275 = por %p273, %p274
      %p276 = scmp.ne.s32.totalorder %s268, %s270
      %p277 = scmp.eq.s32.totalorder %s33, 1
      %p278 = por %p276, %p277
      %p279 = scmp.ne.s32.totalorder %s270, %s271
      %p280 = scmp.eq.s32.totalorder %s33, 0
      %p281 = por %p279, %p280
      %p282 = scmp.ne.s32.totalorder %s270, %s271
      %p283 = scmp.eq.s32.totalorder %s34, 1
      %p284 = por %p282, %p283
      %p286 = scmp.ne.s32.totalorder %s271, %s285
      %p287 = scmp.eq.s32.totalorder %s34, 0
      %p288 = por %p286, %p287
      %s290 = sadd.s32 %s289, 1
      %p293 = scmp.eq.s32.totalorder %s28, 1
      %p294 = scmp.ne.s32.totalorder %s289, %s291
      %p295 = scmp.eq.s32.totalorder %s28, 0
      %p296 = por %p294, %p295
      %p297 = scmp.ne.s32.totalorder %s289, %s291
      %p298 = scmp.eq.s32.totalorder %s33, 1
      %p299 = por %p297, %p298
      %p300 = scmp.ne.s32.totalorder %s291, %s292
      %p301 = scmp.eq.s32.totalorder %s33, 0
      %p302 = por %p300, %p301
      %p303 = scmp.ne.s32.totalorder %s291, %s292
      %p304 = scmp.eq.s32.totalorder %s34, 1
      %p305 = por %p303, %p304
      %p307 = scmp.ne.s32.totalorder %s292, %s306
      %p308 = scmp.eq.s32.totalorder %s34, 0
      %p309 = por %p307, %p308
      %s311 = sadd.s32 %s310, 1
      %p314 = scmp.eq.s32.totalorder %s28, 1
      %p315 = scmp.ne.s32.totalorder %s310, %s312
      %p316 = scmp.eq.s32.totalorder %s28, 0
      %p317 = por %p315, %p316
      %p318 = scmp.ne.s32.totalorder %s310, %s312
      %p319 = scmp.eq.s32.totalorder %s33, 1
      %p320 = por %p318, %p319
      %p321 = scmp.ne.s32.totalorder %s312, %s313
      %p322 = scmp.eq.s32.totalorder %s33, 0
      %p323 = por %p321, %p322
      %p324 = scmp.ne.s32.totalorder %s312, %s313
      %p325 = scmp.eq.s32.totalorder %s34, 1
      %p326 = por %p324, %p325
      %p328 = scmp.ne.s32.totalorder %s313, %s327
      %p329 = scmp.eq.s32.totalorder %s34, 0
      %p330 = por %p328, %p329
      %s332 = sadd.s32 %s331, 1
      %p335 = scmp.eq.s32.totalorder %s28, 1
      %p336 = scmp.ne.s32.totalorder %s331, %s333
      %p337 = scmp.eq.s32.totalorder %s28, 0
      %p338 = por %p336, %p337
      %p339 = scmp.ne.s32.totalorder %s331, %s333
      %p340 = scmp.eq.s32.totalorder %s33, 1
      %p341 = por %p339, %p340
      %p342 = scmp.ne.s32.totalorder %s333, %s334
      %p343 = scmp.eq.s32.totalorder %s33, 0
      %p344 = por %p342, %p343
      %p345 = scmp.ne.s32.totalorder %s333, %s334
      %p346 = scmp.eq.s32.totalorder %s34, 1
      %p347 = por %p345, %p346
      %p349 = scmp.ne.s32.totalorder %s334, %s348
      %p350 = scmp.eq.s32.totalorder %s34, 0
      %p351 = por %p349, %p350
      %s353 = sadd.s32 %s352, 1
      %p356 = scmp.eq.s32.totalorder %s28, 1
      %p357 = scmp.ne.s32.totalorder %s352, %s354
      %p358 = scmp.eq.s32.totalorder %s28, 0
      %p359 = por %p357, %p358
      %p360 = scmp.ne.s32.totalorder %s352, %s354
      %p361 = scmp.eq.s32.totalorder %s33, 1
      %p362 = por %p360, %p361
      %p363 = scmp.ne.s32.totalorder %s354, %s355
      %p364 = scmp.eq.s32.totalorder %s33, 0
      %p365 = por %p363, %p364
      %p366 = scmp.ne.s32.totalorder %s354, %s355
      %p367 = scmp.eq.s32.totalorder %s34, 1
      %p368 = por %p366, %p367
      %p370 = scmp.ne.s32.totalorder %s355, %s369
      %p371 = scmp.eq.s32.totalorder %s34, 0
      %p372 = por %p370, %p371
      %s374 = sadd.s32 %s373, 1
      %p377 = scmp.eq.s32.totalorder %s28, 1
      %p378 = scmp.ne.s32.totalorder %s373, %s375
      %p379 = scmp.eq.s32.totalorder %s28, 0
      %p380 = por %p378, %p379
      %p381 = scmp.ne.s32.totalorder %s373, %s375
      %p382 = scmp.eq.s32.totalorder %s33, 1
      %p383 = por %p381, %p382
      %p384 = scmp.ne.s32.totalorder %s375, %s376
      %p385 = scmp.eq.s32.totalorder %s33, 0
      %p386 = por %p384, %p385
      %p387 = scmp.ne.s32.totalorder %s375, %s376
      %p388 = scmp.eq.s32.totalorder %s34, 1
      %p389 = por %p387, %p388
      %p391 = scmp.ne.s32.totalorder %s376, %s390
      %p392 = scmp.eq.s32.totalorder %s34, 0
      %p393 = por %p391, %p392
      %s394 = ssub.s32 %s35, %s47
      %s395 = ssub.s32 %s36, %s43
      %s396 = sor.u32 %s394, %s395
      %p397 = scmp.eq.s32.totalorder %s396, 0
      %s399 = sadd.s32 %s398, 1
      %s400 = scalar_select %p397, %s398, %s399
      %p403 = pneg %p397
      %p404 = scmp.eq.s32.totalorder %s28, 1
      %p405 = por %p403, %p404
      %p406 = scmp.ne.s32.totalorder %s398, %s401
      %p407 = scmp.eq.s32.totalorder %s28, 0
      %p408 = por %p406, %p407
      %p409 = scmp.ne.s32.totalorder %s398, %s401
      %p410 = scmp.eq.s32.totalorder %s33, 1
      %p411 = por %p409, %p410
      %p412 = scmp.ne.s32.totalorder %s401, %s402
      %p413 = scmp.eq.s32.totalorder %s33, 0
      %p414 = por %p412, %p413
      %p415 = scmp.ne.s32.totalorder %s401, %s402
      %p416 = scmp.eq.s32.totalorder %s34, 1
      %p417 = por %p415, %p416
      %p419 = scmp.ne.s32.totalorder %s402, %s418
      %p420 = scmp.eq.s32.totalorder %s34, 0
      %p421 = por %p419, %p420
      %p422 = scmp.le.s32.totalorder 1, %s28
      %p423 = scmp.lt.s32.totalorder %s28, 3
      %p424 = pnand %p422, %p423
      %p425 = pneg %p424
      // Predicated region
      $region9: #{tpu_custom_call.1} parent=5 // pred_check
        _
      $region10: #{tpu_custom_call.1} parent=5 // pred_check_branch
        %427 = sbr.rel (%p424) target = $region12
      $region11: #{tpu_custom_call.1} parent=5 // pred_region
        %s428 = ssub.s32 %s28, 1
        // Predicated region
        $region13: #{tpu_custom_call.1} parent=11 // pred_check
          %p429 = pneg %p113
        $region14: #{tpu_custom_call.1} parent=11 // pred_check_branch
          %431 = sbr.rel (%p429) target = $region16
        $region15: #{tpu_custom_call.1} parent=11 // pred_region
          _
        $region16: #{tpu_custom_call.1} parent=11 // pred_fallthru
          _
        // Predicated region
        $region17: #{tpu_custom_call.1} parent=11 // pred_check
          %p432 = pneg %p134
        $region18: #{tpu_custom_call.1} parent=11 // pred_check_branch
          %434 = sbr.rel (%p432) target = $region20
        $region19: #{tpu_custom_call.1} parent=11 // pred_region
          _
        $region20: #{tpu_custom_call.1} parent=11 // pred_fallthru
          _
        // Predicated region
        $region21: #{tpu_custom_call.1} parent=11 // pred_check
          %p435 = pneg %p155
        $region22: #{tpu_custom_call.1} parent=11 // pred_check_branch
          %437 = sbr.rel (%p435) target = $region24
        $region23: #{tpu_custom_call.1} parent=11 // pred_region
          _
        $region24: #{tpu_custom_call.1} parent=11 // pred_fallthru
          _
        // Predicated region
        $region25: #{tpu_custom_call.1} parent=11 // pred_check
          %p438 = pneg %p176
        $region26: #{tpu_custom_call.1} parent=11 // pred_check_branch
          %440 = sbr.rel (%p438) target = $region28
        $region27: #{tpu_custom_call.1} parent=11 // pred_region
          _
        $region28: #{tpu_custom_call.1} parent=11 // pred_fallthru
          _
        // Predicated region
        $region29: #{tpu_custom_call.1} parent=11 // pred_check
          %p441 = pneg %p197
        $region30: #{tpu_custom_call.1} parent=11 // pred_check_branch
          %443 = sbr.rel (%p441) target = $region32
        $region31: #{tpu_custom_call.1} parent=11 // pred_region
          _
        $region32: #{tpu_custom_call.1} parent=11 // pred_fallthru
          _
        // Predicated region
        $region33: #{tpu_custom_call.1} parent=11 // pred_check
          %p444 = pneg %p218
        $region34: #{tpu_custom_call.1} parent=11 // pred_check_branch
          %446 = sbr.rel (%p444) target = $region36
        $region35: #{tpu_custom_call.1} parent=11 // pred_region
          _
        $region36: #{tpu_custom_call.1} parent=11 // pred_fallthru
          _
        // Predicated region
        $region37: #{tpu_custom_call.1} parent=11 // pred_check
          %p447 = pneg %p239
        $region38: #{tpu_custom_call.1} parent=11 // pred_check_branch
          %449 = sbr.rel (%p447) target = $region40
        $region39: #{tpu_custom_call.1} parent=11 // pred_region
          _
        $region40: #{tpu_custom_call.1} parent=11 // pred_fallthru
          _
        // Predicated region
        $region41: #{tpu_custom_call.1} parent=11 // pred_check
          %p450 = pneg %p260
        $region42: #{tpu_custom_call.1} parent=11 // pred_check_branch
          %452 = sbr.rel (%p450) target = $region44
        $region43: #{tpu_custom_call.1} parent=11 // pred_region
          _
        $region44: #{tpu_custom_call.1} parent=11 // pred_fallthru
          _
        // Predicated region
        $region45: #{tpu_custom_call.1} parent=11 // pred_check
          %p453 = pneg %p281
        $region46: #{tpu_custom_call.1} parent=11 // pred_check_branch
          %455 = sbr.rel (%p453) target = $region48
        $region47: #{tpu_custom_call.1} parent=11 // pred_region
          _
        $region48: #{tpu_custom_call.1} parent=11 // pred_fallthru
          _
        // Predicated region
        $region49: #{tpu_custom_call.1} parent=11 // pred_check
          %p456 = pneg %p302
        $region50: #{tpu_custom_call.1} parent=11 // pred_check_branch
          %458 = sbr.rel (%p456) target = $region52
        $region51: #{tpu_custom_call.1} parent=11 // pred_region
          _
        $region52: #{tpu_custom_call.1} parent=11 // pred_fallthru
          _
        // Predicated region
        $region53: #{tpu_custom_call.1} parent=11 // pred_check
          %p459 = pneg %p323
        $region54: #{tpu_custom_call.1} parent=11 // pred_check_branch
          %461 = sbr.rel (%p459) target = $region56
        $region55: #{tpu_custom_call.1} parent=11 // pred_region
          _
        $region56: #{tpu_custom_call.1} parent=11 // pred_fallthru
          _
        // Predicated region
        $region57: #{tpu_custom_call.1} parent=11 // pred_check
          %p462 = pneg %p344
        $region58: #{tpu_custom_call.1} parent=11 // pred_check_branch
          %464 = sbr.rel (%p462) target = $region60
        $region59: #{tpu_custom_call.1} parent=11 // pred_region
          _
        $region60: #{tpu_custom_call.1} parent=11 // pred_fallthru
          _
        // Predicated region
        $region61: #{tpu_custom_call.1} parent=11 // pred_check
          %p465 = pneg %p365
        $region62: #{tpu_custom_call.1} parent=11 // pred_check_branch
          %467 = sbr.rel (%p465) target = $region64
        $region63: #{tpu_custom_call.1} parent=11 // pred_region
          _
        $region64: #{tpu_custom_call.1} parent=11 // pred_fallthru
          _
        // Predicated region
        $region65: #{tpu_custom_call.1} parent=11 // pred_check
          %p468 = pneg %p386
        $region66: #{tpu_custom_call.1} parent=11 // pred_check_branch
          %470 = sbr.rel (%p468) target = $region68
        $region67: #{tpu_custom_call.1} parent=11 // pred_region
          _
        $region68: #{tpu_custom_call.1} parent=11 // pred_fallthru
          _
      $region12: #{tpu_custom_call.1} parent=5 // pred_fallthru
        _
      %p471 = scmp.lt.s32.totalorder %s28, 2
      // Predicated region
      $region69: #{tpu_custom_call.1} parent=5 // pred_check
        %p472 = pneg %p471
      $region70: #{tpu_custom_call.1} parent=5 // pred_check_branch
        %474 = sbr.rel (%p472) target = $region72
      $region71: #{tpu_custom_call.1} parent=5 // pred_region
        // Predicated region
        $region73: #{tpu_custom_call.1} parent=71 // pred_check
          %p475 = pneg %p60
        $region74: #{tpu_custom_call.1} parent=71 // pred_check_branch
          %477 = sbr.rel (%p475) target = $region76
        $region75: #{tpu_custom_call.1} parent=71 // pred_region
          %p478 = scmp.lt.s32.totalorder %s35, 1
          %s479 = scalar_select %p478, %s35, 1
          %s480 = smul.addr %s479, 8
          %s481 = scalar_lea.vmem %s0, %s480
        $region76: #{tpu_custom_call.1} parent=71 // pred_fallthru
          _
        // Predicated region
        $region77: #{tpu_custom_call.1} parent=71 // pred_check
          %p482 = pneg %p86
        $region78: #{tpu_custom_call.1} parent=71 // pred_check_branch
          %484 = sbr.rel (%p482) target = $region80
        $region79: #{tpu_custom_call.1} parent=71 // pred_region
          %s485 = sand.u32 %s76, 1
          %s486 = scalar_lea.sflag [#allocation3], %s485
          %s487 = sand.u32 %s76, 1
          %s488 = scalar_lea.vmem [#allocation2], %s487
          %490 = vsyncadd %s486, 0
          %s491 = scalar_lea.hbm %s1, %s35
          %s493 = sshll.u32 %s491, 4
          %s494 = int_to_ptr.hbm [resolvable:$true] %s493
          %s495 = sshll.u32 %s488, 4
          %s496 = int_to_ptr.vmem [resolvable:$true] %s495
          %498 = dma.hbm_to_vmem [thread:$0]  %s494, 16, %s496, %s486
        $region80: #{tpu_custom_call.1} parent=71 // pred_fallthru
          _
      $region72: #{tpu_custom_call.1} parent=5 // pred_fallthru
        _
      %p499 = scmp.le.s32.totalorder 1, %s28
      %p500 = scmp.lt.s32.totalorder %s28, 3
      %p501 = pnand %p499, %p500
      %p502 = pneg %p501
      // Predicated region
      $region81: #{tpu_custom_call.1} parent=5 // pred_check
        _
      $region82: #{tpu_custom_call.1} parent=5 // pred_check_branch
        %504 = sbr.rel (%p501) target = $region84
      $region83: #{tpu_custom_call.1} parent=5 // pred_region
        %s505 = ssub.s32 %s28, 1
        %s506 = sand.u32 %s79, 1
        %s507 = scalar_lea.sflag [#allocation3], %s506
        %s508 = sand.u32 %s79, 1
        %s509 = scalar_lea.vmem [#allocation2], %s508
        // Predicated region
        $region85: #{tpu_custom_call.1} parent=83 // pred_check
          %p510 = pneg %p92
        $region86: #{tpu_custom_call.1} parent=83 // pred_check_branch
          %512 = sbr.rel (%p510) target = $region88
        $region87: #{tpu_custom_call.1} parent=83 // pred_region
          %514 = dma.done %s507, 16
        $region88: #{tpu_custom_call.1} parent=83 // pred_fallthru
          _
        %p515 = scmp.lt.s32.totalorder %s37, 1
        %s516 = scalar_select %p515, %s37, 1
        %s517 = smul.addr %s516, 8
        %s518 = scalar_lea.vmem %s0, %s517
        %p519 = pneg %p66
        %p520 = pneg %p63
        %s521 = sand.u32 %s79, 1
        %s522 = scalar_lea.sflag [#allocation3], %s521
        %s523 = sand.u32 %s79, 1
        %s524 = scalar_lea.vmem [#allocation2], %s523
        %p525 = pneg %p92
        %p526 = pneg %p89
        %p527 = pneg %p113
        %p528 = pneg %p110
        %p529 = pneg %p134
        %p530 = pneg %p131
        %p531 = pneg %p155
        %p532 = pneg %p152
        %p533 = pneg %p176
        %p534 = pneg %p173
        %p535 = pneg %p197
        %p536 = pneg %p194
        %p537 = pneg %p218
        %p538 = pneg %p215
        %p539 = pneg %p239
        %p540 = pneg %p236
        %p541 = pneg %p260
        %p542 = pneg %p257
        %p543 = pneg %p281
        %p544 = pneg %p278
        %p545 = pneg %p302
        %p546 = pneg %p299
        %p547 = pneg %p323
        %p548 = pneg %p320
        %p549 = pneg %p344
        %p550 = pneg %p341
        %p551 = pneg %p365
        %p552 = pneg %p362
        %p553 = pneg %p386
        %p554 = pneg %p383
        %p555 = pneg %p414
        %p556 = pneg %p411
        %s557 = sand.u32 %s401, 1
        %s558 = scalar_lea.sflag [#allocation4], %s557
        %s559 = sand.u32 %s401, 1
        %s560 = smul.addr %s559, 8
        %s561 = scalar_lea.vmem [#allocation5], %s560
        %p562 = scmp.lt.s32.totalorder %s37, 1
        %s563 = scalar_select %p562, %s37, 1
        %s564 = smul.addr %s563, 8
        %s565 = scalar_lea.vmem %s0, %s564
        %v567 = vld [vmem:[%s565] sm:$0xff]
        %v568 = vld [vmem:[%s509] sm:$0x1]
        %v569 = vld [vmem:[%s8] sm:$0x1]
        %v570 = vld [vmem:[%s9] sm:$0x1]
        %vm571 = vcmask 261120
        %v572 = vsel %vm571, %v567, 0.0
        %573 = vadd.xlane.f32.xlu0 %v572
        %v574 = vpop.xlane.xlu0 %573
        %v575 = vrcp.pop 32.0
        %v576 = vmul.f32 32.0, %v575
        %v577 = vsub.f32 1.0, %v576
        %v578 = vmul.f32 %v575, %v577
        %v579 = vadd.f32 %v575, %v578
        %vm580 = vweird.f32 %v575
        %v581 = vsel %vm580, %v575, %v579
        %v582 = vmul.f32 %v574, %v581
        %v583 = vsub.f32 %v567, %v582
        %v584 = vmul.f32 %v583, %v583
        %v585 = vsel %vm571, %v584, 0.0
        %586 = vadd.xlane.f32.xlu0 %v585
        %v587 = vpop.xlane.xlu0 %586
        %v588 = vmul.f32 %v587, %v581
        %v589 = vrsqrt.pop %v588
        %v590 = vmul.f32 %v589, %v588
        %v591 = vmul.f32 %v590, %v589
        %v592 = vmul.f32 0.5, %v591
        %v593 = vsub.f32 1.5, %v592
        %v594 = vmul.f32 %v589, %v593
        %v595 = vmul.f32 %v588, %v594
        %vm596 = vcmp.eq.f32.partialorder %v588, inf
        %v597 = vsel %vm596, %v588, %v595
        %vm598 = vcmp.eq.f32.partialorder %v588, 0.0
        %v599 = vand.u32 %v588, 2147483648
        %v600 = vsel %vm598, %v599, %v597
        %v602 = vperm.slane %v569, 0
        %v604 = vmul.f32 %v602, %v583
        %v605 = vadd.f32 %v600, 1e-06
        %v606 = vrcp.pop %v605
        %v607 = vmul.f32 %v605, %v606
        %v608 = vsub.f32 1.0, %v607
        %v609 = vmul.f32 %v606, %v608
        %v610 = vadd.f32 %v606, %v609
        %vm611 = vweird.f32 %v605
        %vm612 = vweird.f32 %v606
        %vm613 = vmor %vm611, %vm612
        %v614 = vsel %vm613, %v606, %v610
        %v615 = vand.u32 2147483647, %v605
        %vm616 = vcmp.eq.f32.partialorder %v615, 8.507059e+37
        %v617 = vand.u32 %v605, 2147483648
        %v618 = vor.u32 1.1754944e-38, %v617
        %v619 = vsel %vm616, %v618, %v614
        %v620 = vmul.f32 %v604, %v619
        %v622 = vperm.slane %v570, 0
        %v624 = vadd.f32 %v620, %v622
        %v625 = vpack.c.bf16 %v624, %v624
        %v626 = vld [vmem:[%s2] sm:$0xf]
        %v627 = vld [vmem:[%s2 + $0x4] sm:$0xf]
        %v628 = vld [vmem:[%s2 + $0x8] sm:$0xf]
        %v629 = vld [vmem:[%s2 + $0xc] sm:$0xf]
        %v630 = vld [vmem:[%s3] sm:$0x1]
        %v632 = vperm.slane %v630, 0
        %v638 = vunpack.c.l.b16 %v626
        %v639 = vunpack.c.l.b16 %v627
        %v640 = vunpack.c.l.b16 %v628
        %v641 = vunpack.c.l.b16 %v629
        %v642 = vpack.c.b16 %v639, %v638
        %v643 = vpack.c.b16 %v641, %v640
        %v647 = vsel %vm571, %v625, 0
        %649 = vmatpush.bf16.msra.mxu0 0
        %650 = vmatpush.bf16.msra.mxu0 0
        %651 = vmatpush.bf16.msra.mxu0 0
        %652 = vmatpush.bf16.msra.mxu0 0
        %653 = vmatpush.bf16.msra.mxu0 0
        %654 = vmatpush.bf16.msra.mxu0 0
        %655 = vmatpush.bf16.msra.mxu0 %v643
        %656 = vmatpush.bf16.msra.mxu0 %v642
        %657 = vmatmul.bf16.gmra.mxu0 %v647
        %v658 = vpop.f32.mrf.mxu0
        %v659 = vadd.f32 %v632, %v658
        %v660 = vpop.f32.mrf.mxu0
        %661 = vdwg.mxu0
        %v662 = vld [vmem:[%s4] sm:$0xf]
        %v663 = vld [vmem:[%s4 + $0x4] sm:$0xf]
        %v664 = vld [vmem:[%s4 + $0x8] sm:$0xf]
        %v665 = vld [vmem:[%s4 + $0xc] sm:$0xf]
        %v666 = vld [vmem:[%s5] sm:$0x1]
        %v668 = vperm.slane %v666, 0
        %v674 = vunpack.c.l.b16 %v662
        %v675 = vunpack.c.l.b16 %v663
        %v676 = vunpack.c.l.b16 %v664
        %v677 = vunpack.c.l.b16 %v665
        %v678 = vpack.c.b16 %v675, %v674
        %v679 = vpack.c.b16 %v677, %v676
        %682 = vmatpush.bf16.msra.mxu0 0
        %683 = vmatpush.bf16.msra.mxu0 0
        %684 = vmatpush.bf16.msra.mxu0 0
        %685 = vmatpush.bf16.msra.mxu0 0
        %686 = vmatpush.bf16.msra.mxu0 0
        %687 = vmatpush.bf16.msra.mxu0 0
        %688 = vmatpush.bf16.msra.mxu0 %v679
        %689 = vmatpush.bf16.msra.mxu0 %v678
        %690 = vmatmul.bf16.gmra.mxu0 %v647
        %v691 = vpop.f32.mrf.mxu0
        %v692 = vadd.f32 %v668, %v691
        %v693 = vpop.f32.mrf.mxu0
        %694 = vdwg.mxu0
        %v695 = vpack.c.bf16 %v659, %v659
        %v696 = vpack.c.bf16 %v692, %v692
        %v698 = vperm.slane %v568, 0
        %vm700 = vcmask 64512
        %v702 = vsel %vm700, %v695, 0
        %v705 = vsel %vm700, %v696, 0
        %707 = vmatpush.bf16.xpose.msra.mxu0 0
        %708 = vmatpush.bf16.xpose.msra.mxu0 0
        %709 = vmatpush.bf16.xpose.msra.mxu0 0
        %710 = vmatpush.bf16.xpose.msra.mxu0 0
        %711 = vmatpush.bf16.xpose.msra.mxu0 0
        %712 = vmatpush.bf16.xpose.msra.mxu0 0
        %713 = vmatpush.bf16.xpose.msra.mxu0 0
        %714 = vmatpush.bf16.xpose.msra.mxu0 %v705
        %715 = vmatmul.bf16.gmra.mxu0 %v702
        %v716 = vpop.f32.mrf.mxu0
        %v717 = vadd.f32 %v698, %v716
        %v718 = vpop.f32.mrf.mxu0
        %719 = vdwg.mxu0
        %v720 = vsel %vm700, %v717, -inf
        %721 = vmax.xlane.f32.xlu0 %v720
        %v722 = vpop.xlane.xlu0 %721
        %v723 = vsub.f32 %v717, %v722
        %v724 = vmul.f32 %v723, 1.442695
        %v725 = vpow.pop %v724
        %v726 = vsel %vm700, %v725, 0.0
        %727 = vadd.xlane.f32.xlu0 %v726
        %v728 = vpop.xlane.xlu0 %727
        %v729 = vrcp.pop %v728
        %v730 = vpack.c.bf16 %v725, %v725
        %v732 = vunpack.c.l.b16 %v696
        %v733 = vpack.c.b16 %v732, %v732
        %734 = vrot.lane.b32.xlu0 %v733, 96
        %v735 = vpop.permute.xlu0 %734
        %v737 = vsel %vm700, %v730, 0
        %vm739 = vcmask 1043456
        %v741 = vsel %vm739, %v735, 0
        %743 = vmatpush.bf16.msra.mxu0 0
        %744 = vmatpush.bf16.msra.mxu0 0
        %745 = vmatpush.bf16.msra.mxu0 0
        %746 = vmatpush.bf16.msra.mxu0 0
        %747 = vmatpush.bf16.msra.mxu0 0
        %748 = vmatpush.bf16.msra.mxu0 0
        %749 = vmatpush.bf16.msra.mxu0 0
        %750 = vmatpush.bf16.msra.mxu0 %v741
        %751 = vmatmul.bf16.gmra.mxu0 %v737
        %v752 = vpop.f32.mrf.mxu0
        %v753 = vadd.f32 0.0, %v752
        %v754 = vpop.f32.mrf.mxu0
        %755 = vdwg.mxu0
        %v756 = vmul.f32 %v753, %v729
        %v758 = vunpack.c.l.b16 %v695
        %v759 = vpack.c.b16 %v758, %v758
        %760 = vrot.lane.b32.xlu0 %v759, 120
        %v761 = vpop.permute.xlu0 %760
        %762 = vrot.lane.b32.xlu0 %v733, 120
        %v763 = vpop.permute.xlu0 %762
        %v765 = vsel %vm700, %v761, 0
        %v768 = vsel %vm700, %v763, 0
        %770 = vmatpush.bf16.xpose.msra.mxu0 0
        %771 = vmatpush.bf16.xpose.msra.mxu0 0
        %772 = vmatpush.bf16.xpose.msra.mxu0 0
        %773 = vmatpush.bf16.xpose.msra.mxu0 0
        %774 = vmatpush.bf16.xpose.msra.mxu0 0
        %775 = vmatpush.bf16.xpose.msra.mxu0 0
        %776 = vmatpush.bf16.xpose.msra.mxu0 0
        %777 = vmatpush.bf16.xpose.msra.mxu0 %v768
        %778 = vmatmul.bf16.gmra.mxu0 %v765
        %v779 = vpop.f32.mrf.mxu0
        %v780 = vadd.f32 %v698, %v779
        %v781 = vpop.f32.mrf.mxu0
        %782 = vdwg.mxu0
        %v783 = vsel %vm700, %v780, -inf
        %784 = vmax.xlane.f32.xlu0 %v783
        %v785 = vpop.xlane.xlu0 %784
        %v786 = vsub.f32 %v780, %v785
        %v787 = vmul.f32 %v786, 1.442695
        %v788 = vpow.pop %v787
        %v789 = vsel %vm700, %v788, 0.0
        %790 = vadd.xlane.f32.xlu0 %v789
        %v791 = vpop.xlane.xlu0 %790
        %v792 = vrcp.pop %v791
        %v793 = vpack.c.bf16 %v788, %v788
        %794 = vrot.lane.b32.xlu0 %v733, 88
        %v795 = vpop.permute.xlu0 %794
        %v797 = vsel %vm700, %v793, 0
        %v800 = vsel %vm739, %v795, 0
        %802 = vmatpush.bf16.msra.mxu0 0
        %803 = vmatpush.bf16.msra.mxu0 0
        %804 = vmatpush.bf16.msra.mxu0 0
        %805 = vmatpush.bf16.msra.mxu0 0
        %806 = vmatpush.bf16.msra.mxu0 0
        %807 = vmatpush.bf16.msra.mxu0 0
        %808 = vmatpush.bf16.msra.mxu0 0
        %809 = vmatpush.bf16.msra.mxu0 %v800
        %810 = vmatmul.bf16.gmra.mxu0 %v797
        %v811 = vpop.f32.mrf.mxu0
        %v812 = vadd.f32 0.0, %v811
        %v813 = vpop.f32.mrf.mxu0
        %814 = vdwg.mxu0
        %v815 = vmul.f32 %v812, %v792
        %816 = vrot.lane.b32.xlu0 %v759, 112
        %v817 = vpop.permute.xlu0 %816
        %818 = vrot.lane.b32.xlu0 %v733, 112
        %v819 = vpop.permute.xlu0 %818
        %v821 = vsel %vm700, %v817, 0
        %v824 = vsel %vm700, %v819, 0
        %826 = vmatpush.bf16.xpose.msra.mxu0 0
        %827 = vmatpush.bf16.xpose.msra.mxu0 0
        %828 = vmatpush.bf16.xpose.msra.mxu0 0
        %829 = vmatpush.bf16.xpose.msra.mxu0 0
        %830 = vmatpush.bf16.xpose.msra.mxu0 0
        %831 = vmatpush.bf16.xpose.msra.mxu0 0
        %832 = vmatpush.bf16.xpose.msra.mxu0 0
        %833 = vmatpush.bf16.xpose.msra.mxu0 %v824
        %834 = vmatmul.bf16.gmra.mxu0 %v821
        %v835 = vpop.f32.mrf.mxu0
        %v836 = vadd.f32 %v698, %v835
        %v837 = vpop.f32.mrf.mxu0
        %838 = vdwg.mxu0
        %v839 = vsel %vm700, %v836, -inf
        %840 = vmax.xlane.f32.xlu0 %v839
        %v841 = vpop.xlane.xlu0 %840
        %v842 = vsub.f32 %v836, %v841
        %v843 = vmul.f32 %v842, 1.442695
        %v844 = vpow.pop %v843
        %v845 = vsel %vm700, %v844, 0.0
        %846 = vadd.xlane.f32.xlu0 %v845
        %v847 = vpop.xlane.xlu0 %846
        %v848 = vrcp.pop %v847
        %v849 = vpack.c.bf16 %v844, %v844
        %850 = vrot.lane.b32.xlu0 %v733, 80
        %v851 = vpop.permute.xlu0 %850
        %v853 = vsel %vm700, %v849, 0
        %v856 = vsel %vm739, %v851, 0
        %858 = vmatpush.bf16.msra.mxu0 0
        %859 = vmatpush.bf16.msra.mxu0 0
        %860 = vmatpush.bf16.msra.mxu0 0
        %861 = vmatpush.bf16.msra.mxu0 0
        %862 = vmatpush.bf16.msra.mxu0 0
        %863 = vmatpush.bf16.msra.mxu0 0
        %864 = vmatpush.bf16.msra.mxu0 0
        %865 = vmatpush.bf16.msra.mxu0 %v856
        %866 = vmatmul.bf16.gmra.mxu0 %v853
        %v867 = vpop.f32.mrf.mxu0
        %v868 = vadd.f32 0.0, %v867
        %v869 = vpop.f32.mrf.mxu0
        %870 = vdwg.mxu0
        %v871 = vmul.f32 %v868, %v848
        %872 = vrot.lane.b32.xlu0 %v759, 104
        %v873 = vpop.permute.xlu0 %872
        %874 = vrot.lane.b32.xlu0 %v733, 104
        %v875 = vpop.permute.xlu0 %874
        %v877 = vsel %vm700, %v873, 0
        %v880 = vsel %vm700, %v875, 0
        %882 = vmatpush.bf16.xpose.msra.mxu0 0
        %883 = vmatpush.bf16.xpose.msra.mxu0 0
        %884 = vmatpush.bf16.xpose.msra.mxu0 0
        %885 = vmatpush.bf16.xpose.msra.mxu0 0
        %886 = vmatpush.bf16.xpose.msra.mxu0 0
        %887 = vmatpush.bf16.xpose.msra.mxu0 0
        %888 = vmatpush.bf16.xpose.msra.mxu0 0
        %889 = vmatpush.bf16.xpose.msra.mxu0 %v880
        %890 = vmatmul.bf16.gmra.mxu0 %v877
        %v891 = vpop.f32.mrf.mxu0
        %v892 = vadd.f32 %v698, %v891
        %v893 = vpop.f32.mrf.mxu0
        %894 = vdwg.mxu0
        %v895 = vsel %vm700, %v892, -inf
        %896 = vmax.xlane.f32.xlu0 %v895
        %v897 = vpop.xlane.xlu0 %896
        %v898 = vsub.f32 %v892, %v897
        %v899 = vmul.f32 %v898, 1.442695
        %v900 = vpow.pop %v899
        %v901 = vsel %vm700, %v900, 0.0
        %902 = vadd.xlane.f32.xlu0 %v901
        %v903 = vpop.xlane.xlu0 %902
        %v904 = vrcp.pop %v903
        %v905 = vpack.c.bf16 %v900, %v900
        %906 = vrot.lane.b32.xlu0 %v733, 72
        %v907 = vpop.permute.xlu0 %906
        %v909 = vsel %vm700, %v905, 0
        %v912 = vsel %vm739, %v907, 0
        %914 = vmatpush.bf16.msra.mxu0 0
        %915 = vmatpush.bf16.msra.mxu0 0
        %916 = vmatpush.bf16.msra.mxu0 0
        %917 = vmatpush.bf16.msra.mxu0 0
        %918 = vmatpush.bf16.msra.mxu0 0
        %919 = vmatpush.bf16.msra.mxu0 0
        %920 = vmatpush.bf16.msra.mxu0 0
        %921 = vmatpush.bf16.msra.mxu0 %v912
        %922 = vmatmul.bf16.gmra.mxu0 %v909
        %v923 = vpop.f32.mrf.mxu0
        %v924 = vadd.f32 0.0, %v923
        %v925 = vpop.f32.mrf.mxu0
        %926 = vdwg.mxu0
        %v927 = vmul.f32 %v924, %v904
        %929 = vrot.lane.b32.xlu0 %v815, 8
        %v930 = vpop.permute.xlu0 %929
        %933 = vrot.lane.b32.xlu0 %v871, 16
        %v934 = vpop.permute.xlu0 %933
        %937 = vrot.lane.b32.xlu0 %v927, 24
        %v938 = vpop.permute.xlu0 %937
        %v940 = vsel %vm700, %v756, %v930
        %vm941 = vcmask 130048
        %v942 = vsel %vm941, %v940, %v934
        %vm943 = vcmask 195584
        %v944 = vsel %vm943, %v942, %v938
        %v945 = vpack.c.bf16 %v944, %v944
        %v946 = vld [vmem:[%s6] sm:$0xf]
        %v947 = vld [vmem:[%s6 + $0x4] sm:$0xf]
        %v948 = vld [vmem:[%s6 + $0x8] sm:$0xf]
        %v949 = vld [vmem:[%s6 + $0xc] sm:$0xf]
        %v950 = vld [vmem:[%s7] sm:$0x1]
        %v952 = vperm.slane %v950, 0
        %v958 = vunpack.c.l.b16 %v946
        %v959 = vunpack.c.l.b16 %v947
        %v960 = vunpack.c.l.b16 %v948
        %v961 = vunpack.c.l.b16 %v949
        %v962 = vpack.c.b16 %v959, %v958
        %v963 = vpack.c.b16 %v961, %v960
        %v967 = vsel %vm571, %v945, 0
        %969 = vmatpush.bf16.msra.mxu0 0
        %970 = vmatpush.bf16.msra.mxu0 0
        %971 = vmatpush.bf16.msra.mxu0 0
        %972 = vmatpush.bf16.msra.mxu0 0
        %973 = vmatpush.bf16.msra.mxu0 0
        %974 = vmatpush.bf16.msra.mxu0 0
        %975 = vmatpush.bf16.msra.mxu0 %v963
        %976 = vmatpush.bf16.msra.mxu0 %v962
        %977 = vmatmul.bf16.gmra.mxu0 %v967
        %v978 = vpop.f32.mrf.mxu0
        %v979 = vadd.f32 %v952, %v978
        %v980 = vpop.f32.mrf.mxu0
        %981 = vdwg.mxu0
        %v982 = vadd.f32 %v567, %v979
        %v983 = vld [vmem:[%s14] sm:$0x1]
        %v984 = vld [vmem:[%s15] sm:$0x1]
        %v985 = vsel %vm571, %v982, 0.0
        %986 = vadd.xlane.f32.xlu0 %v985
        %v987 = vpop.xlane.xlu0 %986
        %v988 = vmul.f32 %v987, %v581
        %v989 = vsub.f32 %v982, %v988
        %v990 = vmul.f32 %v989, %v989
        %v991 = vsel %vm571, %v990, 0.0
        %992 = vadd.xlane.f32.xlu0 %v991
        %v993 = vpop.xlane.xlu0 %992
        %v994 = vmul.f32 %v993, %v581
        %v995 = vrsqrt.pop %v994
        %v996 = vmul.f32 %v995, %v994
        %v997 = vmul.f32 %v996, %v995
        %v998 = vmul.f32 0.5, %v997
        %v999 = vsub.f32 1.5, %v998
        %v1000 = vmul.f32 %v995, %v999
        %v1001 = vmul.f32 %v994, %v1000
        %vm1002 = vcmp.eq.f32.partialorder %v994, inf
        %v1003 = vsel %vm1002, %v994, %v1001
        %vm1004 = vcmp.eq.f32.partialorder %v994, 0.0
        %v1005 = vand.u32 %v994, 2147483648
        %v1006 = vsel %vm1004, %v1005, %v1003
        %v1008 = vperm.slane %v983, 0
        %v1010 = vmul.f32 %v1008, %v989
        %v1011 = vadd.f32 %v1006, 1e-06
        %v1012 = vrcp.pop %v1011
        %v1013 = vmul.f32 %v1011, %v1012
        %v1014 = vsub.f32 1.0, %v1013
        %v1015 = vmul.f32 %v1012, %v1014
        %v1016 = vadd.f32 %v1012, %v1015
        %vm1017 = vweird.f32 %v1011
        %vm1018 = vweird.f32 %v1012
        %vm1019 = vmor %vm1017, %vm1018
        %v1020 = vsel %vm1019, %v1012, %v1016
        %v1021 = vand.u32 2147483647, %v1011
        %vm1022 = vcmp.eq.f32.partialorder %v1021, 8.507059e+37
        %v1023 = vand.u32 %v1011, 2147483648
        %v1024 = vor.u32 1.1754944e-38, %v1023
        %v1025 = vsel %vm1022, %v1024, %v1020
        %v1026 = vmul.f32 %v1010, %v1025
        %v1028 = vperm.slane %v984, 0
        %v1030 = vadd.f32 %v1026, %v1028
        %v1031 = vpack.c.bf16 %v1030, %v1030
        %v1032 = vld [vmem:[%s10] sm:$0xf]
        %v1033 = vld [vmem:[%s10 + $0x4] sm:$0xf]
        %v1034 = vld [vmem:[%s10 + $0x8] sm:$0xf]
        %v1035 = vld [vmem:[%s10 + $0xc] sm:$0xf]
        %v1036 = vld [vmem:[%s11] sm:$0x1]
        %v1038 = vperm.slane %v1036, 0
        %v1044 = vunpack.c.l.b16 %v1032
        %v1045 = vunpack.c.l.b16 %v1033
        %v1046 = vunpack.c.l.b16 %v1034
        %v1047 = vunpack.c.l.b16 %v1035
        %v1048 = vpack.c.b16 %v1045, %v1044
        %v1049 = vpack.c.b16 %v1047, %v1046
        %v1053 = vsel %vm571, %v1031, 0
        %1055 = vmatpush.bf16.msra.mxu0 0
        %1056 = vmatpush.bf16.msra.mxu0 0
        %1057 = vmatpush.bf16.msra.mxu0 0
        %1058 = vmatpush.bf16.msra.mxu0 0
        %1059 = vmatpush.bf16.msra.mxu0 0
        %1060 = vmatpush.bf16.msra.mxu0 0
        %1061 = vmatpush.bf16.msra.mxu0 %v1049
        %1062 = vmatpush.bf16.msra.mxu0 %v1048
        %1063 = vmatmul.bf16.gmra.mxu0 %v1053
        %v1064 = vpop.f32.mrf.mxu0
        %v1065 = vadd.f32 %v1038, %v1064
        %v1066 = vpop.f32.mrf.mxu0
        %1067 = vdwg.mxu0
        %v1068 = vmul.f32 %v1065, %v1065
        %v1069 = vmul.f32 %v1068, %v1065
        %v1070 = vmul.f32 %v1065, 0.5
        %v1071 = vmul.f32 %v1069, 0.044715
        %v1072 = vadd.f32 %v1065, %v1071
        %v1073 = vmul.f32 %v1072, 1.7728106
        %v1074 = vtanh.pop %v1073
        %v1075 = vadd.f32 %v1074, 1.0
        %v1076 = vmul.f32 %v1070, %v1075
        %v1077 = vpack.c.bf16 %v1076, %v1076
        %v1078 = vld [vmem:[%s12] sm:$0xf]
        %v1079 = vld [vmem:[%s12 + $0x4] sm:$0xf]
        %v1080 = vld [vmem:[%s12 + $0x8] sm:$0xf]
        %v1081 = vld [vmem:[%s12 + $0xc] sm:$0xf]
        %v1082 = vld [vmem:[%s12 + $0x10] sm:$0xf]
        %v1083 = vld [vmem:[%s12 + $0x14] sm:$0xf]
        %v1084 = vld [vmem:[%s12 + $0x18] sm:$0xf]
        %v1085 = vld [vmem:[%s12 + $0x1c] sm:$0xf]
        %v1086 = vld [vmem:[%s12 + $0x20] sm:$0xf]
        %v1087 = vld [vmem:[%s12 + $0x24] sm:$0xf]
        %v1088 = vld [vmem:[%s12 + $0x28] sm:$0xf]
        %v1089 = vld [vmem:[%s12 + $0x2c] sm:$0xf]
        %v1090 = vld [vmem:[%s12 + $0x30] sm:$0xf]
        %v1091 = vld [vmem:[%s12 + $0x34] sm:$0xf]
        %v1092 = vld [vmem:[%s12 + $0x38] sm:$0xf]
        %v1093 = vld [vmem:[%s12 + $0x3c] sm:$0xf]
        %v1094 = vld [vmem:[%s13] sm:$0x1]
        %v1096 = vperm.slane %v1094, 0
        %v1114 = vunpack.c.l.b16 %v1078
        %v1115 = vunpack.c.l.b16 %v1079
        %v1116 = vunpack.c.l.b16 %v1080
        %v1117 = vunpack.c.l.b16 %v1081
        %v1118 = vunpack.c.l.b16 %v1082
        %v1119 = vunpack.c.l.b16 %v1083
        %v1120 = vunpack.c.l.b16 %v1084
        %v1121 = vunpack.c.l.b16 %v1085
        %v1122 = vunpack.c.l.b16 %v1086
        %v1123 = vunpack.c.l.b16 %v1087
        %v1124 = vunpack.c.l.b16 %v1088
        %v1125 = vunpack.c.l.b16 %v1089
        %v1126 = vunpack.c.l.b16 %v1090
        %v1127 = vunpack.c.l.b16 %v1091
        %v1128 = vunpack.c.l.b16 %v1092
        %v1129 = vunpack.c.l.b16 %v1093
        %v1130 = vpack.c.b16 %v1115, %v1114
        %v1131 = vpack.c.b16 %v1117, %v1116
        %v1132 = vpack.c.b16 %v1119, %v1118
        %v1133 = vpack.c.b16 %v1121, %v1120
        %v1134 = vpack.c.b16 %v1123, %v1122
        %v1135 = vpack.c.b16 %v1125, %v1124
        %v1136 = vpack.c.b16 %v1127, %v1126
        %v1137 = vpack.c.b16 %v1129, %v1128
        %1146 = vmatpush.bf16.msra.mxu0 %v1137
        %1147 = vmatpush.bf16.msra.mxu0 %v1136
        %1148 = vmatpush.bf16.msra.mxu0 %v1135
        %1149 = vmatpush.bf16.msra.mxu0 %v1134
        %1150 = vmatpush.bf16.msra.mxu0 %v1133
        %1151 = vmatpush.bf16.msra.mxu0 %v1132
        %1152 = vmatpush.bf16.msra.mxu0 %v1131
        %1153 = vmatpush.bf16.msra.mxu0 %v1130
        %1154 = vmatmul.bf16.gmra.mxu0 %v1077
        %v1155 = vpop.f32.mrf.mxu0
        %v1156 = vadd.f32 %v1096, %v1155
        %v1157 = vpop.f32.mrf.mxu0
        %1158 = vdwg.mxu0
        %v1159 = vadd.f32 %v982, %v1156
        %1160 = vst.msk [vmem:[%s561] sm:$0xff] %vm571, %v1159
        %s1161 = sand.u32 %s401, 1
        %s1162 = scalar_lea.sflag [#allocation4], %s1161
        %s1163 = sand.u32 %s401, 1
        %s1164 = smul.addr %s1163, 8
        %s1165 = scalar_lea.vmem [#allocation5], %s1164
        // Predicated region
        $region89: #{tpu_custom_call.1} parent=83 // pred_check
          %p1166 = pneg %p411
        $region90: #{tpu_custom_call.1} parent=83 // pred_check_branch
          %1168 = sbr.rel (%p1166) target = $region92
        $region91: #{tpu_custom_call.1} parent=83 // pred_region
          %1170 = vsyncadd %s1162, 0
          %s1171 = sadd.s32 %s38, %s37
          %s1172 = smul.addr %s1171, 8
          %s1173 = scalar_lea.hbm %s16, %s1172
          %s1175 = sshll.u32 %s1165, 4
          %s1176 = int_to_ptr.vmem [resolvable:$true] %s1175
          %s1177 = sshll.u32 %s1173, 4
          %s1178 = int_to_ptr.hbm [resolvable:$true] %s1177
          %1180 = dma.vmem_to_hbm [thread:$0]  %s1176, 128, %s1178, %s1162
        $region92: #{tpu_custom_call.1} parent=83 // pred_fallthru
          _
      $region84: #{tpu_custom_call.1} parent=5 // pred_fallthru
        _
      %p1181 = scmp.le.s32.totalorder 2, %s28
      // Predicated region
      $region93: #{tpu_custom_call.1} parent=5 // pred_check
        %p1182 = pneg %p1181
      $region94: #{tpu_custom_call.1} parent=5 // pred_check_branch
        %1184 = sbr.rel (%p1182) target = $region96
      $region95: #{tpu_custom_call.1} parent=5 // pred_region
        %s1185 = ssub.s32 %s28, 2
        // Predicated region
        $region97: #{tpu_custom_call.1} parent=95 // pred_check
          %p1186 = pneg %p417
        $region98: #{tpu_custom_call.1} parent=95 // pred_check_branch
          %1188 = sbr.rel (%p1186) target = $region100
        $region99: #{tpu_custom_call.1} parent=95 // pred_region
          %s1189 = sand.u32 %s402, 1
          %s1190 = scalar_lea.sflag [#allocation4], %s1189
          %s1191 = sand.u32 %s402, 1
          %s1192 = smul.addr %s1191, 8
          %s1193 = scalar_lea.vmem [#allocation5], %s1192
          %1195 = dma.done %s1190, 128
        $region100: #{tpu_custom_call.1} parent=95 // pred_fallthru
          _
      $region96: #{tpu_custom_call.1} parent=5 // pred_fallthru
        _
    $region6: #{tpu_custom_call.1} parent=1 // loop_footer
      %s32 = sadd.s32 1, %s28
    $region7: #{tpu_custom_call.1} parent=1 // loop_footer_branch
      %27 = sbr.rel target = $region3
    $region8: #{tpu_custom_call.1} parent=1 // loop_exit
      _
    %1196 = vsyncpa [#allocation3], 1
    %s1197 = scalar_lea.sflag [#allocation3], 1
    %1198 = vsyncpa %s1197, 1
    %1199 = vsyncpa [#allocation4], 1
    %s1200 = scalar_lea.sflag [#allocation4], 1
    %1201 = vsyncpa %s1200, 1

</llo_original>
